<compile_context>
chip_gen: v7x
topology: tpu7x:2x2x1
jax: 0.10.0
libtpu: 0.0.40
codegen_flags: <defaults>
</compile_context>

<pallas_src>
import functools

import jax
import jax.numpy as jnp
from jax import lax
from jax.experimental import pallas as pl
from jax.experimental.pallas import tpu as pltpu


def _round_up(x, m):
    return ((x + m - 1) // m) * m


# -----------------------------------------------------------------------------
# Kernel 1: fused (patches @ W) + ReLU + BatchNorm batch-statistics epilogue.
# Grid = (phase, row_tile); stats accumulate into a resident (8, C) output
# (row 0 = sum, row 1 = sum of squares), so both grid axes are "arbitrary".
# -----------------------------------------------------------------------------
def _mm_relu_stats_kernel(a_ref, b_ref, h_ref, stats_ref):
    p = pl.program_id(0)
    i = pl.program_id(1)

    @pl.when((p == 0) & (i == 0))
    def _():
        stats_ref[...] = jnp.zeros_like(stats_ref)

    h = jnp.dot(a_ref[...], b_ref[...], preferred_element_type=jnp.float32)
    h = jnp.maximum(h, 0.0)                              # fused ReLU
    h_ref[...] = h.astype(h_ref.dtype)

    # BN statistics ride along as VPU/XLU filler under the MXU.
    s1 = jnp.sum(h, axis=0, keepdims=True)               # (1, C)
    s2 = jnp.sum(h * h, axis=0, keepdims=True)           # (1, C)
    row = lax.broadcasted_iota(jnp.int32, stats_ref.shape, 0)
    upd = jnp.where(row == 0, s1, 0.0) + jnp.where(row == 1, s2, 0.0)
    stats_ref[...] = stats_ref[...] + upd


def fused_matmul_relu_bn_stats(patches, weights, *, tm_max=512):
    """patches: (Pa, R, K) bf16 (Pa == P, or 1 -> broadcast across phases)
       weights: (P, K, C)  bf16
       Returns h (P, Rp, C) bf16, stats (8, C) f32, row-tile tm."""
    Pa, R, K = patches.shape
    P, K2, C = weights.shape
    assert K == K2
    tm = min(tm_max, _round_up(R, 8))        # size tile to the real M (>=8 rows)
    Rp = _round_up(R, tm)
    if Rp != R:
        patches = jnp.pad(patches, ((0, 0), (0, Rp - R), (0, 0)))
    if Pa == P:
        a_map = lambda p, i: (p, i, 0)
    else:                                     # same activation for every phase
        a_map = lambda p, i: (0, i, 0)

    h, stats = pl.pallas_call(
        _mm_relu_stats_kernel,
        out_shape=(jax.ShapeDtypeStruct((P, Rp, C), jnp.bfloat16),
                   jax.ShapeDtypeStruct((8, C), jnp.float32)),
        grid=(P, Rp // tm),
        in_specs=[pl.BlockSpec((None, tm, K), a_map),
                  pl.BlockSpec((None, K, C), lambda p, i: (p, 0, 0))],
        out_specs=(pl.BlockSpec((None, tm, C), lambda p, i: (p, i, 0)),
                   pl.BlockSpec((8, C), lambda p, i: (0, 0))),
        compiler_params=pltpu.CompilerParams(
            # stats output is revisited along BOTH axes -> accumulator axes.
            dimension_semantics=("arbitrary", "arbitrary")),
    )(patches, weights)
    return h, stats, tm


# -----------------------------------------------------------------------------
# Kernel 2: apply BatchNorm (global batch stats, gamma=1/beta=0) — tiled rows.
# -----------------------------------------------------------------------------
def _bn_apply_kernel(h_ref, prm_ref, o_ref):
    x = h_ref[...].astype(jnp.float32)
    mean = prm_ref[0:1, :]
    inv = prm_ref[1:2, :]
    o_ref[...] = ((x - mean) * inv).astype(o_ref.dtype)


def batchnorm_apply(h, stats, count, *, tm, eps=1e-5):
    P, Rp, C = h.shape
    mean = stats[0] / count
    var = jnp.maximum(stats[1] / count - mean * mean, 0.0)   # biased batch var
    inv = lax.rsqrt(var + eps)
    prm = jnp.zeros((8, C), jnp.float32).at[0].set(mean).at[1].set(inv)
    return pl.pallas_call(
        _bn_apply_kernel,
        out_shape=jax.ShapeDtypeStruct((P, Rp, C), jnp.bfloat16),
        grid=(P, Rp // tm),
        in_specs=[pl.BlockSpec((None, tm, C), lambda p, i: (p, i, 0)),
                  pl.BlockSpec((8, C), lambda p, i: (0, 0))],
        out_specs=pl.BlockSpec((None, tm, C), lambda p, i: (p, i, 0)),
        compiler_params=pltpu.CompilerParams(
            dimension_semantics=("parallel", "parallel")),
    )(h, prm)


# -----------------------------------------------------------------------------
# Kernel 3 (final layer): fused logits-matmul + Softmax(dim=channel) +
# per-pixel multinomial sample.  Pixels on lanes, channels on sublanes.
# -----------------------------------------------------------------------------
def _logits_softmax_sample_kernel(w_ref, a_ref, u_ref, qp_ref, g_ref, *, nc):
    logits = jnp.dot(w_ref[...], a_ref[...],
                     preferred_element_type=jnp.float32)      # (nc, tn)
    m = jnp.max(logits, axis=0, keepdims=True)                # (1, tn)
    e = jnp.exp(logits - m)
    qp = e / jnp.sum(e, axis=0, keepdims=True)
    qp_ref[...] = qp

    # inverse-CDF categorical sample: running cumulative sum over nc rows
    u = u_ref[...]                                            # (1, tn)
    run = jnp.zeros_like(u)
    idx = jnp.zeros_like(u)
    for c in range(nc):                                       # nc tiny & static
        run = run + qp[c:c + 1, :]
        idx = idx + (u >= run).astype(jnp.float32)
    idx = jnp.minimum(idx, jnp.float32(nc - 1))
    g_ref[...] = jnp.broadcast_to(idx, qp.shape)              # class id per channel


def fused_logits_softmax_sample(pt, wt, u, nc, *, tn_max=512):
    """pt: (P, K, R) bf16 (patches, pixels on lanes); wt: (P, nc, K) bf16;
       u: (P, 1, R) f32 uniforms.  Returns qp_t, g_t: (P, nc, Rp) f32."""
    P, K, R = pt.shape
    tn = min(tn_max, _round_up(R, 128))
    Rp = _round_up(R, tn)
    if Rp != R:
        pt = jnp.pad(pt, ((0, 0), (0, 0), (0, Rp - R)))
        u = jnp.pad(u, ((0, 0), (0, 0), (0, Rp - R)))
    return pl.pallas_call(
        functools.partial(_logits_softmax_sample_kernel, nc=nc),
        out_shape=(jax.ShapeDtypeStruct((P, nc, Rp), jnp.float32),
                   jax.ShapeDtypeStruct((P, nc, Rp), jnp.float32)),
        grid=(P, Rp // tn),
        in_specs=[pl.BlockSpec((None, nc, K), lambda p, i: (p, 0, 0)),
                  pl.BlockSpec((None, K, tn), lambda p, i: (p, 0, i)),
                  pl.BlockSpec((None, 1, tn), lambda p, i: (p, 0, i))],
        out_specs=(pl.BlockSpec((None, nc, tn), lambda p, i: (p, 0, i)),
                   pl.BlockSpec((None, nc, tn), lambda p, i: (p, 0, i))),
        compiler_params=pltpu.CompilerParams(
            dimension_semantics=("parallel", "parallel")),
    )(wt, pt, u)


# ------------------- ConvTranspose2d phase-decomposition glue -----------------
def _convT_phase_patches(x_nhwc, k, stride, pad):
    """Sub-pixel decomposed im2col for ConvTranspose2d(k, stride, pad).
    Each output phase (oh%2, ow%2) only sees (k//stride)^2 taps; no zero-dilation.
    Returns patches (P, N*OHq*OWq, ntaps*Cin), per-phase tap list, geometry."""
    N, H, W, Cin = x_nhwc.shape
    OH = (H - 1) * stride - 2 * pad + k
    OW = (W - 1) * stride - 2 * pad + k
    assert OH % stride == 0 and OW % stride == 0
    OHq, OWq = OH // stride, OW // stride
    pp = k - 1 - pad
    PB = k                                            # generous zero halo
    xp = jnp.pad(x_nhwc, ((0, 0), (PB, PB), (PB, PB), (0, 0)))
    phases, phase_taps = [], []
    for qh in range(stride):
        for qw in range(stride):
            jhs = [j for j in range(k) if (qh + j - pp) % stride == 0]
            jws = [j for j in range(k) if (qw + j - pp) % stride == 0]
            cols, taps = [], []
            for jh in jhs:
                ih0 = (qh + jh - pp) // stride
                for jw in jws:
                    iw0 = (qw + jw - pp) // stride
                    cols.append(xp[:, PB + ih0:PB + ih0 + OHq,
                                   PB + iw0:PB + iw0 + OWq, :])
                    taps.append((jh, jw))
            phases.append(jnp.concatenate(cols, axis=-1)
                          .reshape(N * OHq * OWq, len(taps) * Cin))
            phase_taps.append(taps)
    return jnp.stack(phases, 0), phase_taps, (N, OHq, OWq)


def _convT_phase_weights(w, phase_taps, dtype):
    """PyTorch ConvTranspose2d weight (Cin, Cout, k, k) -> per-phase (ntaps*Cin, Cout)."""
    Cin, Cout, k, _ = w.shape
    mats = []
    for taps in phase_taps:
        rows = [w[:, :, k - 1 - jh, k - 1 - jw] for (jh, jw) in taps]
        mats.append(jnp.concatenate(rows, axis=0))
    return jnp.stack(mats, 0).astype(dtype)            # (P, ntaps*Cin, Cout)


def _phases_to_nhwc(h, N, OHq, OWq):
    C = h.shape[-1]
    y = h.reshape(2, 2, N, OHq, OWq, C)                # (qh, qw, N, oh', ow', C)
    y = jnp.transpose(y, (2, 3, 0, 4, 1, 5))           # (N, oh', qh, ow', qw, C)
    return y.reshape(N, 2 * OHq, 2 * OWq, C)


def _phases_to_nchw(a, N, OHq, OWq):
    nc = a.shape[1]
    y = a.reshape(2, 2, nc, N, OHq, OWq)               # (qh, qw, nc, N, oh', ow')
    y = jnp.transpose(y, (3, 2, 4, 0, 5, 1))           # (N, nc, oh', qh, ow', qw)
    return y.reshape(N, nc, 2 * OHq, 2 * OWq)


# --------------------------------- Generator ---------------------------------
class GeneratorPallas:
    """Forward pass of Multinomial-GAN Generator(bit, d); weights ~ N(0, 0.02),
    ConvTranspose2d layers have bias=False (matches normal_init defaults)."""

    def __init__(self, bit, d=64, seed=0):
        self.nz = 100
        self.ngf = d
        self.nc = 2 ** bit
        std = 0.02
        ks = jax.random.split(jax.random.PRNGKey(seed), 4)
        self.w1 = jax.random.normal(ks[0], (self.nz, d * 4, 4, 4), jnp.float32) * std
        self.w2 = jax.random.normal(ks[1], (d * 4, d * 2, 4, 4), jnp.float32) * std
        self.w3 = jax.random.normal(ks[2], (d * 2, d, 4, 4), jnp.float32) * std
        self.w4 = jax.random.normal(ks[3], (d, self.nc, 4, 4), jnp.float32) * std

    def _convT_relu_bn(self, x_nhwc, w, pad):
        patches, taps, (N, OHq, OWq) = _convT_phase_patches(x_nhwc, 4, 2, pad)
        wmat = _convT_phase_weights(w, taps, jnp.bfloat16)
        h, stats, tm = fused_matmul_relu_bn_stats(patches.astype(jnp.bfloat16), wmat)
        hbn = batchnorm_apply(h, stats, count=float(4 * N * OHq * OWq), tm=tm)
        hbn = hbn[:, :N * OHq * OWq, :]
        return _phases_to_nhwc(hbn, N, OHq, OWq)

    def __call__(self, z_nchw, sample_key):
        N = z_nchw.shape[0]
        nz, d, nc = self.nz, self.ngf, self.nc

        # layer 1: ConvTranspose2d(nz, 4d, 4, 1, 0) on a 1x1 input + ReLU + BN.
        # The 16 output pixels are 16 independent (N, nz)@(nz, 4d) matmuls ->
        # treat (kh, kw) as 16 "phases" of the fused matmul+ReLU+stats kernel.
        z2 = z_nchw.reshape(N, nz).astype(jnp.bfloat16)
        w1m = jnp.transpose(self.w1, (2, 3, 0, 1)).reshape(16, nz, d * 4)
        h, stats, tm = fused_matmul_relu_bn_stats(z2[None], w1m.astype(jnp.bfloat16))
        hbn = batchnorm_apply(h, stats, count=float(16 * N), tm=tm)
        x = hbn[:, :N, :].reshape(4, 4, N, d * 4).transpose(2, 0, 1, 3)   # NHWC (N,4,4,4d)

        # layer 2: ConvTranspose2d(4d, 2d, 4, 2, 1) -> 8x8, + ReLU + BN
        x = self._convT_relu_bn(x, self.w2, pad=1)
        # layer 3: ConvTranspose2d(2d, d, 4, 2, 2) -> 14x14, + ReLU + BN
        x = self._convT_relu_bn(x, self.w3, pad=2)

        # layer 4: ConvTranspose2d(d, nc, 4, 2, 1) -> 28x28, Softmax(dim=1),
        # GOMultinomial — fully fused (logits never hit HBM).
        patches, taps, (_, OHq, OWq) = _convT_phase_patches(x, 4, 2, 1)
        wmat = _convT_phase_weights(self.w4, taps, jnp.bfloat16)          # (4, 4d, nc)
        pt = jnp.transpose(patches, (0, 2, 1)).astype(jnp.bfloat16)       # (4, 4d, R)
        wt = jnp.transpose(wmat, (0, 2, 1))                               # (4, nc, 4d)
        R = N * OHq * OWq
        u = jax.random.uniform(sample_key, (4, 1, R), jnp.float32)
        qp_t, g_t = fused_logits_softmax_sample(pt, wt, u, nc)
        qp_t, g_t = qp_t[:, :, :R], g_t[:, :, :R]

        Qp = _phases_to_nchw(qp_t, N, OHq, OWq)        # (N, nc, 28, 28)
        gout = _phases_to_nchw(g_t, N, OHq, OWq)       # forward value of zout (== zsamp)
        # TODO(synk): zout = Qp + (zsamp - Qp).detach() is a straight-through *gradient*
        # construct; only its forward value (== zsamp broadcast over channels) is produced.
        return gout, Qp


if __name__ == "__main__":
    bit, d, batch = 2, 16, 2            # nc = 2**bit = 4, ngf = 16 (small but faithful)
    gen = GeneratorPallas(bit=bit, d=d, seed=0)

    key = jax.random.PRNGKey(0)
    zkey, skey = jax.random.split(key)
    z = jax.random.normal(zkey, (batch, 100, 1, 1), jnp.float32)   # noise input, NCHW

    fwd = jax.jit(lambda zz, kk: gen(zz, kk))
    gout, qp = fwd(z, skey)
    gout, qp = jax.block_until_ready((gout, qp))

    assert gout.shape == (batch, 2 ** bit, 28, 28)
    assert qp.shape == (batch, 2 ** bit, 28, 28)
    assert bool(jnp.all(jnp.abs(jnp.sum(qp, axis=1) - 1.0) < 1e-4))   # softmax sums to 1
    assert bool(jnp.all((gout >= 0) & (gout <= 2 ** bit - 1)))        # valid class ids
    assert bool(jnp.all(gout == jnp.round(gout)))                     # integer samples
    print("KERNEL_OK")
</pallas_src>

<mosaic_0001>
module attributes {stable_mosaic.version = 11 : i64} {
  func.func @_mm_relu_stats_kernel(%arg0: i32, %arg1: i32, %arg2: memref<1x8x100xbf16, #tpu.memory_space<vmem>>, %arg3: memref<1x100x64xbf16, #tpu.memory_space<vmem>>, %arg4: memref<1x8x64xbf16, #tpu.memory_space<vmem>>, %arg5: memref<8x64xf32, #tpu.memory_space<vmem>>) attributes {dimension_semantics = [#tpu.dimension_semantics<arbitrary>, #tpu.dimension_semantics<arbitrary>], iteration_bounds = array<i64: 16, 1>, scalar_prefetch = 0 : i64, scratch_operands = 0 : i64, tpu.core_type = #tpu.core_type<tc>, window_params = [{transform_indices = @transform_0, window_bounds = array<i64: 1, 8, 100>}, {transform_indices = @transform_1, window_bounds = array<i64: 1, 100, 64>}, {transform_indices = @transform_2, window_bounds = array<i64: 1, 8, 64>}, {pipeline_mode = #tpu.pipeline_mode<synchronous>, transform_indices = @transform_3, window_bounds = array<i64: 8, 64>}]} {
    %c0_i32 = arith.constant 0 : i32
    %0 = arith.cmpi eq, %arg0, %c0_i32 : i32
    %c0_i32_0 = arith.constant 0 : i32
    %1 = arith.cmpi eq, %arg1, %c0_i32_0 : i32
    %2 = arith.andi %0, %1 : i1
    %3 = arith.extui %2 : i1 to i32
    %c0_i32_1 = arith.constant 0 : i32
    %4 = arith.cmpi ne, %3, %c0_i32_1 : i32
    scf.if %4 {
      %cst_20 = arith.constant 0.000000e+00 : f32
      %38 = vector.broadcast %cst_20 : f32 to vector<8x64xf32>
      %c0_21 = arith.constant 0 : index
      %c0_22 = arith.constant 0 : index
      %39 = vector.load %arg5[%c0_21, %c0_22] : memref<8x64xf32, #tpu.memory_space<vmem>>, vector<8x64xf32>
      tpu.vector_store %arg5[%c0_21, %c0_22], %38 {strides = array<i32>} : memref<8x64xf32, #tpu.memory_space<vmem>>, vector<8x64xf32>,
    } else {
    }
    %c0 = arith.constant 0 : index
    %c0_2 = arith.constant 0 : index
    %c0_3 = arith.constant 0 : index
    %5 = vector.load %arg2[%c0, %c0_2, %c0_3] : memref<1x8x100xbf16, #tpu.memory_space<vmem>>, vector<1x8x100xbf16>
    %6 = vector.shape_cast %5 : vector<1x8x100xbf16> to vector<8x100xbf16>
    %c0_4 = arith.constant 0 : index
    %c0_5 = arith.constant 0 : index
    %c0_6 = arith.constant 0 : index
    %7 = vector.load %arg3[%c0_4, %c0_5, %c0_6] : memref<1x100x64xbf16, #tpu.memory_space<vmem>>, vector<1x100x64xbf16>
    %8 = vector.shape_cast %7 : vector<1x100x64xbf16> to vector<100x64xbf16>
    %cst = arith.constant dense<0.000000e+00> : vector<8x64xf32>
    %9 = tpu.matmul %6, %8, %cst {dimension_numbers = #tpu.dot_dimension_numbers<[1], [0], [0], [1], [0, 0, 1, 1], [], []>} : vector<8x100xbf16>, vector<100x64xbf16>, vector<8x64xf32> -> vector<8x64xf32>
    %cst_7 = arith.constant 0.000000e+00 : f32
    %10 = vector.broadcast %cst_7 : f32 to vector<8x64xf32>
    %11 = arith.maximumf %9, %10 : vector<8x64xf32>
    %12 = arith.truncf %11 : vector<8x64xf32> to vector<8x64xbf16>
    %c0_8 = arith.constant 0 : index
    %c0_9 = arith.constant 0 : index
    %c0_10 = arith.constant 0 : index
    %13 = vector.load %arg4[%c0_8, %c0_9, %c0_10] : memref<1x8x64xbf16, #tpu.memory_space<vmem>>, vector<1x8x64xbf16>
    %14 = vector.shape_cast %13 : vector<1x8x64xbf16> to vector<8x64xbf16>
    %15 = vector.shape_cast %12 : vector<8x64xbf16> to vector<1x8x64xbf16>
    tpu.vector_store %arg4[%c0_8, %c0_9, %c0_10], %15 {strides = array<i32>} : memref<1x8x64xbf16, #tpu.memory_space<vmem>>, vector<1x8x64xbf16>,
    %cst_11 = arith.constant dense<0.000000e+00> : vector<64xf32>
    %16 = vector.multi_reduction <add>, %11, %cst_11 [0] : vector<8x64xf32> to vector<64xf32>
    %17 = vector.shape_cast %16 : vector<64xf32> to vector<1x64xf32>
    %18 = arith.mulf %11, %11 : vector<8x64xf32>
    %cst_12 = arith.constant dense<0.000000e+00> : vector<64xf32>
    %19 = vector.multi_reduction <add>, %18, %cst_12 [0] : vector<8x64xf32> to vector<64xf32>
    %20 = vector.shape_cast %19 : vector<64xf32> to vector<1x64xf32>
    %21 = tpu.iota {dimensions = array<i32: 0>} : vector<8x64xi32>
    %c0_i32_13 = arith.constant 0 : i32
    %22 = vector.broadcast %c0_i32_13 : i32 to vector<8x64xi32>
    %23 = arith.cmpi eq, %21, %22 : vector<8x64xi32>
    %cst_14 = arith.constant 0.000000e+00 : f32
    %24 = vector.shape_cast %17 : vector<1x64xf32> to vector<1x64xf32>
    %25 = vector.broadcast %24 : vector<1x64xf32> to vector<8x64xf32>
    %26 = vector.broadcast %cst_14 : f32 to vector<8x64xf32>
    %27 = arith.select %23, %25, %26 : vector<8x64xi1>, vector<8x64xf32>
    %c1_i32 = arith.constant 1 : i32
    %28 = vector.broadcast %c1_i32 : i32 to vector<8x64xi32>
    %29 = arith.cmpi eq, %21, %28 : vector<8x64xi32>
    %cst_15 = arith.constant 0.000000e+00 : f32
    %30 = vector.shape_cast %20 : vector<1x64xf32> to vector<1x64xf32>
    %31 = vector.broadcast %30 : vector<1x64xf32> to vector<8x64xf32>
    %32 = vector.broadcast %cst_15 : f32 to vector<8x64xf32>
    %33 = arith.select %29, %31, %32 : vector<8x64xi1>, vector<8x64xf32>
    %34 = arith.addf %27, %33 : vector<8x64xf32>
    %c0_16 = arith.constant 0 : index
    %c0_17 = arith.constant 0 : index
    %35 = vector.load %arg5[%c0_16, %c0_17] : memref<8x64xf32, #tpu.memory_space<vmem>>, vector<8x64xf32>
    %36 = arith.addf %35, %34 : vector<8x64xf32>
    %c0_18 = arith.constant 0 : index
    %c0_19 = arith.constant 0 : index
    %37 = vector.load %arg5[%c0_18, %c0_19] : memref<8x64xf32, #tpu.memory_space<vmem>>, vector<8x64xf32>
    tpu.vector_store %arg5[%c0_18, %c0_19], %36 {strides = array<i32>} : memref<8x64xf32, #tpu.memory_space<vmem>>, vector<8x64xf32>,
    return
  }
  func.func @transform_0(%arg0: i32, %arg1: i32) -> (i32, i32, i32) {
    %c0_i32 = arith.constant 0 : i32
    %c0_i32_0 = arith.constant 0 : i32
    %c0_i32_1 = arith.constant 0 : i32
    return %c0_i32, %arg1, %c0_i32_0 : i32, i32, i32
  }
  func.func @transform_1(%arg0: i32, %arg1: i32) -> (i32, i32, i32) {
    %c0_i32 = arith.constant 0 : i32
    %c0_i32_0 = arith.constant 0 : i32
    %c0_i32_1 = arith.constant 0 : i32
    return %arg0, %c0_i32, %c0_i32_0 : i32, i32, i32
  }
  func.func @transform_2(%arg0: i32, %arg1: i32) -> (i32, i32, i32) {
    %c0_i32 = arith.constant 0 : i32
    %c0_i32_0 = arith.constant 0 : i32
    return %arg0, %arg1, %c0_i32 : i32, i32, i32
  }
  func.func @transform_3(%arg0: i32, %arg1: i32) -> (i32, i32) {
    %c0_i32 = arith.constant 0 : i32
    %c0_i32_0 = arith.constant 0 : i32
    %c0_i32_1 = arith.constant 0 : i32
    return %c0_i32, %c0_i32_0 : i32, i32
  }
}

module attributes {stable_mosaic.version = 11 : i64} {
  func.func @_mm_relu_stats_kernel(%arg0: i32, %arg1: i32, %arg2: memref<1x32x256xbf16, #tpu.memory_space<vmem>>, %arg3: memref<1x256x32xbf16, #tpu.memory_space<vmem>>, %arg4: memref<1x32x32xbf16, #tpu.memory_space<vmem>>, %arg5: memref<8x32xf32, #tpu.memory_space<vmem>>) attributes {dimension_semantics = [#tpu.dimension_semantics<arbitrary>, #tpu.dimension_semantics<arbitrary>], iteration_bounds = array<i64: 4, 1>, scalar_prefetch = 0 : i64, scratch_operands = 0 : i64, tpu.core_type = #tpu.core_type<tc>, window_params = [{transform_indices = @transform_0, window_bounds = array<i64: 1, 32, 256>}, {transform_indices = @transform_1, window_bounds = array<i64: 1, 256, 32>}, {transform_indices = @transform_2, window_bounds = array<i64: 1, 32, 32>}, {pipeline_mode = #tpu.pipeline_mode<synchronous>, transform_indices = @transform_3, window_bounds = array<i64: 8, 32>}]} {
    %c0_i32 = arith.constant 0 : i32
    %0 = arith.cmpi eq, %arg0, %c0_i32 : i32
    %c0_i32_0 = arith.constant 0 : i32
    %1 = arith.cmpi eq, %arg1, %c0_i32_0 : i32
    %2 = arith.andi %0, %1 : i1
    %3 = arith.extui %2 : i1 to i32
    %c0_i32_1 = arith.constant 0 : i32
    %4 = arith.cmpi ne, %3, %c0_i32_1 : i32
    scf.if %4 {
      %cst_20 = arith.constant 0.000000e+00 : f32
      %38 = vector.broadcast %cst_20 : f32 to vector<8x32xf32>
      %c0_21 = arith.constant 0 : index
      %c0_22 = arith.constant 0 : index
      %39 = vector.load %arg5[%c0_21, %c0_22] : memref<8x32xf32, #tpu.memory_space<vmem>>, vector<8x32xf32>
      tpu.vector_store %arg5[%c0_21, %c0_22], %38 {strides = array<i32>} : memref<8x32xf32, #tpu.memory_space<vmem>>, vector<8x32xf32>,
    } else {
    }
    %c0 = arith.constant 0 : index
    %c0_2 = arith.constant 0 : index
    %c0_3 = arith.constant 0 : index
    %5 = vector.load %arg2[%c0, %c0_2, %c0_3] : memref<1x32x256xbf16, #tpu.memory_space<vmem>>, vector<1x32x256xbf16>
    %6 = vector.shape_cast %5 : vector<1x32x256xbf16> to vector<32x256xbf16>
    %c0_4 = arith.constant 0 : index
    %c0_5 = arith.constant 0 : index
    %c0_6 = arith.constant 0 : index
    %7 = vector.load %arg3[%c0_4, %c0_5, %c0_6] : memref<1x256x32xbf16, #tpu.memory_space<vmem>>, vector<1x256x32xbf16>
    %8 = vector.shape_cast %7 : vector<1x256x32xbf16> to vector<256x32xbf16>
    %cst = arith.constant dense<0.000000e+00> : vector<32x32xf32>
    %9 = tpu.matmul %6, %8, %cst {dimension_numbers = #tpu.dot_dimension_numbers<[1], [0], [0], [1], [0, 0, 1, 1], [], []>} : vector<32x256xbf16>, vector<256x32xbf16>, vector<32x32xf32> -> vector<32x32xf32>
    %cst_7 = arith.constant 0.000000e+00 : f32
    %10 = vector.broadcast %cst_7 : f32 to vector<32x32xf32>
    %11 = arith.maximumf %9, %10 : vector<32x32xf32>
    %12 = arith.truncf %11 : vector<32x32xf32> to vector<32x32xbf16>
    %c0_8 = arith.constant 0 : index
    %c0_9 = arith.constant 0 : index
    %c0_10 = arith.constant 0 : index
    %13 = vector.load %arg4[%c0_8, %c0_9, %c0_10] : memref<1x32x32xbf16, #tpu.memory_space<vmem>>, vector<1x32x32xbf16>
    %14 = vector.shape_cast %13 : vector<1x32x32xbf16> to vector<32x32xbf16>
    %15 = vector.shape_cast %12 : vector<32x32xbf16> to vector<1x32x32xbf16>
    tpu.vector_store %arg4[%c0_8, %c0_9, %c0_10], %15 {strides = array<i32>} : memref<1x32x32xbf16, #tpu.memory_space<vmem>>, vector<1x32x32xbf16>,
    %cst_11 = arith.constant dense<0.000000e+00> : vector<32xf32>
    %16 = vector.multi_reduction <add>, %11, %cst_11 [0] : vector<32x32xf32> to vector<32xf32>
    %17 = vector.shape_cast %16 : vector<32xf32> to vector<1x32xf32>
    %18 = arith.mulf %11, %11 : vector<32x32xf32>
    %cst_12 = arith.constant dense<0.000000e+00> : vector<32xf32>
    %19 = vector.multi_reduction <add>, %18, %cst_12 [0] : vector<32x32xf32> to vector<32xf32>
    %20 = vector.shape_cast %19 : vector<32xf32> to vector<1x32xf32>
    %21 = tpu.iota {dimensions = array<i32: 0>} : vector<8x32xi32>
    %c0_i32_13 = arith.constant 0 : i32
    %22 = vector.broadcast %c0_i32_13 : i32 to vector<8x32xi32>
    %23 = arith.cmpi eq, %21, %22 : vector<8x32xi32>
    %cst_14 = arith.constant 0.000000e+00 : f32
    %24 = vector.shape_cast %17 : vector<1x32xf32> to vector<1x32xf32>
    %25 = vector.broadcast %24 : vector<1x32xf32> to vector<8x32xf32>
    %26 = vector.broadcast %cst_14 : f32 to vector<8x32xf32>
    %27 = arith.select %23, %25, %26 : vector<8x32xi1>, vector<8x32xf32>
    %c1_i32 = arith.constant 1 : i32
    %28 = vector.broadcast %c1_i32 : i32 to vector<8x32xi32>
    %29 = arith.cmpi eq, %21, %28 : vector<8x32xi32>
    %cst_15 = arith.constant 0.000000e+00 : f32
    %30 = vector.shape_cast %20 : vector<1x32xf32> to vector<1x32xf32>
    %31 = vector.broadcast %30 : vector<1x32xf32> to vector<8x32xf32>
    %32 = vector.broadcast %cst_15 : f32 to vector<8x32xf32>
    %33 = arith.select %29, %31, %32 : vector<8x32xi1>, vector<8x32xf32>
    %34 = arith.addf %27, %33 : vector<8x32xf32>
    %c0_16 = arith.constant 0 : index
    %c0_17 = arith.constant 0 : index
    %35 = vector.load %arg5[%c0_16, %c0_17] : memref<8x32xf32, #tpu.memory_space<vmem>>, vector<8x32xf32>
    %36 = arith.addf %35, %34 : vector<8x32xf32>
    %c0_18 = arith.constant 0 : index
    %c0_19 = arith.constant 0 : index
    %37 = vector.load %arg5[%c0_18, %c0_19] : memref<8x32xf32, #tpu.memory_space<vmem>>, vector<8x32xf32>
    tpu.vector_store %arg5[%c0_18, %c0_19], %36 {strides = array<i32>} : memref<8x32xf32, #tpu.memory_space<vmem>>, vector<8x32xf32>,
    return
  }
  func.func @transform_0(%arg0: i32, %arg1: i32) -> (i32, i32, i32) {
    %c0_i32 = arith.constant 0 : i32
    %c0_i32_0 = arith.constant 0 : i32
    return %arg0, %arg1, %c0_i32 : i32, i32, i32
  }
  func.func @transform_1(%arg0: i32, %arg1: i32) -> (i32, i32, i32) {
    %c0_i32 = arith.constant 0 : i32
    %c0_i32_0 = arith.constant 0 : i32
    %c0_i32_1 = arith.constant 0 : i32
    return %arg0, %c0_i32, %c0_i32_0 : i32, i32, i32
  }
  func.func @transform_2(%arg0: i32, %arg1: i32) -> (i32, i32, i32) {
    %c0_i32 = arith.constant 0 : i32
    %c0_i32_0 = arith.constant 0 : i32
    return %arg0, %arg1, %c0_i32 : i32, i32, i32
  }
  func.func @transform_3(%arg0: i32, %arg1: i32) -> (i32, i32) {
    %c0_i32 = arith.constant 0 : i32
    %c0_i32_0 = arith.constant 0 : i32
    %c0_i32_1 = arith.constant 0 : i32
    return %c0_i32, %c0_i32_0 : i32, i32
  }
}

module attributes {stable_mosaic.version = 11 : i64} {
  func.func @_bn_apply_kernel(%arg0: i32, %arg1: i32, %arg2: memref<1x8x64xbf16, #tpu.memory_space<vmem>>, %arg3: memref<8x64xf32, #tpu.memory_space<vmem>>, %arg4: memref<1x8x64xbf16, #tpu.memory_space<vmem>>) attributes {dimension_semantics = [#tpu.dimension_semantics<parallel>, #tpu.dimension_semantics<parallel>], iteration_bounds = array<i64: 16, 1>, scalar_prefetch = 0 : i64, scratch_operands = 0 : i64, tpu.core_type = #tpu.core_type<tc>, window_params = [{transform_indices = @transform_0, window_bounds = array<i64: 1, 8, 64>}, {pipeline_mode = #tpu.pipeline_mode<synchronous>, transform_indices = @transform_1, window_bounds = array<i64: 8, 64>}, {transform_indices = @transform_2, window_bounds = array<i64: 1, 8, 64>}]} {
    %c0 = arith.constant 0 : index
    %c0_0 = arith.constant 0 : index
    %c0_1 = arith.constant 0 : index
    %0 = vector.load %arg2[%c0, %c0_0, %c0_1] : memref<1x8x64xbf16, #tpu.memory_space<vmem>>, vector<1x8x64xbf16>
    %1 = vector.shape_cast %0 : vector<1x8x64xbf16> to vector<8x64xbf16>
    %2 = arith.extf %1 : vector<8x64xbf16> to vector<8x64xf32>
    %c0_2 = arith.constant 0 : index
    %c0_3 = arith.constant 0 : index
    %3 = vector.load %arg3[%c0_2, %c0_3] : memref<8x64xf32, #tpu.memory_space<vmem>>, vector<1x64xf32>
    %c1 = arith.constant 1 : index
    %c0_4 = arith.constant 0 : index
    %4 = vector.load %arg3[%c1, %c0_4] : memref<8x64xf32, #tpu.memory_space<vmem>>, vector<1x64xf32>
    %5 = vector.broadcast %3 : vector<1x64xf32> to vector<8x64xf32>
    %6 = arith.subf %2, %5 : vector<8x64xf32>
    %7 = vector.broadcast %4 : vector<1x64xf32> to vector<8x64xf32>
    %8 = arith.mulf %6, %7 : vector<8x64xf32>
    %9 = arith.truncf %8 : vector<8x64xf32> to vector<8x64xbf16>
    %c0_5 = arith.constant 0 : index
    %c0_6 = arith.constant 0 : index
    %c0_7 = arith.constant 0 : index
    %10 = vector.load %arg4[%c0_5, %c0_6, %c0_7] : memref<1x8x64xbf16, #tpu.memory_space<vmem>>, vector<1x8x64xbf16>
    %11 = vector.shape_cast %10 : vector<1x8x64xbf16> to vector<8x64xbf16>
    %12 = vector.shape_cast %9 : vector<8x64xbf16> to vector<1x8x64xbf16>
    tpu.vector_store %arg4[%c0_5, %c0_6, %c0_7], %12 {strides = array<i32>} : memref<1x8x64xbf16, #tpu.memory_space<vmem>>, vector<1x8x64xbf16>,
    return
  }
  func.func @transform_0(%arg0: i32, %arg1: i32) -> (i32, i32, i32) {
    %c0_i32 = arith.constant 0 : i32
    %c0_i32_0 = arith.constant 0 : i32
    return %arg0, %arg1, %c0_i32 : i32, i32, i32
  }
  func.func @transform_1(%arg0: i32, %arg1: i32) -> (i32, i32) {
    %c0_i32 = arith.constant 0 : i32
    %c0_i32_0 = arith.constant 0 : i32
    %c0_i32_1 = arith.constant 0 : i32
    return %c0_i32, %c0_i32_0 : i32, i32
  }
  func.func @transform_2(%arg0: i32, %arg1: i32) -> (i32, i32, i32) {
    %c0_i32 = arith.constant 0 : i32
    %c0_i32_0 = arith.constant 0 : i32
    return %arg0, %arg1, %c0_i32 : i32, i32, i32
  }
}

module attributes {stable_mosaic.version = 11 : i64} {
  func.func @_mm_relu_stats_kernel(%arg0: i32, %arg1: i32, %arg2: memref<1x104x128xbf16, #tpu.memory_space<vmem>>, %arg3: memref<1x128x16xbf16, #tpu.memory_space<vmem>>, %arg4: memref<1x104x16xbf16, #tpu.memory_space<vmem>>, %arg5: memref<8x16xf32, #tpu.memory_space<vmem>>) attributes {dimension_semantics = [#tpu.dimension_semantics<arbitrary>, #tpu.dimension_semantics<arbitrary>], iteration_bounds = array<i64: 4, 1>, scalar_prefetch = 0 : i64, scratch_operands = 0 : i64, tpu.core_type = #tpu.core_type<tc>, window_params = [{transform_indices = @transform_0, window_bounds = array<i64: 1, 104, 128>}, {transform_indices = @transform_1, window_bounds = array<i64: 1, 128, 16>}, {transform_indices = @transform_2, window_bounds = array<i64: 1, 104, 16>}, {pipeline_mode = #tpu.pipeline_mode<synchronous>, transform_indices = @transform_3, window_bounds = array<i64: 8, 16>}]} {
    %c0_i32 = arith.constant 0 : i32
    %0 = arith.cmpi eq, %arg0, %c0_i32 : i32
    %c0_i32_0 = arith.constant 0 : i32
    %1 = arith.cmpi eq, %arg1, %c0_i32_0 : i32
    %2 = arith.andi %0, %1 : i1
    %3 = arith.extui %2 : i1 to i32
    %c0_i32_1 = arith.constant 0 : i32
    %4 = arith.cmpi ne, %3, %c0_i32_1 : i32
    scf.if %4 {
      %cst_20 = arith.constant 0.000000e+00 : f32
      %38 = vector.broadcast %cst_20 : f32 to vector<8x16xf32>
      %c0_21 = arith.constant 0 : index
      %c0_22 = arith.constant 0 : index
      %39 = vector.load %arg5[%c0_21, %c0_22] : memref<8x16xf32, #tpu.memory_space<vmem>>, vector<8x16xf32>
      tpu.vector_store %arg5[%c0_21, %c0_22], %38 {strides = array<i32>} : memref<8x16xf32, #tpu.memory_space<vmem>>, vector<8x16xf32>,
    } else {
    }
    %c0 = arith.constant 0 : index
    %c0_2 = arith.constant 0 : index
    %c0_3 = arith.constant 0 : index
    %5 = vector.load %arg2[%c0, %c0_2, %c0_3] : memref<1x104x128xbf16, #tpu.memory_space<vmem>>, vector<1x104x128xbf16>
    %6 = vector.shape_cast %5 : vector<1x104x128xbf16> to vector<104x128xbf16>
    %c0_4 = arith.constant 0 : index
    %c0_5 = arith.constant 0 : index
    %c0_6 = arith.constant 0 : index
    %7 = vector.load %arg3[%c0_4, %c0_5, %c0_6] : memref<1x128x16xbf16, #tpu.memory_space<vmem>>, vector<1x128x16xbf16>
    %8 = vector.shape_cast %7 : vector<1x128x16xbf16> to vector<128x16xbf16>
    %cst = arith.constant dense<0.000000e+00> : vector<104x16xf32>
    %9 = tpu.matmul %6, %8, %cst {dimension_numbers = #tpu.dot_dimension_numbers<[1], [0], [0], [1], [0, 0, 1, 1], [], []>} : vector<104x128xbf16>, vector<128x16xbf16>, vector<104x16xf32> -> vector<104x16xf32>
    %cst_7 = arith.constant 0.000000e+00 : f32
    %10 = vector.broadcast %cst_7 : f32 to vector<104x16xf32>
    %11 = arith.maximumf %9, %10 : vector<104x16xf32>
    %12 = arith.truncf %11 : vector<104x16xf32> to vector<104x16xbf16>
    %c0_8 = arith.constant 0 : index
    %c0_9 = arith.constant 0 : index
    %c0_10 = arith.constant 0 : index
    %13 = vector.load %arg4[%c0_8, %c0_9, %c0_10] : memref<1x104x16xbf16, #tpu.memory_space<vmem>>, vector<1x104x16xbf16>
    %14 = vector.shape_cast %13 : vector<1x104x16xbf16> to vector<104x16xbf16>
    %15 = vector.shape_cast %12 : vector<104x16xbf16> to vector<1x104x16xbf16>
    tpu.vector_store %arg4[%c0_8, %c0_9, %c0_10], %15 {strides = array<i32>} : memref<1x104x16xbf16, #tpu.memory_space<vmem>>, vector<1x104x16xbf16>,
    %cst_11 = arith.constant dense<0.000000e+00> : vector<16xf32>
    %16 = vector.multi_reduction <add>, %11, %cst_11 [0] : vector<104x16xf32> to vector<16xf32>
    %17 = vector.shape_cast %16 : vector<16xf32> to vector<1x16xf32>
    %18 = arith.mulf %11, %11 : vector<104x16xf32>
    %cst_12 = arith.constant dense<0.000000e+00> : vector<16xf32>
    %19 = vector.multi_reduction <add>, %18, %cst_12 [0] : vector<104x16xf32> to vector<16xf32>
    %20 = vector.shape_cast %19 : vector<16xf32> to vector<1x16xf32>
    %21 = tpu.iota {dimensions = array<i32: 0>} : vector<8x16xi32>
    %c0_i32_13 = arith.constant 0 : i32
    %22 = vector.broadcast %c0_i32_13 : i32 to vector<8x16xi32>
    %23 = arith.cmpi eq, %21, %22 : vector<8x16xi32>
    %cst_14 = arith.constant 0.000000e+00 : f32
    %24 = vector.shape_cast %17 : vector<1x16xf32> to vector<1x16xf32>
    %25 = vector.broadcast %24 : vector<1x16xf32> to vector<8x16xf32>
    %26 = vector.broadcast %cst_14 : f32 to vector<8x16xf32>
    %27 = arith.select %23, %25, %26 : vector<8x16xi1>, vector<8x16xf32>
    %c1_i32 = arith.constant 1 : i32
    %28 = vector.broadcast %c1_i32 : i32 to vector<8x16xi32>
    %29 = arith.cmpi eq, %21, %28 : vector<8x16xi32>
    %cst_15 = arith.constant 0.000000e+00 : f32
    %30 = vector.shape_cast %20 : vector<1x16xf32> to vector<1x16xf32>
    %31 = vector.broadcast %30 : vector<1x16xf32> to vector<8x16xf32>
    %32 = vector.broadcast %cst_15 : f32 to vector<8x16xf32>
    %33 = arith.select %29, %31, %32 : vector<8x16xi1>, vector<8x16xf32>
    %34 = arith.addf %27, %33 : vector<8x16xf32>
    %c0_16 = arith.constant 0 : index
    %c0_17 = arith.constant 0 : index
    %35 = vector.load %arg5[%c0_16, %c0_17] : memref<8x16xf32, #tpu.memory_space<vmem>>, vector<8x16xf32>
    %36 = arith.addf %35, %34 : vector<8x16xf32>
    %c0_18 = arith.constant 0 : index
    %c0_19 = arith.constant 0 : index
    %37 = vector.load %arg5[%c0_18, %c0_19] : memref<8x16xf32, #tpu.memory_space<vmem>>, vector<8x16xf32>
    tpu.vector_store %arg5[%c0_18, %c0_19], %36 {strides = array<i32>} : memref<8x16xf32, #tpu.memory_space<vmem>>, vector<8x16xf32>,
    return
  }
  func.func @transform_0(%arg0: i32, %arg1: i32) -> (i32, i32, i32) {
    %c0_i32 = arith.constant 0 : i32
    %c0_i32_0 = arith.constant 0 : i32
    return %arg0, %arg1, %c0_i32 : i32, i32, i32
  }
  func.func @transform_1(%arg0: i32, %arg1: i32) -> (i32, i32, i32) {
    %c0_i32 = arith.constant 0 : i32
    %c0_i32_0 = arith.constant 0 : i32
    %c0_i32_1 = arith.constant 0 : i32
    return %arg0, %c0_i32, %c0_i32_0 : i32, i32, i32
  }
  func.func @transform_2(%arg0: i32, %arg1: i32) -> (i32, i32, i32) {
    %c0_i32 = arith.constant 0 : i32
    %c0_i32_0 = arith.constant 0 : i32
    return %arg0, %arg1, %c0_i32 : i32, i32, i32
  }
  func.func @transform_3(%arg0: i32, %arg1: i32) -> (i32, i32) {
    %c0_i32 = arith.constant 0 : i32
    %c0_i32_0 = arith.constant 0 : i32
    %c0_i32_1 = arith.constant 0 : i32
    return %c0_i32, %c0_i32_0 : i32, i32
  }
}

module attributes {stable_mosaic.version = 11 : i64} {
  func.func @_bn_apply_kernel(%arg0: i32, %arg1: i32, %arg2: memref<1x32x32xbf16, #tpu.memory_space<vmem>>, %arg3: memref<8x32xf32, #tpu.memory_space<vmem>>, %arg4: memref<1x32x32xbf16, #tpu.memory_space<vmem>>) attributes {dimension_semantics = [#tpu.dimension_semantics<parallel>, #tpu.dimension_semantics<parallel>], iteration_bounds = array<i64: 4, 1>, scalar_prefetch = 0 : i64, scratch_operands = 0 : i64, tpu.core_type = #tpu.core_type<tc>, window_params = [{transform_indices = @transform_0, window_bounds = array<i64: 1, 32, 32>}, {pipeline_mode = #tpu.pipeline_mode<synchronous>, transform_indices = @transform_1, window_bounds = array<i64: 8, 32>}, {transform_indices = @transform_2, window_bounds = array<i64: 1, 32, 32>}]} {
    %c0 = arith.constant 0 : index
    %c0_0 = arith.constant 0 : index
    %c0_1 = arith.constant 0 : index
    %0 = vector.load %arg2[%c0, %c0_0, %c0_1] : memref<1x32x32xbf16, #tpu.memory_space<vmem>>, vector<1x32x32xbf16>
    %1 = vector.shape_cast %0 : vector<1x32x32xbf16> to vector<32x32xbf16>
    %2 = arith.extf %1 : vector<32x32xbf16> to vector<32x32xf32>
    %c0_2 = arith.constant 0 : index
    %c0_3 = arith.constant 0 : index
    %3 = vector.load %arg3[%c0_2, %c0_3] : memref<8x32xf32, #tpu.memory_space<vmem>>, vector<1x32xf32>
    %c1 = arith.constant 1 : index
    %c0_4 = arith.constant 0 : index
    %4 = vector.load %arg3[%c1, %c0_4] : memref<8x32xf32, #tpu.memory_space<vmem>>, vector<1x32xf32>
    %5 = vector.broadcast %3 : vector<1x32xf32> to vector<32x32xf32>
    %6 = arith.subf %2, %5 : vector<32x32xf32>
    %7 = vector.broadcast %4 : vector<1x32xf32> to vector<32x32xf32>
    %8 = arith.mulf %6, %7 : vector<32x32xf32>
    %9 = arith.truncf %8 : vector<32x32xf32> to vector<32x32xbf16>
    %c0_5 = arith.constant 0 : index
    %c0_6 = arith.constant 0 : index
    %c0_7 = arith.constant 0 : index
    %10 = vector.load %arg4[%c0_5, %c0_6, %c0_7] : memref<1x32x32xbf16, #tpu.memory_space<vmem>>, vector<1x32x32xbf16>
    %11 = vector.shape_cast %10 : vector<1x32x32xbf16> to vector<32x32xbf16>
    %12 = vector.shape_cast %9 : vector<32x32xbf16> to vector<1x32x32xbf16>
    tpu.vector_store %arg4[%c0_5, %c0_6, %c0_7], %12 {strides = array<i32>} : memref<1x32x32xbf16, #tpu.memory_space<vmem>>, vector<1x32x32xbf16>,
    return
  }
  func.func @transform_0(%arg0: i32, %arg1: i32) -> (i32, i32, i32) {
    %c0_i32 = arith.constant 0 : i32
    %c0_i32_0 = arith.constant 0 : i32
    return %arg0, %arg1, %c0_i32 : i32, i32, i32
  }
  func.func @transform_1(%arg0: i32, %arg1: i32) -> (i32, i32) {
    %c0_i32 = arith.constant 0 : i32
    %c0_i32_0 = arith.constant 0 : i32
    %c0_i32_1 = arith.constant 0 : i32
    return %c0_i32, %c0_i32_0 : i32, i32
  }
  func.func @transform_2(%arg0: i32, %arg1: i32) -> (i32, i32, i32) {
    %c0_i32 = arith.constant 0 : i32
    %c0_i32_0 = arith.constant 0 : i32
    return %arg0, %arg1, %c0_i32 : i32, i32, i32
  }
}

module attributes {stable_mosaic.version = 11 : i64} {
  func.func @_bn_apply_kernel(%arg0: i32, %arg1: i32, %arg2: memref<1x104x16xbf16, #tpu.memory_space<vmem>>, %arg3: memref<8x16xf32, #tpu.memory_space<vmem>>, %arg4: memref<1x104x16xbf16, #tpu.memory_space<vmem>>) attributes {dimension_semantics = [#tpu.dimension_semantics<parallel>, #tpu.dimension_semantics<parallel>], iteration_bounds = array<i64: 4, 1>, scalar_prefetch = 0 : i64, scratch_operands = 0 : i64, tpu.core_type = #tpu.core_type<tc>, window_params = [{transform_indices = @transform_0, window_bounds = array<i64: 1, 104, 16>}, {pipeline_mode = #tpu.pipeline_mode<synchronous>, transform_indices = @transform_1, window_bounds = array<i64: 8, 16>}, {transform_indices = @transform_2, window_bounds = array<i64: 1, 104, 16>}]} {
    %c0 = arith.constant 0 : index
    %c0_0 = arith.constant 0 : index
    %c0_1 = arith.constant 0 : index
    %0 = vector.load %arg2[%c0, %c0_0, %c0_1] : memref<1x104x16xbf16, #tpu.memory_space<vmem>>, vector<1x104x16xbf16>
    %1 = vector.shape_cast %0 : vector<1x104x16xbf16> to vector<104x16xbf16>
    %2 = arith.extf %1 : vector<104x16xbf16> to vector<104x16xf32>
    %c0_2 = arith.constant 0 : index
    %c0_3 = arith.constant 0 : index
    %3 = vector.load %arg3[%c0_2, %c0_3] : memref<8x16xf32, #tpu.memory_space<vmem>>, vector<1x16xf32>
    %c1 = arith.constant 1 : index
    %c0_4 = arith.constant 0 : index
    %4 = vector.load %arg3[%c1, %c0_4] : memref<8x16xf32, #tpu.memory_space<vmem>>, vector<1x16xf32>
    %5 = vector.broadcast %3 : vector<1x16xf32> to vector<104x16xf32>
    %6 = arith.subf %2, %5 : vector<104x16xf32>
    %7 = vector.broadcast %4 : vector<1x16xf32> to vector<104x16xf32>
    %8 = arith.mulf %6, %7 : vector<104x16xf32>
    %9 = arith.truncf %8 : vector<104x16xf32> to vector<104x16xbf16>
    %c0_5 = arith.constant 0 : index
    %c0_6 = arith.constant 0 : index
    %c0_7 = arith.constant 0 : index
    %10 = vector.load %arg4[%c0_5, %c0_6, %c0_7] : memref<1x104x16xbf16, #tpu.memory_space<vmem>>, vector<1x104x16xbf16>
    %11 = vector.shape_cast %10 : vector<1x104x16xbf16> to vector<104x16xbf16>
    %12 = vector.shape_cast %9 : vector<104x16xbf16> to vector<1x104x16xbf16>
    tpu.vector_store %arg4[%c0_5, %c0_6, %c0_7], %12 {strides = array<i32>} : memref<1x104x16xbf16, #tpu.memory_space<vmem>>, vector<1x104x16xbf16>,
    return
  }
  func.func @transform_0(%arg0: i32, %arg1: i32) -> (i32, i32, i32) {
    %c0_i32 = arith.constant 0 : i32
    %c0_i32_0 = arith.constant 0 : i32
    return %arg0, %arg1, %c0_i32 : i32, i32, i32
  }
  func.func @transform_1(%arg0: i32, %arg1: i32) -> (i32, i32) {
    %c0_i32 = arith.constant 0 : i32
    %c0_i32_0 = arith.constant 0 : i32
    %c0_i32_1 = arith.constant 0 : i32
    return %c0_i32, %c0_i32_0 : i32, i32
  }
  func.func @transform_2(%arg0: i32, %arg1: i32) -> (i32, i32, i32) {
    %c0_i32 = arith.constant 0 : i32
    %c0_i32_0 = arith.constant 0 : i32
    return %arg0, %arg1, %c0_i32 : i32, i32, i32
  }
}

module attributes {stable_mosaic.version = 11 : i64} {
  func.func @_logits_softmax_sample_kernel(%arg0: i32, %arg1: i32, %arg2: memref<1x4x64xbf16, #tpu.memory_space<vmem>>, %arg3: memref<1x64x512xbf16, #tpu.memory_space<vmem>>, %arg4: memref<1x1x512xf32, #tpu.memory_space<vmem>>, %arg5: memref<1x4x512xf32, #tpu.memory_space<vmem>>, %arg6: memref<1x4x512xf32, #tpu.memory_space<vmem>>) attributes {dimension_semantics = [#tpu.dimension_semantics<parallel>, #tpu.dimension_semantics<parallel>], iteration_bounds = array<i64: 4, 1>, scalar_prefetch = 0 : i64, scratch_operands = 0 : i64, tpu.core_type = #tpu.core_type<tc>, window_params = [{transform_indices = @transform_0, window_bounds = array<i64: 1, 4, 64>}, {transform_indices = @transform_1, window_bounds = array<i64: 1, 64, 512>}, {transform_indices = @transform_2, window_bounds = array<i64: 1, 1, 512>}, {transform_indices = @transform_3, window_bounds = array<i64: 1, 4, 512>}, {transform_indices = @transform_4, window_bounds = array<i64: 1, 4, 512>}]} {
    %c0 = arith.constant 0 : index
    %c0_0 = arith.constant 0 : index
    %c0_1 = arith.constant 0 : index
    %0 = vector.load %arg2[%c0, %c0_0, %c0_1] : memref<1x4x64xbf16, #tpu.memory_space<vmem>>, vector<1x4x64xbf16>
    %1 = vector.shape_cast %0 : vector<1x4x64xbf16> to vector<4x64xbf16>
    %c0_2 = arith.constant 0 : index
    %c0_3 = arith.constant 0 : index
    %c0_4 = arith.constant 0 : index
    %2 = vector.load %arg3[%c0_2, %c0_3, %c0_4] : memref<1x64x512xbf16, #tpu.memory_space<vmem>>, vector<1x64x512xbf16>
    %3 = vector.shape_cast %2 : vector<1x64x512xbf16> to vector<64x512xbf16>
    %cst = arith.constant dense<0.000000e+00> : vector<4x512xf32>
    %4 = tpu.matmul %1, %3, %cst {dimension_numbers = #tpu.dot_dimension_numbers<[1], [0], [0], [1], [0, 0, 1, 1], [], []>} : vector<4x64xbf16>, vector<64x512xbf16>, vector<4x512xf32> -> vector<4x512xf32>
    %cst_5 = arith.constant dense<0xFF800000> : vector<512xf32>
    %5 = vector.multi_reduction <maximumf>, %4, %cst_5 [0] : vector<4x512xf32> to vector<512xf32>
    %6 = vector.shape_cast %5 : vector<512xf32> to vector<1x512xf32>
    %7 = vector.broadcast %6 : vector<1x512xf32> to vector<4x512xf32>
    %8 = arith.subf %4, %7 : vector<4x512xf32>
    %9 = math.exp %8 : vector<4x512xf32>
    %cst_6 = arith.constant dense<0.000000e+00> : vector<512xf32>
    %10 = vector.multi_reduction <add>, %9, %cst_6 [0] : vector<4x512xf32> to vector<512xf32>
    %11 = vector.shape_cast %10 : vector<512xf32> to vector<1x512xf32>
    %12 = vector.broadcast %11 : vector<1x512xf32> to vector<4x512xf32>
    %13 = arith.divf %9, %12 : vector<4x512xf32>
    %c0_7 = arith.constant 0 : index
    %c0_8 = arith.constant 0 : index
    %c0_9 = arith.constant 0 : index
    %14 = vector.load %arg5[%c0_7, %c0_8, %c0_9] : memref<1x4x512xf32, #tpu.memory_space<vmem>>, vector<1x4x512xf32>
    %15 = vector.shape_cast %14 : vector<1x4x512xf32> to vector<4x512xf32>
    %16 = vector.shape_cast %13 : vector<4x512xf32> to vector<1x4x512xf32>
    tpu.vector_store %arg5[%c0_7, %c0_8, %c0_9], %16 {strides = array<i32>} : memref<1x4x512xf32, #tpu.memory_space<vmem>>, vector<1x4x512xf32>,
    %c0_10 = arith.constant 0 : index
    %c0_11 = arith.constant 0 : index
    %c0_12 = arith.constant 0 : index
    %17 = vector.load %arg4[%c0_10, %c0_11, %c0_12] : memref<1x1x512xf32, #tpu.memory_space<vmem>>, vector<1x1x512xf32>
    %18 = vector.shape_cast %17 : vector<1x1x512xf32> to vector<1x512xf32>
    %cst_13 = arith.constant 0.000000e+00 : f32
    %19 = vector.broadcast %cst_13 : f32 to vector<1x512xf32>
    %cst_14 = arith.constant 0.000000e+00 : f32
    %20 = vector.broadcast %cst_14 : f32 to vector<1x512xf32>
    %21 = vector.extract_strided_slice %13 {offsets = [0, 0], sizes = [1, 512], strides = [1, 1]} : vector<4x512xf32> to vector<1x512xf32>
    %22 = arith.addf %19, %21 : vector<1x512xf32>
    %23 = arith.cmpf oge, %18, %22 : vector<1x512xf32>
    %24 = arith.extui %23 : vector<1x512xi1> to vector<1x512xi32>
    %25 = arith.sitofp %24 : vector<1x512xi32> to vector<1x512xf32>
    %26 = arith.addf %20, %25 : vector<1x512xf32>
    %27 = vector.extract_strided_slice %13 {offsets = [1, 0], sizes = [1, 512], strides = [1, 1]} : vector<4x512xf32> to vector<1x512xf32>
    %28 = arith.addf %22, %27 : vector<1x512xf32>
    %29 = arith.cmpf oge, %18, %28 : vector<1x512xf32>
    %30 = arith.extui %29 : vector<1x512xi1> to vector<1x512xi32>
    %31 = arith.sitofp %30 : vector<1x512xi32> to vector<1x512xf32>
    %32 = arith.addf %26, %31 : vector<1x512xf32>
    %33 = vector.extract_strided_slice %13 {offsets = [2, 0], sizes = [1, 512], strides = [1, 1]} : vector<4x512xf32> to vector<1x512xf32>
    %34 = arith.addf %28, %33 : vector<1x512xf32>
    %35 = arith.cmpf oge, %18, %34 : vector<1x512xf32>
    %36 = arith.extui %35 : vector<1x512xi1> to vector<1x512xi32>
    %37 = arith.sitofp %36 : vector<1x512xi32> to vector<1x512xf32>
    %38 = arith.addf %32, %37 : vector<1x512xf32>
    %39 = vector.extract_strided_slice %13 {offsets = [3, 0], sizes = [1, 512], strides = [1, 1]} : vector<4x512xf32> to vector<1x512xf32>
    %40 = arith.addf %34, %39 : vector<1x512xf32>
    %41 = arith.cmpf oge, %18, %40 : vector<1x512xf32>
    %42 = arith.extui %41 : vector<1x512xi1> to vector<1x512xi32>
    %43 = arith.sitofp %42 : vector<1x512xi32> to vector<1x512xf32>
    %44 = arith.addf %38, %43 : vector<1x512xf32>
    %cst_15 = arith.constant 3.000000e+00 : f32
    %45 = vector.broadcast %cst_15 : f32 to vector<1x512xf32>
    %46 = arith.minimumf %44, %45 : vector<1x512xf32>
    %47 = vector.shape_cast %46 : vector<1x512xf32> to vector<1x512xf32>
    %48 = vector.broadcast %47 : vector<1x512xf32> to vector<4x512xf32>
    %c0_16 = arith.constant 0 : index
    %c0_17 = arith.constant 0 : index
    %c0_18 = arith.constant 0 : index
    %49 = vector.load %arg6[%c0_16, %c0_17, %c0_18] : memref<1x4x512xf32, #tpu.memory_space<vmem>>, vector<1x4x512xf32>
    %50 = vector.shape_cast %49 : vector<1x4x512xf32> to vector<4x512xf32>
    %51 = vector.shape_cast %48 : vector<4x512xf32> to vector<1x4x512xf32>
    tpu.vector_store %arg6[%c0_16, %c0_17, %c0_18], %51 {strides = array<i32>} : memref<1x4x512xf32, #tpu.memory_space<vmem>>, vector<1x4x512xf32>,
    return
  }
  func.func @transform_0(%arg0: i32, %arg1: i32) -> (i32, i32, i32) {
    %c0_i32 = arith.constant 0 : i32
    %c0_i32_0 = arith.constant 0 : i32
    %c0_i32_1 = arith.constant 0 : i32
    return %arg0, %c0_i32, %c0_i32_0 : i32, i32, i32
  }
  func.func @transform_1(%arg0: i32, %arg1: i32) -> (i32, i32, i32) {
    %c0_i32 = arith.constant 0 : i32
    %c0_i32_0 = arith.constant 0 : i32
    return %arg0, %c0_i32, %arg1 : i32, i32, i32
  }
  func.func @transform_2(%arg0: i32, %arg1: i32) -> (i32, i32, i32) {
    %c0_i32 = arith.constant 0 : i32
    %c0_i32_0 = arith.constant 0 : i32
    return %arg0, %c0_i32, %arg1 : i32, i32, i32
  }
  func.func @transform_3(%arg0: i32, %arg1: i32) -> (i32, i32, i32) {
    %c0_i32 = arith.constant 0 : i32
    %c0_i32_0 = arith.constant 0 : i32
    return %arg0, %c0_i32, %arg1 : i32, i32, i32
  }
  func.func @transform_4(%arg0: i32, %arg1: i32) -> (i32, i32, i32) {
    %c0_i32 = arith.constant 0 : i32
    %c0_i32_0 = arith.constant 0 : i32
    return %arg0, %c0_i32, %arg1 : i32, i32, i32
  }
}

</mosaic_0001>

<llo_original>
// kernel: _lambda_.8
$region0: #{_lambda_.8}
  #allocation0 [shape = 'u32[]', space=smem, size = 0x4, offset = 0x4, fixed_abs, tag = 'smem constant byte address 0x4 - core index']
  #allocation1 [shape = 'u32[144,128]{1,0:T(1,128)}', space=vmem, size = 0x12000, scoped, tag = 'internal scratch']
  %s0 = inlined_call_operand.vmem [shape: bf16[16,8,64], index: 0, kind: input, shape index: {}]
  %s1 = inlined_call_operand.vmem [shape: f32[8,64], index: 1, kind: input, shape index: {}]
  %s2 = inlined_call_operand.vmem [shape: bf16[16,8,64], index: 2, kind: output, shape index: {}]
  %s3 = sld [smem:[#allocation0]]
  $region41: #{_lambda_.8} parent=0
    _
  %s5 = ssub.s32 1, %s3
  %s6 = scalar_select 0, %s5, %s3
  loop: start=0, step=1, limit=18
  $region2: #{_lambda_.8} parent=0 // loop_pre_header
    _
  $region3: #{_lambda_.8} parent=0 // loop_header
    %s8 = sphi 0, %s12
    %p9 = scmp.ge.s32.totalorder %s8, 18
    %s15 = sphi 0, %s27
    %s16 = sphi 0, %s23
    %s17 = sphi 0, %s15
    %s18 = sphi 0, %s16
    %s19 = sphi 0, %s17
    %s20 = sphi 0, %s18
    %s32 = sphi 0, %s34
    %s35 = sphi 0, %s32
    %s36 = sphi 0, %s35
    %s52 = sphi 0, %s36
    %s56 = sphi 0, %s56
    %s58 = sphi 0, %s56
    %s59 = sphi 0, %s58
    %s73 = sphi 0, %s59
    %s81 = sphi 0, %s83
    %s84 = sphi 0, %s81
    %s85 = sphi 0, %s84
    %s101 = sphi 0, %s85
  $region4: #{_lambda_.8} parent=0 // loop_header_branch
    %11 = sbr.rel (%p9) target = $region8
  $region5: #{_lambda_.8} parent=0 // loop_body
    %s13 = ssub.s32 %s8, 1
    %s14 = ssub.s32 %s8, 2
    %s21 = sadd.s32 1, %s16
    %p22 = scmp.ge.s32.totalorder %s21, 1
    %s23 = scalar_select %p22, 0, %s21
    %s24 = sadd.s32 1, %s15
    %s25 = scalar_select %p22, %s24, %s15
    %p26 = scmp.ge.s32.totalorder %s25, 16
    %s27 = scalar_select %p26, 0, %s25
    %s28 = ssub.s32 %s15, %s27
    %s29 = ssub.s32 %s16, %s23
    %s30 = sor.u32 %s28, %s29
    %p31 = scmp.eq.s32.totalorder %s30, 0
    %s33 = sadd.s32 %s32, 1
    %s34 = scalar_select %p31, %s32, %s33
    %p37 = pneg %p31
    %p38 = scmp.eq.s32.totalorder %s8, 15
    %p39 = por %p37, %p38
    %p40 = scmp.ne.s32.totalorder %s32, %s35
    %p41 = scmp.eq.s32.totalorder %s8, 0
    %p42 = por %p40, %p41
    %p43 = scmp.ne.s32.totalorder %s32, %s35
    %p44 = scmp.eq.s32.totalorder %s13, 15
    %p45 = por %p43, %p44
    %p46 = scmp.ne.s32.totalorder %s35, %s36
    %p47 = scmp.eq.s32.totalorder %s13, 0
    %p48 = por %p46, %p47
    %p49 = scmp.ne.s32.totalorder %s35, %s36
    %p50 = scmp.eq.s32.totalorder %s14, 15
    %p51 = por %p49, %p50
    %p53 = scmp.ne.s32.totalorder %s36, %s52
    %p54 = scmp.eq.s32.totalorder %s14, 0
    %p55 = por %p53, %p54
    %s57 = sadd.s32 %s56, 1
    %p60 = scmp.eq.s32.totalorder %s8, 15
    %p61 = scmp.ne.s32.totalorder %s56, %s58
    %p62 = scmp.eq.s32.totalorder %s8, 0
    %p63 = por %p61, %p62
    %p64 = scmp.ne.s32.totalorder %s56, %s58
    %p65 = scmp.eq.s32.totalorder %s13, 15
    %p66 = por %p64, %p65
    %p67 = scmp.ne.s32.totalorder %s58, %s59
    %p68 = scmp.eq.s32.totalorder %s13, 0
    %p69 = por %p67, %p68
    %p70 = scmp.ne.s32.totalorder %s58, %s59
    %p71 = scmp.eq.s32.totalorder %s14, 15
    %p72 = por %p70, %p71
    %p74 = scmp.ne.s32.totalorder %s59, %s73
    %p75 = scmp.eq.s32.totalorder %s14, 0
    %p76 = por %p74, %p75
    %s77 = ssub.s32 %s15, %s27
    %s78 = ssub.s32 %s16, %s23
    %s79 = sor.u32 %s77, %s78
    %p80 = scmp.eq.s32.totalorder %s79, 0
    %s82 = sadd.s32 %s81, 1
    %s83 = scalar_select %p80, %s81, %s82
    %p86 = pneg %p80
    %p87 = scmp.eq.s32.totalorder %s8, 15
    %p88 = por %p86, %p87
    %p89 = scmp.ne.s32.totalorder %s81, %s84
    %p90 = scmp.eq.s32.totalorder %s8, 0
    %p91 = por %p89, %p90
    %p92 = scmp.ne.s32.totalorder %s81, %s84
    %p93 = scmp.eq.s32.totalorder %s13, 15
    %p94 = por %p92, %p93
    %p95 = scmp.ne.s32.totalorder %s84, %s85
    %p96 = scmp.eq.s32.totalorder %s13, 0
    %p97 = por %p95, %p96
    %p98 = scmp.ne.s32.totalorder %s84, %s85
    %p99 = scmp.eq.s32.totalorder %s14, 15
    %p100 = por %p98, %p99
    %p102 = scmp.ne.s32.totalorder %s85, %s101
    %p103 = scmp.eq.s32.totalorder %s14, 0
    %p104 = por %p102, %p103
    %p105 = scmp.le.s32.totalorder 1, %s8
    %p106 = scmp.lt.s32.totalorder %s8, 17
    %p107 = pnand %p105, %p106
    %p108 = pneg %p107
    // Predicated region
    $region9: #{_lambda_.8} parent=5 // pred_check
      _
    $region10: #{_lambda_.8} parent=5 // pred_check_branch
      %110 = sbr.rel (%p107) target = $region12
    $region11: #{_lambda_.8} parent=5 // pred_region
      %s111 = ssub.s32 %s8, 1
      // Predicated region
      $region13: #{_lambda_.8} parent=11 // pred_check
        %p112 = pneg %p69
      $region14: #{_lambda_.8} parent=11 // pred_check_branch
        %114 = sbr.rel (%p112) target = $region16
      $region15: #{_lambda_.8} parent=11 // pred_region
        _
      $region16: #{_lambda_.8} parent=11 // pred_fallthru
        _
    $region12: #{_lambda_.8} parent=5 // pred_fallthru
      _
    %p115 = scmp.lt.s32.totalorder %s8, 16
    // Predicated region
    $region17: #{_lambda_.8} parent=5 // pred_check
      %p116 = pneg %p115
    $region18: #{_lambda_.8} parent=5 // pred_check_branch
      %118 = sbr.rel (%p116) target = $region20
    $region19: #{_lambda_.8} parent=5 // pred_region
      // Predicated region
      $region21: #{_lambda_.8} parent=19 // pred_check
        %p119 = pneg %p42
      $region22: #{_lambda_.8} parent=19 // pred_check_branch
        %121 = sbr.rel (%p119) target = $region24
      $region23: #{_lambda_.8} parent=19 // pred_region
        %p122 = scmp.lt.s32.totalorder %s15, 15
        %s123 = scalar_select %p122, %s15, 15
        %p124 = scmp.lt.s32.totalorder %s16, 0
        %s125 = scalar_select %p124, %s16, 0
        %s126 = sadd.s32 %s125, %s123
        %s127 = smul.addr %s126, 4
        %s128 = scalar_lea.vmem %s0, %s127
      $region24: #{_lambda_.8} parent=19 // pred_fallthru
        _
    $region20: #{_lambda_.8} parent=5 // pred_fallthru
      _
    %p129 = scmp.le.s32.totalorder 1, %s8
    %p130 = scmp.lt.s32.totalorder %s8, 17
    %p131 = pnand %p129, %p130
    %p132 = pneg %p131
    // Predicated region
    $region25: #{_lambda_.8} parent=5 // pred_check
      _
    $region26: #{_lambda_.8} parent=5 // pred_check_branch
      %134 = sbr.rel (%p131) target = $region28
    $region27: #{_lambda_.8} parent=5 // pred_region
      %s135 = ssub.s32 %s8, 1
      %p136 = scmp.lt.s32.totalorder %s17, 15
      %s137 = scalar_select %p136, %s17, 15
      %p138 = scmp.lt.s32.totalorder %s18, 0
      %s139 = scalar_select %p138, %s18, 0
      %s140 = sadd.s32 %s139, %s137
      %s141 = smul.addr %s140, 4
      %s142 = scalar_lea.vmem %s0, %s141
      %p143 = pneg %p48
      %p144 = pneg %p45
      %p145 = pneg %p69
      %p146 = pneg %p66
      %p147 = pneg %p97
      %p148 = pneg %p94
      %p149 = scmp.lt.s32.totalorder %s17, 15
      %s150 = scalar_select %p149, %s17, 15
      %p151 = scmp.lt.s32.totalorder %s18, 0
      %s152 = scalar_select %p151, %s18, 0
      %s153 = sadd.s32 %s152, %s150
      %s154 = smul.addr %s153, 4
      %s155 = scalar_lea.vmem %s2, %s154
      %p156 = scmp.lt.s32.totalorder %s17, 15
      %s157 = scalar_select %p156, %s17, 15
      %p158 = scmp.lt.s32.totalorder %s18, 0
      %s159 = scalar_select %p158, %s18, 0
      %s160 = sadd.s32 %s159, %s157
      %s161 = smul.addr %s160, 4
      %s162 = scalar_lea.vmem %s0, %s161
      %p163 = scmp.lt.s32.totalorder %s17, 15
      %s164 = scalar_select %p163, %s17, 15
      %p165 = scmp.lt.s32.totalorder %s18, 0
      %s166 = scalar_select %p165, %s18, 0
      %s167 = sadd.s32 %s166, %s164
      %s168 = smul.addr %s167, 4
      %s169 = scalar_lea.vmem %s2, %s168
      %v170 = vld [vmem:[%s162] sm:$0xf]
      %v171 = vunpack.c.l.bf16 %v170
      %v172 = vld [vmem:[%s1] sm:$0x1]
      %v173 = vld [vmem:[%s1 + $0x1] sm:$0x1]
      %v174 = vlaneseq
      %v175 = vshrl.u32 %v174, 7
      %v176 = vsub.s32 0, %v175
      %v177 = vrot.slane %v172, %v176
      %v178 = vsub.f32 %v171, %v177
      %v179 = vlaneseq
      %v180 = vshrl.u32 %v179, 7
      %v181 = vsub.s32 0, %v180
      %v182 = vrot.slane %v173, %v181
      %v183 = vmul.f32 %v178, %v182
      %v184 = vpack.c.bf16 %v183, %v183
      %vm185 = vcmask 519168
      %186 = vst.msk [vmem:[%s169] sm:$0xf] %vm185, %v184
      %p187 = scmp.lt.s32.totalorder %s17, 15
      %s188 = scalar_select %p187, %s17, 15
      %p189 = scmp.lt.s32.totalorder %s18, 0
      %s190 = scalar_select %p189, %s18, 0
      %s191 = sadd.s32 %s190, %s188
      %s192 = smul.addr %s191, 4
      %s193 = scalar_lea.vmem %s2, %s192
      // Predicated region
      $region29: #{_lambda_.8} parent=27 // pred_check
        %p194 = pneg %p94
      $region30: #{_lambda_.8} parent=27 // pred_check_branch
        %196 = sbr.rel (%p194) target = $region32
      $region31: #{_lambda_.8} parent=27 // pred_region
        _
      $region32: #{_lambda_.8} parent=27 // pred_fallthru
        _
    $region28: #{_lambda_.8} parent=5 // pred_fallthru
      _
    %p197 = scmp.le.s32.totalorder 2, %s8
    // Predicated region
    $region33: #{_lambda_.8} parent=5 // pred_check
      %p198 = pneg %p197
    $region34: #{_lambda_.8} parent=5 // pred_check_branch
      %200 = sbr.rel (%p198) target = $region36
    $region35: #{_lambda_.8} parent=5 // pred_region
      %s201 = ssub.s32 %s8, 2
      // Predicated region
      $region37: #{_lambda_.8} parent=35 // pred_check
        %p202 = pneg %p100
      $region38: #{_lambda_.8} parent=35 // pred_check_branch
        %204 = sbr.rel (%p202) target = $region40
      $region39: #{_lambda_.8} parent=35 // pred_region
        %p205 = scmp.lt.s32.totalorder %s19, 15
        %s206 = scalar_select %p205, %s19, 15
        %p207 = scmp.lt.s32.totalorder %s20, 0
        %s208 = scalar_select %p207, %s20, 0
        %s209 = sadd.s32 %s208, %s206
        %s210 = smul.addr %s209, 4
        %s211 = scalar_lea.vmem %s2, %s210
      $region40: #{_lambda_.8} parent=35 // pred_fallthru
        _
    $region36: #{_lambda_.8} parent=5 // pred_fallthru
      _
  $region6: #{_lambda_.8} parent=0 // loop_footer
    %s12 = sadd.s32 1, %s8
  $region7: #{_lambda_.8} parent=0 // loop_footer_branch
    %7 = sbr.rel target = $region3
  $region8: #{_lambda_.8} parent=0 // loop_exit
    _

// kernel: _lambda_.7
$region0: #{_lambda_.7}
  #allocation0 [shape = 'u32[]', space=smem, size = 0x4, offset = 0x4, fixed_abs, tag = 'smem constant byte address 0x4 - core index']
  #allocation1 [shape = 'u32[144,128]{1,0:T(1,128)}', space=vmem, size = 0x12000, scoped, tag = 'internal scratch']
  %s0 = inlined_call_operand.vmem [shape: bf16[1,8,100], index: 0, kind: input, shape index: {}]
  %s1 = inlined_call_operand.hbm [shape: bf16[16,100,64], index: 1, kind: input, shape index: {}]
  %s2 = inlined_call_operand.vmem [shape: bf16[16,8,64], index: 2, kind: output, shape index: {0}]
  %s3 = inlined_call_operand.vmem [shape: f32[8,64], index: 3, kind: output, shape index: {1}]
  %4 = xla_tuple %s2, %s3
  %s5 = sld [smem:[#allocation0]]
  $region57: #{_lambda_.7} parent=0
    _
  %s7 = ssub.s32 1, %s5
  %s8 = scalar_select 0, %s7, %s5
  $region1: #{_lambda_.7} parent=0
    #allocation2 [shape = 'u8[53248]{0}', space=vmem, size = 0xd000, scoped, tag = 'input window, operand 1']
    #allocation3 [shape = 's32[2]{0}', space=sflag, size = 0x8, scoped, tag = 'scoped memory for _lambda_.7']
    %9 = vsyncpa [#allocation3], 0
    %s10 = scalar_lea.sflag [#allocation3], 1
    %11 = vsyncpa %s10, 0
    loop: start=0, step=1, limit=18
    $region2: #{_lambda_.7} parent=1 // loop_pre_header
      _
    $region3: #{_lambda_.7} parent=1 // loop_header
      %s13 = sphi 0, %s17
      %p14 = scmp.ge.s32.totalorder %s13, 18
      %s20 = sphi 0, %s32
      %s21 = sphi 0, %s28
      %s22 = sphi 0, %s20
      %s23 = sphi 0, %s21
      %s24 = sphi 0, %s22
      %s25 = sphi 0, %s23
      %s35 = sphi 0, %s37
      %s38 = sphi 0, %s35
      %s39 = sphi 0, %s38
      %s55 = sphi 0, %s39
      %s61 = sphi 0, %s63
      %s64 = sphi 0, %s61
      %s65 = sphi 0, %s64
      %s81 = sphi 0, %s65
      %s89 = sphi 0, %s91
      %s92 = sphi 0, %s89
      %s93 = sphi 0, %s92
      %s109 = sphi 0, %s93
      %s113 = sphi 0, %s113
      %s115 = sphi 0, %s113
      %s116 = sphi 0, %s115
      %s130 = sphi 0, %s116
    $region4: #{_lambda_.7} parent=1 // loop_header_branch
      %16 = sbr.rel (%p14) target = $region8
    $region5: #{_lambda_.7} parent=1 // loop_body
      %s18 = ssub.s32 %s13, 1
      %s19 = ssub.s32 %s13, 2
      %s26 = sadd.s32 1, %s21
      %p27 = scmp.ge.s32.totalorder %s26, 1
      %s28 = scalar_select %p27, 0, %s26
      %s29 = sadd.s32 1, %s20
      %s30 = scalar_select %p27, %s29, %s20
      %p31 = scmp.ge.s32.totalorder %s30, 16
      %s32 = scalar_select %p31, 0, %s30
      %s33 = ssub.s32 %s21, %s28
      %p34 = scmp.eq.s32.totalorder %s33, 0
      %s36 = sadd.s32 %s35, 1
      %s37 = scalar_select %p34, %s35, %s36
      %p40 = pneg %p34
      %p41 = scmp.eq.s32.totalorder %s13, 15
      %p42 = por %p40, %p41
      %p43 = scmp.ne.s32.totalorder %s35, %s38
      %p44 = scmp.eq.s32.totalorder %s13, 0
      %p45 = por %p43, %p44
      %p46 = scmp.ne.s32.totalorder %s35, %s38
      %p47 = scmp.eq.s32.totalorder %s18, 15
      %p48 = por %p46, %p47
      %p49 = scmp.ne.s32.totalorder %s38, %s39
      %p50 = scmp.eq.s32.totalorder %s18, 0
      %p51 = por %p49, %p50
      %p52 = scmp.ne.s32.totalorder %s38, %s39
      %p53 = scmp.eq.s32.totalorder %s19, 15
      %p54 = por %p52, %p53
      %p56 = scmp.ne.s32.totalorder %s39, %s55
      %p57 = scmp.eq.s32.totalorder %s19, 0
      %p58 = por %p56, %p57
      %s59 = ssub.s32 %s20, %s32
      %p60 = scmp.eq.s32.totalorder %s59, 0
      %s62 = sadd.s32 %s61, 1
      %s63 = scalar_select %p60, %s61, %s62
      %p66 = pneg %p60
      %p67 = scmp.eq.s32.totalorder %s13, 15
      %p68 = por %p66, %p67
      %p69 = scmp.ne.s32.totalorder %s61, %s64
      %p70 = scmp.eq.s32.totalorder %s13, 0
      %p71 = por %p69, %p70
      %p72 = scmp.ne.s32.totalorder %s61, %s64
      %p73 = scmp.eq.s32.totalorder %s18, 15
      %p74 = por %p72, %p73
      %p75 = scmp.ne.s32.totalorder %s64, %s65
      %p76 = scmp.eq.s32.totalorder %s18, 0
      %p77 = por %p75, %p76
      %p78 = scmp.ne.s32.totalorder %s64, %s65
      %p79 = scmp.eq.s32.totalorder %s19, 15
      %p80 = por %p78, %p79
      %p82 = scmp.ne.s32.totalorder %s65, %s81
      %p83 = scmp.eq.s32.totalorder %s19, 0
      %p84 = por %p82, %p83
      %s85 = ssub.s32 %s20, %s32
      %s86 = ssub.s32 %s21, %s28
      %s87 = sor.u32 %s85, %s86
      %p88 = scmp.eq.s32.totalorder %s87, 0
      %s90 = sadd.s32 %s89, 1
      %s91 = scalar_select %p88, %s89, %s90
      %p94 = pneg %p88
      %p95 = scmp.eq.s32.totalorder %s13, 15
      %p96 = por %p94, %p95
      %p97 = scmp.ne.s32.totalorder %s89, %s92
      %p98 = scmp.eq.s32.totalorder %s13, 0
      %p99 = por %p97, %p98
      %p100 = scmp.ne.s32.totalorder %s89, %s92
      %p101 = scmp.eq.s32.totalorder %s18, 15
      %p102 = por %p100, %p101
      %p103 = scmp.ne.s32.totalorder %s92, %s93
      %p104 = scmp.eq.s32.totalorder %s18, 0
      %p105 = por %p103, %p104
      %p106 = scmp.ne.s32.totalorder %s92, %s93
      %p107 = scmp.eq.s32.totalorder %s19, 15
      %p108 = por %p106, %p107
      %p110 = scmp.ne.s32.totalorder %s93, %s109
      %p111 = scmp.eq.s32.totalorder %s19, 0
      %p112 = por %p110, %p111
      %s114 = sadd.s32 %s113, 1
      %p117 = scmp.eq.s32.totalorder %s13, 15
      %p118 = scmp.ne.s32.totalorder %s113, %s115
      %p119 = scmp.eq.s32.totalorder %s13, 0
      %p120 = por %p118, %p119
      %p121 = scmp.ne.s32.totalorder %s113, %s115
      %p122 = scmp.eq.s32.totalorder %s18, 15
      %p123 = por %p121, %p122
      %p124 = scmp.ne.s32.totalorder %s115, %s116
      %p125 = scmp.eq.s32.totalorder %s18, 0
      %p126 = por %p124, %p125
      %p127 = scmp.ne.s32.totalorder %s115, %s116
      %p128 = scmp.eq.s32.totalorder %s19, 15
      %p129 = por %p127, %p128
      %p131 = scmp.ne.s32.totalorder %s116, %s130
      %p132 = scmp.eq.s32.totalorder %s19, 0
      %p133 = por %p131, %p132
      %p134 = scmp.le.s32.totalorder 1, %s13
      %p135 = scmp.lt.s32.totalorder %s13, 17
      %p136 = pnand %p134, %p135
      %p137 = pneg %p136
      // Predicated region
      $region9: #{_lambda_.7} parent=5 // pred_check
        _
      $region10: #{_lambda_.7} parent=5 // pred_check_branch
        %139 = sbr.rel (%p136) target = $region12
      $region11: #{_lambda_.7} parent=5 // pred_region
        %s140 = ssub.s32 %s13, 1
        // Predicated region
        $region13: #{_lambda_.7} parent=11 // pred_check
          %p141 = pneg %p51
        $region14: #{_lambda_.7} parent=11 // pred_check_branch
          %143 = sbr.rel (%p141) target = $region16
        $region15: #{_lambda_.7} parent=11 // pred_region
          %p144 = scmp.lt.s32.totalorder %s23, 0
          %s145 = scalar_select %p144, %s23, 0
          %s146 = smul.addr %s145, 4
          %s147 = scalar_lea.vmem %s0, %s146
        $region16: #{_lambda_.7} parent=11 // pred_fallthru
          _
      $region12: #{_lambda_.7} parent=5 // pred_fallthru
        _
      %p148 = scmp.lt.s32.totalorder %s13, 16
      // Predicated region
      $region17: #{_lambda_.7} parent=5 // pred_check
        %p149 = pneg %p148
      $region18: #{_lambda_.7} parent=5 // pred_check_branch
        %151 = sbr.rel (%p149) target = $region20
      $region19: #{_lambda_.7} parent=5 // pred_region
        // Predicated region
        $region21: #{_lambda_.7} parent=19 // pred_check
          %p152 = pneg %p71
        $region22: #{_lambda_.7} parent=19 // pred_check_branch
          %154 = sbr.rel (%p152) target = $region24
        $region23: #{_lambda_.7} parent=19 // pred_region
          %s155 = sand.u32 %s61, 1
          %s156 = scalar_lea.sflag [#allocation3], %s155
          %s157 = sand.u32 %s61, 1
          %s158 = smul.addr %s157, 52
          %s159 = scalar_lea.vmem [#allocation2], %s158
          %s161 = ssub.s32 832, 832
          %162 = vsyncadd %s156, %s161
          %s163 = smul.addr %s20, 13
          %s164 = smul.addr %s163, 64
          %s165 = scalar_lea.hbm %s1, %s164
          %s166 = sshll.u32 %s159, 4
          %s167 = int_to_ptr.vmem [resolvable:$true] %s166
          %172 = dma.hbm_to_vmem [thread:$0]  %s165, 832, %s167, %s156, 64, 64, 4
        $region24: #{_lambda_.7} parent=19 // pred_fallthru
          _
      $region20: #{_lambda_.7} parent=5 // pred_fallthru
        _
      %p173 = scmp.le.s32.totalorder 1, %s13
      %p174 = scmp.lt.s32.totalorder %s13, 17
      %p175 = pnand %p173, %p174
      %p176 = pneg %p175
      // Predicated region
      $region25: #{_lambda_.7} parent=5 // pred_check
        _
      $region26: #{_lambda_.7} parent=5 // pred_check_branch
        %178 = sbr.rel (%p175) target = $region28
      $region27: #{_lambda_.7} parent=5 // pred_region
        %s179 = ssub.s32 %s13, 1
        %s180 = sand.u32 %s64, 1
        %s181 = scalar_lea.sflag [#allocation3], %s180
        %s182 = sand.u32 %s64, 1
        %s183 = smul.addr %s182, 52
        %s184 = scalar_lea.vmem [#allocation2], %s183
        // Predicated region
        $region29: #{_lambda_.7} parent=27 // pred_check
          %p185 = pneg %p77
        $region30: #{_lambda_.7} parent=27 // pred_check_branch
          %187 = sbr.rel (%p185) target = $region32
        $region31: #{_lambda_.7} parent=27 // pred_region
          %188 = dma.done %s181, 832
        $region32: #{_lambda_.7} parent=27 // pred_fallthru
          _
        %p189 = scmp.lt.s32.totalorder %s23, 0
        %s190 = scalar_select %p189, %s23, 0
        %s191 = smul.addr %s190, 4
        %s192 = scalar_lea.vmem %s0, %s191
        %p193 = pneg %p51
        %p194 = pneg %p48
        %s195 = sand.u32 %s64, 1
        %s196 = scalar_lea.sflag [#allocation3], %s195
        %s197 = sand.u32 %s64, 1
        %s198 = smul.addr %s197, 52
        %s199 = scalar_lea.vmem [#allocation2], %s198
        %p200 = pneg %p77
        %p201 = pneg %p74
        %p202 = pneg %p105
        %p203 = pneg %p102
        %p204 = scmp.lt.s32.totalorder %s22, 15
        %s205 = scalar_select %p204, %s22, 15
        %p206 = scmp.lt.s32.totalorder %s23, 0
        %s207 = scalar_select %p206, %s23, 0
        %s208 = sadd.s32 %s207, %s205
        %s209 = smul.addr %s208, 4
        %s210 = scalar_lea.vmem %s2, %s209
        %p211 = pneg %p126
        %p212 = pneg %p123
        %p213 = scmp.lt.s32.totalorder %s23, 0
        %s214 = scalar_select %p213, %s23, 0
        %s215 = smul.addr %s214, 4
        %s216 = scalar_lea.vmem %s0, %s215
        %p217 = scmp.lt.s32.totalorder %s22, 15
        %s218 = scalar_select %p217, %s22, 15
        %p219 = scmp.lt.s32.totalorder %s23, 0
        %s220 = scalar_select %p219, %s23, 0
        %s221 = sadd.s32 %s220, %s218
        %s222 = smul.addr %s221, 4
        %s223 = scalar_lea.vmem %s2, %s222
        %p225 = scmp.eq.s32.totalorder %s22, 0
        %p226 = scmp.eq.s32.totalorder %s23, 0
        %p227 = pnand %p225, %p226
        %p228 = pneg %p227
        // Predicated region
        $region33: #{_lambda_.7} parent=27 // pred_check
          _
        $region34: #{_lambda_.7} parent=27 // pred_check_branch
          %230 = sbr.rel (%p227) target = $region36
        $region35: #{_lambda_.7} parent=27 // pred_region
          %vm231 = vcmask 523264
          %232 = vst.msk [vmem:[%s3] sm:$0xff] %vm231, 0.0
        $region36: #{_lambda_.7} parent=27 // pred_fallthru
          _
        %v233 = vld [vmem:[%s216] sm:$0xf]
        %v234 = vld [vmem:[%s184] sm:$0xf]
        %v235 = vld [vmem:[%s184 + $0x4] sm:$0xf]
        %v236 = vld [vmem:[%s184 + $0x8] sm:$0xf]
        %v237 = vld [vmem:[%s184 + $0xc] sm:$0xf]
        %v238 = vld [vmem:[%s184 + $0x10] sm:$0xf]
        %v239 = vld [vmem:[%s184 + $0x14] sm:$0xf]
        %v240 = vld [vmem:[%s184 + $0x18] sm:$0xf]
        %v241 = vld [vmem:[%s184 + $0x1c] sm:$0xf]
        %v242 = vld [vmem:[%s184 + $0x20] sm:$0xf]
        %v243 = vld [vmem:[%s184 + $0x24] sm:$0xf]
        %v244 = vld [vmem:[%s184 + $0x28] sm:$0xf]
        %v245 = vld [vmem:[%s184 + $0x2c] sm:$0xf]
        %v246 = vld [vmem:[%s184 + $0x30] sm:$0x3]
        %v260 = vunpack.c.l.b16 %v234
        %v261 = vunpack.c.l.b16 %v235
        %v262 = vunpack.c.l.b16 %v236
        %v263 = vunpack.c.l.b16 %v237
        %v264 = vunpack.c.l.b16 %v238
        %v265 = vunpack.c.l.b16 %v239
        %v266 = vunpack.c.l.b16 %v240
        %v267 = vunpack.c.l.b16 %v241
        %v268 = vunpack.c.l.b16 %v242
        %v269 = vunpack.c.l.b16 %v243
        %v270 = vunpack.c.l.b16 %v244
        %v271 = vunpack.c.l.b16 %v245
        %v272 = vunpack.c.l.b16 %v246
        %v273 = vpack.c.b16 %v261, %v260
        %v274 = vpack.c.b16 %v263, %v262
        %v275 = vpack.c.b16 %v265, %v264
        %v276 = vpack.c.b16 %v267, %v266
        %v277 = vpack.c.b16 %v269, %v268
        %v278 = vpack.c.b16 %v271, %v270
        %v279 = vpack.c.b16 %v272, %v272
        %vm286 = vcmask 818176
        %v288 = vsel %vm286, %v233, 0
        %vm290 = vcmask 1041408
        %v292 = vsel %vm290, %v279, 0
        %294 = vmatprep.subr.bf16.mxu0 0
        %295 = vmatpush1.bf16.msra.mxu0 %v273
        %296 = vmatprep.subr.bf16.mxu0 0
        %297 = vmatpush1.bf16.msra.mxu0 %v274
        %298 = vmatprep.subr.bf16.mxu0 0
        %299 = vmatpush1.bf16.msra.mxu0 %v275
        %300 = vmatprep.subr.bf16.mxu0 0
        %301 = vmatpush1.bf16.msra.mxu0 %v276
        %302 = vmatprep.subr.bf16.mxu0 0
        %303 = vmatpush1.bf16.msra.mxu0 %v277
        %304 = vmatprep.subr.bf16.mxu0 0
        %305 = vmatpush1.bf16.msra.mxu0 %v278
        %306 = vmatprep.subr.bf16.mxu0 0
        %307 = vmatpush1.bf16.msra.mxu0 %v292
        %308 = vmatprep.subr.bf16.mxu0 0
        %309 = vmatpush1.bf16.msra.mxu0 0
        %310 = vmatprep.subr.bf16.mxu0 0
        %311 = vmatpush1.bf16.msra.mxu0 0
        %312 = vmatprep.subr.bf16.mxu0 0
        %313 = vmatpush1.bf16.msra.mxu0 0
        %314 = vmatprep.subr.bf16.mxu0 0
        %315 = vmatpush1.bf16.msra.mxu0 0
        %316 = vmatprep.subr.bf16.mxu0 0
        %317 = vmatpush1.bf16.msra.mxu0 0
        %318 = vmatprep.subr.bf16.mxu0 0
        %319 = vmatpush1.bf16.msra.mxu0 0
        %320 = vmatprep.subr.bf16.mxu0 0
        %321 = vmatpush1.bf16.msra.mxu0 0
        %322 = vmatprep.subr.bf16.mxu0 0
        %323 = vmatpush1.bf16.msra.mxu0 0
        %324 = vmatprep.subr.bf16.mxu0 0
        %325 = vmatpush1.bf16.msra.mxu0 0
        %326 = vmatprep.mubr.bf16.mxu0 0
        %327 = vmatmul.mubr.bf16.gmra.mrb[0].mxu0 %v288
        %v328 = vpop.f32.mrb[0].mxu0
        %v329 = vadd.f32 0.0, %v328
        %v330 = vpop.f32.mrb[0].mxu0
        %v331 = vpop.f32.mrb[0].mxu0
        %v332 = vpop.f32.mrb[0].mxu0
        %333 = vdwg.mxu0
        %v334 = vmax.f32 %v329, 0.0
        %v335 = vpack.c.bf16 %v334, %v334
        %vm336 = vcmask 519168
        %337 = vst.msk [vmem:[%s223] sm:$0xf] %vm336, %v335
        %vm338 = vcmask 523264
        %v339 = vsel %vm338, %v334, 0.0
        %v340 = vrot.slane %v339, 4
        %v341 = vadd.f32 %v339, %v340
        %v342 = vrot.slane %v341, 2
        %v343 = vadd.f32 %v341, %v342
        %v344 = vrot.slane %v343, 1
        %v345 = vadd.f32 %v343, %v344
        %v346 = vmul.f32 %v334, %v334
        %v347 = vsel %vm338, %v346, 0.0
        %v348 = vrot.slane %v347, 4
        %v349 = vadd.f32 %v347, %v348
        %v350 = vrot.slane %v349, 2
        %v351 = vadd.f32 %v349, %v350
        %v352 = vrot.slane %v351, 1
        %v353 = vadd.f32 %v351, %v352
        %v354 = vlaneseq
        %v355 = vshrl.u32 %v354, 7
        %vm356 = vcmp.eq.s32.totalorder %v355, 0
        %v357 = vsel %vm356, %v345, 0.0
        %vm358 = vcmp.eq.s32.totalorder %v355, 1
        %v359 = vsel %vm358, %v353, 0.0
        %v360 = vadd.f32 %v357, %v359
        %v361 = vld [vmem:[%s3] sm:$0xff]
        %v362 = vadd.f32 %v361, %v360
        %363 = vst.msk [vmem:[%s3] sm:$0xff] %vm338, %v362
        %p364 = scmp.lt.s32.totalorder %s22, 15
        %s365 = scalar_select %p364, %s22, 15
        %p366 = scmp.lt.s32.totalorder %s23, 0
        %s367 = scalar_select %p366, %s23, 0
        %s368 = sadd.s32 %s367, %s365
        %s369 = smul.addr %s368, 4
        %s370 = scalar_lea.vmem %s2, %s369
        // Predicated region
        $region37: #{_lambda_.7} parent=27 // pred_check
          %p371 = pneg %p102
        $region38: #{_lambda_.7} parent=27 // pred_check_branch
          %373 = sbr.rel (%p371) target = $region40
        $region39: #{_lambda_.7} parent=27 // pred_region
          _
        $region40: #{_lambda_.7} parent=27 // pred_fallthru
          _
        // Predicated region
        $region41: #{_lambda_.7} parent=27 // pred_check
          %p374 = pneg %p123
        $region42: #{_lambda_.7} parent=27 // pred_check_branch
          %376 = sbr.rel (%p374) target = $region44
        $region43: #{_lambda_.7} parent=27 // pred_region
          _
        $region44: #{_lambda_.7} parent=27 // pred_fallthru
          _
        // Predicated region
        $region45: #{_lambda_.7} parent=27 // pred_check
          %p377 = pneg %p123
        $region46: #{_lambda_.7} parent=27 // pred_check_branch
          %379 = sbr.rel (%p377) target = $region48
        $region47: #{_lambda_.7} parent=27 // pred_region
          _
        $region48: #{_lambda_.7} parent=27 // pred_fallthru
          _
      $region28: #{_lambda_.7} parent=5 // pred_fallthru
        _
      %p380 = scmp.le.s32.totalorder 2, %s13
      // Predicated region
      $region49: #{_lambda_.7} parent=5 // pred_check
        %p381 = pneg %p380
      $region50: #{_lambda_.7} parent=5 // pred_check_branch
        %383 = sbr.rel (%p381) target = $region52
      $region51: #{_lambda_.7} parent=5 // pred_region
        %s384 = ssub.s32 %s13, 2
        // Predicated region
        $region53: #{_lambda_.7} parent=51 // pred_check
          %p385 = pneg %p108
        $region54: #{_lambda_.7} parent=51 // pred_check_branch
          %387 = sbr.rel (%p385) target = $region56
        $region55: #{_lambda_.7} parent=51 // pred_region
          %p388 = scmp.lt.s32.totalorder %s24, 15
          %s389 = scalar_select %p388, %s24, 15
          %p390 = scmp.lt.s32.totalorder %s25, 0
          %s391 = scalar_select %p390, %s25, 0
          %s392 = sadd.s32 %s391, %s389
          %s393 = smul.addr %s392, 4
          %s394 = scalar_lea.vmem %s2, %s393
        $region56: #{_lambda_.7} parent=51 // pred_fallthru
          _
      $region52: #{_lambda_.7} parent=5 // pred_fallthru
        _
    $region6: #{_lambda_.7} parent=1 // loop_footer
      %s17 = sadd.s32 1, %s13
    $region7: #{_lambda_.7} parent=1 // loop_footer_branch
      %12 = sbr.rel target = $region3
    $region8: #{_lambda_.7} parent=1 // loop_exit
      _
    %395 = vsyncpa [#allocation3], 1
    %s396 = scalar_lea.sflag [#allocation3], 1
    %397 = vsyncpa %s396, 1

// kernel: _lambda_.9
$region0: #{_lambda_.9}
  #allocation0 [shape = 'u32[]', space=smem, size = 0x4, offset = 0x4, fixed_abs, tag = 'smem constant byte address 0x4 - core index']
  #allocation1 [shape = 'u32[144,128]{1,0:T(1,128)}', space=vmem, size = 0x12000, scoped, tag = 'internal scratch']
  %s0 = inlined_call_operand.vmem [shape: bf16[4,32,256], index: 0, kind: input, shape index: {}]
  %s1 = inlined_call_operand.vmem [shape: bf16[4,256,32], index: 1, kind: input, shape index: {}]
  %s2 = inlined_call_operand.vmem [shape: bf16[4,32,32], index: 2, kind: output, shape index: {0}]
  %s3 = inlined_call_operand.vmem [shape: f32[8,32], index: 3, kind: output, shape index: {1}]
  %4 = xla_tuple %s2, %s3
  %s5 = sld [smem:[#allocation0]]
  $region53: #{_lambda_.9} parent=0
    _
  %s7 = ssub.s32 1, %s5
  %s8 = scalar_select 0, %s7, %s5
  loop: start=0, step=1, limit=6
  $region2: #{_lambda_.9} parent=0 // loop_pre_header
    _
  $region3: #{_lambda_.9} parent=0 // loop_header
    %s10 = sphi 0, %s14
    %p11 = scmp.ge.s32.totalorder %s10, 6
    %s17 = sphi 0, %s29
    %s18 = sphi 0, %s25
    %s19 = sphi 0, %s17
    %s20 = sphi 0, %s18
    %s21 = sphi 0, %s19
    %s22 = sphi 0, %s20
    %s34 = sphi 0, %s36
    %s37 = sphi 0, %s34
    %s38 = sphi 0, %s37
    %s54 = sphi 0, %s38
    %s60 = sphi 0, %s62
    %s63 = sphi 0, %s60
    %s64 = sphi 0, %s63
    %s80 = sphi 0, %s64
    %s88 = sphi 0, %s90
    %s91 = sphi 0, %s88
    %s92 = sphi 0, %s91
    %s108 = sphi 0, %s92
    %s112 = sphi 0, %s112
    %s114 = sphi 0, %s112
    %s115 = sphi 0, %s114
    %s129 = sphi 0, %s115
  $region4: #{_lambda_.9} parent=0 // loop_header_branch
    %13 = sbr.rel (%p11) target = $region8
  $region5: #{_lambda_.9} parent=0 // loop_body
    %s15 = ssub.s32 %s10, 1
    %s16 = ssub.s32 %s10, 2
    %s23 = sadd.s32 1, %s18
    %p24 = scmp.ge.s32.totalorder %s23, 1
    %s25 = scalar_select %p24, 0, %s23
    %s26 = sadd.s32 1, %s17
    %s27 = scalar_select %p24, %s26, %s17
    %p28 = scmp.ge.s32.totalorder %s27, 4
    %s29 = scalar_select %p28, 0, %s27
    %s30 = ssub.s32 %s17, %s29
    %s31 = ssub.s32 %s18, %s25
    %s32 = sor.u32 %s30, %s31
    %p33 = scmp.eq.s32.totalorder %s32, 0
    %s35 = sadd.s32 %s34, 1
    %s36 = scalar_select %p33, %s34, %s35
    %p39 = pneg %p33
    %p40 = scmp.eq.s32.totalorder %s10, 3
    %p41 = por %p39, %p40
    %p42 = scmp.ne.s32.totalorder %s34, %s37
    %p43 = scmp.eq.s32.totalorder %s10, 0
    %p44 = por %p42, %p43
    %p45 = scmp.ne.s32.totalorder %s34, %s37
    %p46 = scmp.eq.s32.totalorder %s15, 3
    %p47 = por %p45, %p46
    %p48 = scmp.ne.s32.totalorder %s37, %s38
    %p49 = scmp.eq.s32.totalorder %s15, 0
    %p50 = por %p48, %p49
    %p51 = scmp.ne.s32.totalorder %s37, %s38
    %p52 = scmp.eq.s32.totalorder %s16, 3
    %p53 = por %p51, %p52
    %p55 = scmp.ne.s32.totalorder %s38, %s54
    %p56 = scmp.eq.s32.totalorder %s16, 0
    %p57 = por %p55, %p56
    %s58 = ssub.s32 %s17, %s29
    %p59 = scmp.eq.s32.totalorder %s58, 0
    %s61 = sadd.s32 %s60, 1
    %s62 = scalar_select %p59, %s60, %s61
    %p65 = pneg %p59
    %p66 = scmp.eq.s32.totalorder %s10, 3
    %p67 = por %p65, %p66
    %p68 = scmp.ne.s32.totalorder %s60, %s63
    %p69 = scmp.eq.s32.totalorder %s10, 0
    %p70 = por %p68, %p69
    %p71 = scmp.ne.s32.totalorder %s60, %s63
    %p72 = scmp.eq.s32.totalorder %s15, 3
    %p73 = por %p71, %p72
    %p74 = scmp.ne.s32.totalorder %s63, %s64
    %p75 = scmp.eq.s32.totalorder %s15, 0
    %p76 = por %p74, %p75
    %p77 = scmp.ne.s32.totalorder %s63, %s64
    %p78 = scmp.eq.s32.totalorder %s16, 3
    %p79 = por %p77, %p78
    %p81 = scmp.ne.s32.totalorder %s64, %s80
    %p82 = scmp.eq.s32.totalorder %s16, 0
    %p83 = por %p81, %p82
    %s84 = ssub.s32 %s17, %s29
    %s85 = ssub.s32 %s18, %s25
    %s86 = sor.u32 %s84, %s85
    %p87 = scmp.eq.s32.totalorder %s86, 0
    %s89 = sadd.s32 %s88, 1
    %s90 = scalar_select %p87, %s88, %s89
    %p93 = pneg %p87
    %p94 = scmp.eq.s32.totalorder %s10, 3
    %p95 = por %p93, %p94
    %p96 = scmp.ne.s32.totalorder %s88, %s91
    %p97 = scmp.eq.s32.totalorder %s10, 0
    %p98 = por %p96, %p97
    %p99 = scmp.ne.s32.totalorder %s88, %s91
    %p100 = scmp.eq.s32.totalorder %s15, 3
    %p101 = por %p99, %p100
    %p102 = scmp.ne.s32.totalorder %s91, %s92
    %p103 = scmp.eq.s32.totalorder %s15, 0
    %p104 = por %p102, %p103
    %p105 = scmp.ne.s32.totalorder %s91, %s92
    %p106 = scmp.eq.s32.totalorder %s16, 3
    %p107 = por %p105, %p106
    %p109 = scmp.ne.s32.totalorder %s92, %s108
    %p110 = scmp.eq.s32.totalorder %s16, 0
    %p111 = por %p109, %p110
    %s113 = sadd.s32 %s112, 1
    %p116 = scmp.eq.s32.totalorder %s10, 3
    %p117 = scmp.ne.s32.totalorder %s112, %s114
    %p118 = scmp.eq.s32.totalorder %s10, 0
    %p119 = por %p117, %p118
    %p120 = scmp.ne.s32.totalorder %s112, %s114
    %p121 = scmp.eq.s32.totalorder %s15, 3
    %p122 = por %p120, %p121
    %p123 = scmp.ne.s32.totalorder %s114, %s115
    %p124 = scmp.eq.s32.totalorder %s15, 0
    %p125 = por %p123, %p124
    %p126 = scmp.ne.s32.totalorder %s114, %s115
    %p127 = scmp.eq.s32.totalorder %s16, 3
    %p128 = por %p126, %p127
    %p130 = scmp.ne.s32.totalorder %s115, %s129
    %p131 = scmp.eq.s32.totalorder %s16, 0
    %p132 = por %p130, %p131
    %p133 = scmp.le.s32.totalorder 1, %s10
    %p134 = scmp.lt.s32.totalorder %s10, 5
    %p135 = pnand %p133, %p134
    %p136 = pneg %p135
    // Predicated region
    $region9: #{_lambda_.9} parent=5 // pred_check
      _
    $region10: #{_lambda_.9} parent=5 // pred_check_branch
      %138 = sbr.rel (%p135) target = $region12
    $region11: #{_lambda_.9} parent=5 // pred_region
      %s139 = ssub.s32 %s10, 1
    $region12: #{_lambda_.9} parent=5 // pred_fallthru
      _
    %p140 = scmp.lt.s32.totalorder %s10, 4
    // Predicated region
    $region13: #{_lambda_.9} parent=5 // pred_check
      %p141 = pneg %p140
    $region14: #{_lambda_.9} parent=5 // pred_check_branch
      %143 = sbr.rel (%p141) target = $region16
    $region15: #{_lambda_.9} parent=5 // pred_region
      // Predicated region
      $region17: #{_lambda_.9} parent=15 // pred_check
        %p144 = pneg %p44
      $region18: #{_lambda_.9} parent=15 // pred_check_branch
        %146 = sbr.rel (%p144) target = $region20
      $region19: #{_lambda_.9} parent=15 // pred_region
        %s147 = smul.u32 4, %s18
        %p148 = scmp.lt.s32.totalorder %s17, 3
        %s149 = scalar_select %p148, %s17, 3
        %p150 = scmp.lt.s32.totalorder %s147, 3
        %s151 = scalar_select %p150, %s147, 3
        %s152 = smul.addr %s151, 2
        %s153 = smul.addr %s149, 8
        %s154 = sadd.s32 %s152, %s153
        %s155 = smul.addr %s154, 4
        %s156 = scalar_lea.vmem %s0, %s155
        %s157 = smul.u32 4, %s18
      $region20: #{_lambda_.9} parent=15 // pred_fallthru
        _
      // Predicated region
      $region21: #{_lambda_.9} parent=15 // pred_check
        %p158 = pneg %p70
      $region22: #{_lambda_.9} parent=15 // pred_check_branch
        %160 = sbr.rel (%p158) target = $region24
      $region23: #{_lambda_.9} parent=15 // pred_region
        %p161 = scmp.lt.s32.totalorder %s17, 3
        %s162 = scalar_select %p161, %s17, 3
        %s163 = smul.addr %s162, 32
        %s164 = smul.addr %s163, 4
        %s165 = scalar_lea.vmem %s1, %s164
      $region24: #{_lambda_.9} parent=15 // pred_fallthru
        _
    $region16: #{_lambda_.9} parent=5 // pred_fallthru
      _
    %p166 = scmp.le.s32.totalorder 1, %s10
    %p167 = scmp.lt.s32.totalorder %s10, 5
    %p168 = pnand %p166, %p167
    %p169 = pneg %p168
    // Predicated region
    $region25: #{_lambda_.9} parent=5 // pred_check
      _
    $region26: #{_lambda_.9} parent=5 // pred_check_branch
      %171 = sbr.rel (%p168) target = $region28
    $region27: #{_lambda_.9} parent=5 // pred_region
      %s172 = ssub.s32 %s10, 1
      %s173 = smul.u32 4, %s20
      %p174 = scmp.lt.s32.totalorder %s19, 3
      %s175 = scalar_select %p174, %s19, 3
      %p176 = scmp.lt.s32.totalorder %s173, 3
      %s177 = scalar_select %p176, %s173, 3
      %s178 = smul.addr %s177, 2
      %s179 = smul.addr %s175, 8
      %s180 = sadd.s32 %s178, %s179
      %s181 = smul.addr %s180, 4
      %s182 = scalar_lea.vmem %s0, %s181
      %p183 = pneg %p50
      %p184 = pneg %p47
      %p185 = scmp.lt.s32.totalorder %s19, 3
      %s186 = scalar_select %p185, %s19, 3
      %s187 = smul.addr %s186, 32
      %s188 = smul.addr %s187, 4
      %s189 = scalar_lea.vmem %s1, %s188
      %p190 = pneg %p76
      %p191 = pneg %p73
      %p192 = pneg %p104
      %p193 = pneg %p101
      %s194 = smul.u32 4, %s20
      %p195 = scmp.lt.s32.totalorder %s19, 3
      %s196 = scalar_select %p195, %s19, 3
      %p197 = scmp.lt.s32.totalorder %s194, 3
      %s198 = scalar_select %p197, %s194, 3
      %s199 = smul.addr %s196, 4
      %s200 = sadd.s32 %s198, %s199
      %s201 = smul.addr %s200, 4
      %s202 = scalar_lea.vmem %s2, %s201
      %p203 = pneg %p125
      %p204 = pneg %p122
      %s205 = smul.u32 4, %s20
      %p206 = scmp.lt.s32.totalorder %s19, 3
      %s207 = scalar_select %p206, %s19, 3
      %p208 = scmp.lt.s32.totalorder %s205, 3
      %s209 = scalar_select %p208, %s205, 3
      %s210 = smul.addr %s209, 2
      %s211 = smul.addr %s207, 8
      %s212 = sadd.s32 %s210, %s211
      %s213 = smul.addr %s212, 4
      %s214 = scalar_lea.vmem %s0, %s213
      %s215 = smul.u32 4, %s20
      %p216 = scmp.lt.s32.totalorder %s19, 3
      %s217 = scalar_select %p216, %s19, 3
      %s218 = smul.addr %s217, 32
      %s219 = smul.addr %s218, 4
      %s220 = scalar_lea.vmem %s1, %s219
      %s221 = smul.u32 4, %s20
      %p222 = scmp.lt.s32.totalorder %s19, 3
      %s223 = scalar_select %p222, %s19, 3
      %p224 = scmp.lt.s32.totalorder %s221, 3
      %s225 = scalar_select %p224, %s221, 3
      %s226 = smul.addr %s223, 4
      %s227 = sadd.s32 %s225, %s226
      %s228 = smul.addr %s227, 4
      %s229 = scalar_lea.vmem %s2, %s228
      %s230 = smul.u32 4, %s20
      %p232 = scmp.eq.s32.totalorder %s19, 0
      %p233 = scmp.eq.s32.totalorder %s20, 0
      %p234 = pnand %p232, %p233
      %p235 = pneg %p234
      // Predicated region
      $region29: #{_lambda_.9} parent=27 // pred_check
        _
      $region30: #{_lambda_.9} parent=27 // pred_check_branch
        %237 = sbr.rel (%p234) target = $region32
      $region31: #{_lambda_.9} parent=27 // pred_region
        %vm238 = vcmask 261120
        %239 = vst.msk [vmem:[%s3] sm:$0xff] %vm238, 0.0
      $region32: #{_lambda_.9} parent=27 // pred_fallthru
        _
      %v240 = vld [vmem:[%s214] sm:$0xff]
      %v241 = vld [vmem:[%s214 + $0x8] sm:$0xff]
      %v242 = vld [vmem:[%s214 + $0x10] sm:$0xff]
      %v243 = vld [vmem:[%s214 + $0x18] sm:$0xff]
      %v244 = vld [vmem:[%s220] sm:$0xf]
      %v245 = vld [vmem:[%s220 + $0x4] sm:$0xf]
      %v246 = vld [vmem:[%s220 + $0x8] sm:$0xf]
      %v247 = vld [vmem:[%s220 + $0xc] sm:$0xf]
      %v248 = vld [vmem:[%s220 + $0x10] sm:$0xf]
      %v249 = vld [vmem:[%s220 + $0x14] sm:$0xf]
      %v250 = vld [vmem:[%s220 + $0x18] sm:$0xf]
      %v251 = vld [vmem:[%s220 + $0x1c] sm:$0xf]
      %v252 = vld [vmem:[%s220 + $0x20] sm:$0xf]
      %v253 = vld [vmem:[%s220 + $0x24] sm:$0xf]
      %v254 = vld [vmem:[%s220 + $0x28] sm:$0xf]
      %v255 = vld [vmem:[%s220 + $0x2c] sm:$0xf]
      %v256 = vld [vmem:[%s220 + $0x30] sm:$0xf]
      %v257 = vld [vmem:[%s220 + $0x34] sm:$0xf]
      %v258 = vld [vmem:[%s220 + $0x38] sm:$0xf]
      %v259 = vld [vmem:[%s220 + $0x3c] sm:$0xf]
      %v260 = vld [vmem:[%s220 + $0x40] sm:$0xf]
      %v261 = vld [vmem:[%s220 + $0x44] sm:$0xf]
      %v262 = vld [vmem:[%s220 + $0x48] sm:$0xf]
      %v263 = vld [vmem:[%s220 + $0x4c] sm:$0xf]
      %v264 = vld [vmem:[%s220 + $0x50] sm:$0xf]
      %v265 = vld [vmem:[%s220 + $0x54] sm:$0xf]
      %v266 = vld [vmem:[%s220 + $0x58] sm:$0xf]
      %v267 = vld [vmem:[%s220 + $0x5c] sm:$0xf]
      %v268 = vld [vmem:[%s220 + $0x60] sm:$0xf]
      %v269 = vld [vmem:[%s220 + $0x64] sm:$0xf]
      %v270 = vld [vmem:[%s220 + $0x68] sm:$0xf]
      %v271 = vld [vmem:[%s220 + $0x6c] sm:$0xf]
      %v272 = vld [vmem:[%s220 + $0x70] sm:$0xf]
      %v273 = vld [vmem:[%s220 + $0x74] sm:$0xf]
      %v274 = vld [vmem:[%s220 + $0x78] sm:$0xf]
      %v275 = vld [vmem:[%s220 + $0x7c] sm:$0xf]
      %v280 = vunpack.c.l.b16 %v240
      %v281 = vunpack.c.h.b16 %v240
      %v282 = vunpack.c.l.b16 %v241
      %v283 = vunpack.c.h.b16 %v241
      %v284 = vunpack.c.l.b16 %v242
      %v285 = vunpack.c.h.b16 %v242
      %v286 = vunpack.c.l.b16 %v243
      %v287 = vunpack.c.h.b16 %v243
      %v288 = vpack.c.b16 %v282, %v280
      %v289 = vpack.c.b16 %v283, %v281
      %v290 = vpack.c.b16 %v286, %v284
      %v291 = vpack.c.b16 %v287, %v285
      %v328 = vunpack.c.l.b16 %v244
      %v329 = vunpack.c.l.b16 %v245
      %v330 = vunpack.c.l.b16 %v246
      %v331 = vunpack.c.l.b16 %v247
      %v332 = vunpack.c.l.b16 %v248
      %v333 = vunpack.c.l.b16 %v249
      %v334 = vunpack.c.l.b16 %v250
      %v335 = vunpack.c.l.b16 %v251
      %v336 = vunpack.c.l.b16 %v252
      %v337 = vunpack.c.l.b16 %v253
      %v338 = vunpack.c.l.b16 %v254
      %v339 = vunpack.c.l.b16 %v255
      %v340 = vunpack.c.l.b16 %v256
      %v341 = vunpack.c.l.b16 %v257
      %v342 = vunpack.c.l.b16 %v258
      %v343 = vunpack.c.l.b16 %v259
      %v344 = vunpack.c.l.b16 %v260
      %v345 = vunpack.c.l.b16 %v261
      %v346 = vunpack.c.l.b16 %v262
      %v347 = vunpack.c.l.b16 %v263
      %v348 = vunpack.c.l.b16 %v264
      %v349 = vunpack.c.l.b16 %v265
      %v350 = vunpack.c.l.b16 %v266
      %v351 = vunpack.c.l.b16 %v267
      %v352 = vunpack.c.l.b16 %v268
      %v353 = vunpack.c.l.b16 %v269
      %v354 = vunpack.c.l.b16 %v270
      %v355 = vunpack.c.l.b16 %v271
      %v356 = vunpack.c.l.b16 %v272
      %v357 = vunpack.c.l.b16 %v273
      %v358 = vunpack.c.l.b16 %v274
      %v359 = vunpack.c.l.b16 %v275
      %v360 = vpack.c.b16 %v329, %v328
      %v361 = vpack.c.b16 %v331, %v330
      %v362 = vpack.c.b16 %v333, %v332
      %v363 = vpack.c.b16 %v335, %v334
      %v364 = vpack.c.b16 %v337, %v336
      %v365 = vpack.c.b16 %v339, %v338
      %v366 = vpack.c.b16 %v341, %v340
      %v367 = vpack.c.b16 %v343, %v342
      %v368 = vpack.c.b16 %v345, %v344
      %v369 = vpack.c.b16 %v347, %v346
      %v370 = vpack.c.b16 %v349, %v348
      %v371 = vpack.c.b16 %v351, %v350
      %v372 = vpack.c.b16 %v353, %v352
      %v373 = vpack.c.b16 %v355, %v354
      %v374 = vpack.c.b16 %v357, %v356
      %v375 = vpack.c.b16 %v359, %v358
      %392 = vmatprep.subr.bf16.mxu0 0
      %393 = vmatpush1.bf16.msra.mxu0 %v360
      %394 = vmatprep.subr.bf16.mxu0 0
      %395 = vmatpush1.bf16.msra.mxu0 %v361
      %396 = vmatprep.subr.bf16.mxu0 0
      %397 = vmatpush1.bf16.msra.mxu0 %v362
      %398 = vmatprep.subr.bf16.mxu0 0
      %399 = vmatpush1.bf16.msra.mxu0 %v363
      %400 = vmatprep.subr.bf16.mxu0 0
      %401 = vmatpush1.bf16.msra.mxu0 %v364
      %402 = vmatprep.subr.bf16.mxu0 0
      %403 = vmatpush1.bf16.msra.mxu0 %v365
      %404 = vmatprep.subr.bf16.mxu0 0
      %405 = vmatpush1.bf16.msra.mxu0 %v366
      %406 = vmatprep.subr.bf16.mxu0 0
      %407 = vmatpush1.bf16.msra.mxu0 %v367
      %408 = vmatprep.subr.bf16.mxu0 0
      %409 = vmatpush1.bf16.msra.mxu0 %v368
      %410 = vmatprep.subr.bf16.mxu0 0
      %411 = vmatpush1.bf16.msra.mxu0 %v369
      %412 = vmatprep.subr.bf16.mxu0 0
      %413 = vmatpush1.bf16.msra.mxu0 %v370
      %414 = vmatprep.subr.bf16.mxu0 0
      %415 = vmatpush1.bf16.msra.mxu0 %v371
      %416 = vmatprep.subr.bf16.mxu0 0
      %417 = vmatpush1.bf16.msra.mxu0 %v372
      %418 = vmatprep.subr.bf16.mxu0 0
      %419 = vmatpush1.bf16.msra.mxu0 %v373
      %420 = vmatprep.subr.bf16.mxu0 0
      %421 = vmatpush1.bf16.msra.mxu0 %v374
      %422 = vmatprep.subr.bf16.mxu0 0
      %423 = vmatpush1.bf16.msra.mxu0 %v375
      %424 = vmatprep.mubr.bf16.mxu0 %v289
      %425 = vmatmul.mubr.bf16.gmra.mrb[0].mxu0 %v288
      %v426 = vpop.f32.mrb[0].mxu0
      %v427 = vadd.f32 0.0, %v426
      %v428 = vpop.f32.mrb[0].mxu0
      %v429 = vpop.f32.mrb[0].mxu0
      %v430 = vadd.f32 0.0, %v429
      %v431 = vpop.f32.mrb[0].mxu0
      %432 = vmatprep.mubr.bf16.mxu0 %v291
      %433 = vmatmul.mubr.bf16.gmra.mrb[0].mxu0 %v290
      %v434 = vpop.f32.mrb[0].mxu0
      %v435 = vadd.f32 0.0, %v434
      %v436 = vpop.f32.mrb[0].mxu0
      %v437 = vpop.f32.mrb[0].mxu0
      %v438 = vadd.f32 0.0, %v437
      %v439 = vpop.f32.mrb[0].mxu0
      %440 = vdwg.mxu0
      %v441 = vmax.f32 %v427, 0.0
      %v442 = vmax.f32 %v430, 0.0
      %v443 = vmax.f32 %v435, 0.0
      %v444 = vmax.f32 %v438, 0.0
      %v445 = vpack.c.bf16 %v442, %v441
      %v446 = vpack.c.bf16 %v444, %v443
      %v449 = vunpack.c.l.b16 %v445
      %v450 = vunpack.c.h.b16 %v445
      %v451 = vunpack.c.l.b16 %v446
      %v452 = vunpack.c.h.b16 %v446
      %v453 = vpack.c.b16 %v449, %v449
      %v454 = vpack.c.b16 %v450, %v450
      %v455 = vpack.c.b16 %v451, %v451
      %v456 = vpack.c.b16 %v452, %v452
      %vm461 = vcmask 257024
      %462 = vst.msk [vmem:[%s229] sm:$0xf] %vm461, %v453
      %463 = vst.msk [vmem:[%s229 + $0x4] sm:$0xf] %vm461, %v454
      %464 = vst.msk [vmem:[%s229 + $0x8] sm:$0xf] %vm461, %v455
      %465 = vst.msk [vmem:[%s229 + $0xc] sm:$0xf] %vm461, %v456
      %vm466 = vcmask 261120
      %v467 = vsel %vm466, %v441, 0.0
      %v468 = vsel %vm466, %v442, 0.0
      %v469 = vadd.f32 %v467, %v468
      %v470 = vsel %vm466, %v443, 0.0
      %v471 = vadd.f32 %v469, %v470
      %v472 = vsel %vm466, %v444, 0.0
      %v473 = vadd.f32 %v471, %v472
      %v474 = vrot.slane %v473, 4
      %v475 = vadd.f32 %v473, %v474
      %v476 = vrot.slane %v475, 2
      %v477 = vadd.f32 %v475, %v476
      %v478 = vrot.slane %v477, 1
      %v479 = vadd.f32 %v477, %v478
      %v480 = vmul.f32 %v441, %v441
      %v481 = vmul.f32 %v442, %v442
      %v482 = vmul.f32 %v443, %v443
      %v483 = vmul.f32 %v444, %v444
      %v484 = vsel %vm466, %v480, 0.0
      %v485 = vsel %vm466, %v481, 0.0
      %v486 = vadd.f32 %v484, %v485
      %v487 = vsel %vm466, %v482, 0.0
      %v488 = vadd.f32 %v486, %v487
      %v489 = vsel %vm466, %v483, 0.0
      %v490 = vadd.f32 %v488, %v489
      %v491 = vrot.slane %v490, 4
      %v492 = vadd.f32 %v490, %v491
      %v493 = vrot.slane %v492, 2
      %v494 = vadd.f32 %v492, %v493
      %v495 = vrot.slane %v494, 1
      %v496 = vadd.f32 %v494, %v495
      %v497 = vlaneseq
      %v498 = vshrl.u32 %v497, 7
      %vm499 = vcmp.eq.s32.totalorder %v498, 0
      %v500 = vsel %vm499, %v479, 0.0
      %vm501 = vcmp.eq.s32.totalorder %v498, 1
      %v502 = vsel %vm501, %v496, 0.0
      %v503 = vadd.f32 %v500, %v502
      %v504 = vld [vmem:[%s3] sm:$0xff]
      %v505 = vadd.f32 %v504, %v503
      %506 = vst.msk [vmem:[%s3] sm:$0xff] %vm466, %v505
      %s507 = smul.u32 4, %s20
      %p508 = scmp.lt.s32.totalorder %s19, 3
      %s509 = scalar_select %p508, %s19, 3
      %p510 = scmp.lt.s32.totalorder %s507, 3
      %s511 = scalar_select %p510, %s507, 3
      %s512 = smul.addr %s509, 4
      %s513 = sadd.s32 %s511, %s512
      %s514 = smul.addr %s513, 4
      %s515 = scalar_lea.vmem %s2, %s514
      // Predicated region
      $region33: #{_lambda_.9} parent=27 // pred_check
        %p516 = pneg %p101
      $region34: #{_lambda_.9} parent=27 // pred_check_branch
        %518 = sbr.rel (%p516) target = $region36
      $region35: #{_lambda_.9} parent=27 // pred_region
        %s519 = smul.u32 4, %s20
      $region36: #{_lambda_.9} parent=27 // pred_fallthru
        _
      // Predicated region
      $region37: #{_lambda_.9} parent=27 // pred_check
        %p520 = pneg %p122
      $region38: #{_lambda_.9} parent=27 // pred_check_branch
        %522 = sbr.rel (%p520) target = $region40
      $region39: #{_lambda_.9} parent=27 // pred_region
        _
      $region40: #{_lambda_.9} parent=27 // pred_fallthru
        _
      // Predicated region
      $region41: #{_lambda_.9} parent=27 // pred_check
        %p523 = pneg %p122
      $region42: #{_lambda_.9} parent=27 // pred_check_branch
        %525 = sbr.rel (%p523) target = $region44
      $region43: #{_lambda_.9} parent=27 // pred_region
        _
      $region44: #{_lambda_.9} parent=27 // pred_fallthru
        _
    $region28: #{_lambda_.9} parent=5 // pred_fallthru
      _
    %p526 = scmp.le.s32.totalorder 2, %s10
    // Predicated region
    $region45: #{_lambda_.9} parent=5 // pred_check
      %p527 = pneg %p526
    $region46: #{_lambda_.9} parent=5 // pred_check_branch
      %529 = sbr.rel (%p527) target = $region48
    $region47: #{_lambda_.9} parent=5 // pred_region
      %s530 = ssub.s32 %s10, 2
      // Predicated region
      $region49: #{_lambda_.9} parent=47 // pred_check
        %p531 = pneg %p107
      $region50: #{_lambda_.9} parent=47 // pred_check_branch
        %533 = sbr.rel (%p531) target = $region52
      $region51: #{_lambda_.9} parent=47 // pred_region
        %s534 = smul.u32 4, %s22
        %p535 = scmp.lt.s32.totalorder %s21, 3
        %s536 = scalar_select %p535, %s21, 3
        %p537 = scmp.lt.s32.totalorder %s534, 3
        %s538 = scalar_select %p537, %s534, 3
        %s539 = smul.addr %s536, 4
        %s540 = sadd.s32 %s538, %s539
        %s541 = smul.addr %s540, 4
        %s542 = scalar_lea.vmem %s2, %s541
      $region52: #{_lambda_.9} parent=47 // pred_fallthru
        _
    $region48: #{_lambda_.9} parent=5 // pred_fallthru
      _
  $region6: #{_lambda_.9} parent=0 // loop_footer
    %s14 = sadd.s32 1, %s10
  $region7: #{_lambda_.9} parent=0 // loop_footer_branch
    %9 = sbr.rel target = $region3
  $region8: #{_lambda_.9} parent=0 // loop_exit
    _

// kernel: _lambda_.11
$region0: #{_lambda_.11}
  #allocation0 [shape = 'u32[]', space=smem, size = 0x4, offset = 0x4, fixed_abs, tag = 'smem constant byte address 0x4 - core index']
  #allocation1 [shape = 'u32[144,128]{1,0:T(1,128)}', space=vmem, size = 0x12000, scoped, tag = 'internal scratch']
  %s0 = inlined_call_operand.vmem [shape: bf16[4,104,128], index: 0, kind: input, shape index: {}]
  %s1 = inlined_call_operand.vmem [shape: bf16[4,128,16], index: 1, kind: input, shape index: {}]
  %s2 = inlined_call_operand.vmem [shape: bf16[4,104,16], index: 2, kind: output, shape index: {0}]
  %s3 = inlined_call_operand.vmem [shape: f32[8,16], index: 3, kind: output, shape index: {1}]
  %4 = xla_tuple %s2, %s3
  %s5 = sld [smem:[#allocation0]]
  $region53: #{_lambda_.11} parent=0
    _
  %s7 = ssub.s32 1, %s5
  %s8 = scalar_select 0, %s7, %s5
  loop: start=0, step=1, limit=6
  $region2: #{_lambda_.11} parent=0 // loop_pre_header
    _
  $region3: #{_lambda_.11} parent=0 // loop_header
    %s10 = sphi 0, %s14
    %p11 = scmp.ge.s32.totalorder %s10, 6
    %s17 = sphi 0, %s29
    %s18 = sphi 0, %s25
    %s19 = sphi 0, %s17
    %s20 = sphi 0, %s18
    %s21 = sphi 0, %s19
    %s22 = sphi 0, %s20
    %s34 = sphi 0, %s36
    %s37 = sphi 0, %s34
    %s38 = sphi 0, %s37
    %s54 = sphi 0, %s38
    %s60 = sphi 0, %s62
    %s63 = sphi 0, %s60
    %s64 = sphi 0, %s63
    %s80 = sphi 0, %s64
    %s88 = sphi 0, %s90
    %s91 = sphi 0, %s88
    %s92 = sphi 0, %s91
    %s108 = sphi 0, %s92
    %s112 = sphi 0, %s112
    %s114 = sphi 0, %s112
    %s115 = sphi 0, %s114
    %s129 = sphi 0, %s115
  $region4: #{_lambda_.11} parent=0 // loop_header_branch
    %13 = sbr.rel (%p11) target = $region8
  $region5: #{_lambda_.11} parent=0 // loop_body
    %s15 = ssub.s32 %s10, 1
    %s16 = ssub.s32 %s10, 2
    %s23 = sadd.s32 1, %s18
    %p24 = scmp.ge.s32.totalorder %s23, 1
    %s25 = scalar_select %p24, 0, %s23
    %s26 = sadd.s32 1, %s17
    %s27 = scalar_select %p24, %s26, %s17
    %p28 = scmp.ge.s32.totalorder %s27, 4
    %s29 = scalar_select %p28, 0, %s27
    %s30 = ssub.s32 %s17, %s29
    %s31 = ssub.s32 %s18, %s25
    %s32 = sor.u32 %s30, %s31
    %p33 = scmp.eq.s32.totalorder %s32, 0
    %s35 = sadd.s32 %s34, 1
    %s36 = scalar_select %p33, %s34, %s35
    %p39 = pneg %p33
    %p40 = scmp.eq.s32.totalorder %s10, 3
    %p41 = por %p39, %p40
    %p42 = scmp.ne.s32.totalorder %s34, %s37
    %p43 = scmp.eq.s32.totalorder %s10, 0
    %p44 = por %p42, %p43
    %p45 = scmp.ne.s32.totalorder %s34, %s37
    %p46 = scmp.eq.s32.totalorder %s15, 3
    %p47 = por %p45, %p46
    %p48 = scmp.ne.s32.totalorder %s37, %s38
    %p49 = scmp.eq.s32.totalorder %s15, 0
    %p50 = por %p48, %p49
    %p51 = scmp.ne.s32.totalorder %s37, %s38
    %p52 = scmp.eq.s32.totalorder %s16, 3
    %p53 = por %p51, %p52
    %p55 = scmp.ne.s32.totalorder %s38, %s54
    %p56 = scmp.eq.s32.totalorder %s16, 0
    %p57 = por %p55, %p56
    %s58 = ssub.s32 %s17, %s29
    %p59 = scmp.eq.s32.totalorder %s58, 0
    %s61 = sadd.s32 %s60, 1
    %s62 = scalar_select %p59, %s60, %s61
    %p65 = pneg %p59
    %p66 = scmp.eq.s32.totalorder %s10, 3
    %p67 = por %p65, %p66
    %p68 = scmp.ne.s32.totalorder %s60, %s63
    %p69 = scmp.eq.s32.totalorder %s10, 0
    %p70 = por %p68, %p69
    %p71 = scmp.ne.s32.totalorder %s60, %s63
    %p72 = scmp.eq.s32.totalorder %s15, 3
    %p73 = por %p71, %p72
    %p74 = scmp.ne.s32.totalorder %s63, %s64
    %p75 = scmp.eq.s32.totalorder %s15, 0
    %p76 = por %p74, %p75
    %p77 = scmp.ne.s32.totalorder %s63, %s64
    %p78 = scmp.eq.s32.totalorder %s16, 3
    %p79 = por %p77, %p78
    %p81 = scmp.ne.s32.totalorder %s64, %s80
    %p82 = scmp.eq.s32.totalorder %s16, 0
    %p83 = por %p81, %p82
    %s84 = ssub.s32 %s17, %s29
    %s85 = ssub.s32 %s18, %s25
    %s86 = sor.u32 %s84, %s85
    %p87 = scmp.eq.s32.totalorder %s86, 0
    %s89 = sadd.s32 %s88, 1
    %s90 = scalar_select %p87, %s88, %s89
    %p93 = pneg %p87
    %p94 = scmp.eq.s32.totalorder %s10, 3
    %p95 = por %p93, %p94
    %p96 = scmp.ne.s32.totalorder %s88, %s91
    %p97 = scmp.eq.s32.totalorder %s10, 0
    %p98 = por %p96, %p97
    %p99 = scmp.ne.s32.totalorder %s88, %s91
    %p100 = scmp.eq.s32.totalorder %s15, 3
    %p101 = por %p99, %p100
    %p102 = scmp.ne.s32.totalorder %s91, %s92
    %p103 = scmp.eq.s32.totalorder %s15, 0
    %p104 = por %p102, %p103
    %p105 = scmp.ne.s32.totalorder %s91, %s92
    %p106 = scmp.eq.s32.totalorder %s16, 3
    %p107 = por %p105, %p106
    %p109 = scmp.ne.s32.totalorder %s92, %s108
    %p110 = scmp.eq.s32.totalorder %s16, 0
    %p111 = por %p109, %p110
    %s113 = sadd.s32 %s112, 1
    %p116 = scmp.eq.s32.totalorder %s10, 3
    %p117 = scmp.ne.s32.totalorder %s112, %s114
    %p118 = scmp.eq.s32.totalorder %s10, 0
    %p119 = por %p117, %p118
    %p120 = scmp.ne.s32.totalorder %s112, %s114
    %p121 = scmp.eq.s32.totalorder %s15, 3
    %p122 = por %p120, %p121
    %p123 = scmp.ne.s32.totalorder %s114, %s115
    %p124 = scmp.eq.s32.totalorder %s15, 0
    %p125 = por %p123, %p124
    %p126 = scmp.ne.s32.totalorder %s114, %s115
    %p127 = scmp.eq.s32.totalorder %s16, 3
    %p128 = por %p126, %p127
    %p130 = scmp.ne.s32.totalorder %s115, %s129
    %p131 = scmp.eq.s32.totalorder %s16, 0
    %p132 = por %p130, %p131
    %p133 = scmp.le.s32.totalorder 1, %s10
    %p134 = scmp.lt.s32.totalorder %s10, 5
    %p135 = pnand %p133, %p134
    %p136 = pneg %p135
    // Predicated region
    $region9: #{_lambda_.11} parent=5 // pred_check
      _
    $region10: #{_lambda_.11} parent=5 // pred_check_branch
      %138 = sbr.rel (%p135) target = $region12
    $region11: #{_lambda_.11} parent=5 // pred_region
      %s139 = ssub.s32 %s10, 1
    $region12: #{_lambda_.11} parent=5 // pred_fallthru
      _
    %p140 = scmp.lt.s32.totalorder %s10, 4
    // Predicated region
    $region13: #{_lambda_.11} parent=5 // pred_check
      %p141 = pneg %p140
    $region14: #{_lambda_.11} parent=5 // pred_check_branch
      %143 = sbr.rel (%p141) target = $region16
    $region15: #{_lambda_.11} parent=5 // pred_region
      // Predicated region
      $region17: #{_lambda_.11} parent=15 // pred_check
        %p144 = pneg %p44
      $region18: #{_lambda_.11} parent=15 // pred_check_branch
        %146 = sbr.rel (%p144) target = $region20
      $region19: #{_lambda_.11} parent=15 // pred_region
        %s147 = smul.u32 13, %s18
        %p148 = scmp.lt.s32.totalorder %s17, 3
        %s149 = scalar_select %p148, %s17, 3
        %p150 = scmp.lt.s32.totalorder %s147, 12
        %s151 = scalar_select %p150, %s147, 12
        %s152 = smul.addr %s149, 13
        %s153 = sadd.s32 %s151, %s152
        %s154 = smul.addr %s153, 4
        %s155 = scalar_lea.vmem %s0, %s154
        %s156 = smul.u32 13, %s18
      $region20: #{_lambda_.11} parent=15 // pred_fallthru
        _
      // Predicated region
      $region21: #{_lambda_.11} parent=15 // pred_check
        %p157 = pneg %p70
      $region22: #{_lambda_.11} parent=15 // pred_check_branch
        %159 = sbr.rel (%p157) target = $region24
      $region23: #{_lambda_.11} parent=15 // pred_region
        %p160 = scmp.lt.s32.totalorder %s17, 3
        %s161 = scalar_select %p160, %s17, 3
        %s162 = smul.addr %s161, 16
        %s163 = smul.addr %s162, 4
        %s164 = scalar_lea.vmem %s1, %s163
      $region24: #{_lambda_.11} parent=15 // pred_fallthru
        _
    $region16: #{_lambda_.11} parent=5 // pred_fallthru
      _
    %p165 = scmp.le.s32.totalorder 1, %s10
    %p166 = scmp.lt.s32.totalorder %s10, 5
    %p167 = pnand %p165, %p166
    %p168 = pneg %p167
    // Predicated region
    $region25: #{_lambda_.11} parent=5 // pred_check
      _
    $region26: #{_lambda_.11} parent=5 // pred_check_branch
      %170 = sbr.rel (%p167) target = $region28
    $region27: #{_lambda_.11} parent=5 // pred_region
      %s171 = ssub.s32 %s10, 1
      %s172 = smul.u32 13, %s20
      %p173 = scmp.lt.s32.totalorder %s19, 3
      %s174 = scalar_select %p173, %s19, 3
      %p175 = scmp.lt.s32.totalorder %s172, 12
      %s176 = scalar_select %p175, %s172, 12
      %s177 = smul.addr %s174, 13
      %s178 = sadd.s32 %s176, %s177
      %s179 = smul.addr %s178, 4
      %s180 = scalar_lea.vmem %s0, %s179
      %p181 = pneg %p50
      %p182 = pneg %p47
      %p183 = scmp.lt.s32.totalorder %s19, 3
      %s184 = scalar_select %p183, %s19, 3
      %s185 = smul.addr %s184, 16
      %s186 = smul.addr %s185, 4
      %s187 = scalar_lea.vmem %s1, %s186
      %p188 = pneg %p76
      %p189 = pneg %p73
      %p190 = pneg %p104
      %p191 = pneg %p101
      %s192 = smul.u32 13, %s20
      %p193 = scmp.lt.s32.totalorder %s19, 3
      %s194 = scalar_select %p193, %s19, 3
      %p195 = scmp.lt.s32.totalorder %s192, 12
      %s196 = scalar_select %p195, %s192, 12
      %s197 = smul.addr %s194, 13
      %s198 = sadd.s32 %s196, %s197
      %s199 = smul.addr %s198, 4
      %s200 = scalar_lea.vmem %s2, %s199
      %p201 = pneg %p125
      %p202 = pneg %p122
      %s203 = smul.u32 13, %s20
      %p204 = scmp.lt.s32.totalorder %s19, 3
      %s205 = scalar_select %p204, %s19, 3
      %p206 = scmp.lt.s32.totalorder %s203, 12
      %s207 = scalar_select %p206, %s203, 12
      %s208 = smul.addr %s205, 13
      %s209 = sadd.s32 %s207, %s208
      %s210 = smul.addr %s209, 4
      %s211 = scalar_lea.vmem %s0, %s210
      %s212 = smul.u32 13, %s20
      %p213 = scmp.lt.s32.totalorder %s19, 3
      %s214 = scalar_select %p213, %s19, 3
      %s215 = smul.addr %s214, 16
      %s216 = smul.addr %s215, 4
      %s217 = scalar_lea.vmem %s1, %s216
      %s218 = smul.u32 13, %s20
      %p219 = scmp.lt.s32.totalorder %s19, 3
      %s220 = scalar_select %p219, %s19, 3
      %p221 = scmp.lt.s32.totalorder %s218, 12
      %s222 = scalar_select %p221, %s218, 12
      %s223 = smul.addr %s220, 13
      %s224 = sadd.s32 %s222, %s223
      %s225 = smul.addr %s224, 4
      %s226 = scalar_lea.vmem %s2, %s225
      %s227 = smul.u32 13, %s20
      %p229 = scmp.eq.s32.totalorder %s19, 0
      %p230 = scmp.eq.s32.totalorder %s20, 0
      %p231 = pnand %p229, %p230
      %p232 = pneg %p231
      // Predicated region
      $region29: #{_lambda_.11} parent=27 // pred_check
        _
      $region30: #{_lambda_.11} parent=27 // pred_check_branch
        %234 = sbr.rel (%p231) target = $region32
      $region31: #{_lambda_.11} parent=27 // pred_region
        %vm235 = vcmask 130048
        %236 = vst.msk [vmem:[%s3] sm:$0xff] %vm235, 0.0
      $region32: #{_lambda_.11} parent=27 // pred_fallthru
        _
      %v237 = vld [vmem:[%s211] sm:$0xf]
      %v238 = vld [vmem:[%s211 + $0x4] sm:$0xf]
      %v239 = vld [vmem:[%s211 + $0x8] sm:$0xf]
      %v240 = vld [vmem:[%s211 + $0xc] sm:$0xf]
      %v241 = vld [vmem:[%s211 + $0x10] sm:$0xf]
      %v242 = vld [vmem:[%s211 + $0x14] sm:$0xf]
      %v243 = vld [vmem:[%s211 + $0x18] sm:$0xf]
      %v244 = vld [vmem:[%s211 + $0x1c] sm:$0xf]
      %v245 = vld [vmem:[%s211 + $0x20] sm:$0xf]
      %v246 = vld [vmem:[%s211 + $0x24] sm:$0xf]
      %v247 = vld [vmem:[%s211 + $0x28] sm:$0xf]
      %v248 = vld [vmem:[%s211 + $0x2c] sm:$0xf]
      %v249 = vld [vmem:[%s211 + $0x30] sm:$0xf]
      %v250 = vld [vmem:[%s217] sm:$0xf]
      %v251 = vld [vmem:[%s217 + $0x4] sm:$0xf]
      %v252 = vld [vmem:[%s217 + $0x8] sm:$0xf]
      %v253 = vld [vmem:[%s217 + $0xc] sm:$0xf]
      %v254 = vld [vmem:[%s217 + $0x10] sm:$0xf]
      %v255 = vld [vmem:[%s217 + $0x14] sm:$0xf]
      %v256 = vld [vmem:[%s217 + $0x18] sm:$0xf]
      %v257 = vld [vmem:[%s217 + $0x1c] sm:$0xf]
      %v258 = vld [vmem:[%s217 + $0x20] sm:$0xf]
      %v259 = vld [vmem:[%s217 + $0x24] sm:$0xf]
      %v260 = vld [vmem:[%s217 + $0x28] sm:$0xf]
      %v261 = vld [vmem:[%s217 + $0x2c] sm:$0xf]
      %v262 = vld [vmem:[%s217 + $0x30] sm:$0xf]
      %v263 = vld [vmem:[%s217 + $0x34] sm:$0xf]
      %v264 = vld [vmem:[%s217 + $0x38] sm:$0xf]
      %v265 = vld [vmem:[%s217 + $0x3c] sm:$0xf]
      %v279 = vunpack.c.l.b16 %v237
      %v280 = vunpack.c.l.b16 %v238
      %v281 = vunpack.c.l.b16 %v239
      %v282 = vunpack.c.l.b16 %v240
      %v283 = vunpack.c.l.b16 %v241
      %v284 = vunpack.c.l.b16 %v242
      %v285 = vunpack.c.l.b16 %v243
      %v286 = vunpack.c.l.b16 %v244
      %v287 = vunpack.c.l.b16 %v245
      %v288 = vunpack.c.l.b16 %v246
      %v289 = vunpack.c.l.b16 %v247
      %v290 = vunpack.c.l.b16 %v248
      %v291 = vunpack.c.l.b16 %v249
      %v292 = vpack.c.b16 %v280, %v279
      %v293 = vpack.c.b16 %v282, %v281
      %v294 = vpack.c.b16 %v284, %v283
      %v295 = vpack.c.b16 %v286, %v285
      %v296 = vpack.c.b16 %v288, %v287
      %v297 = vpack.c.b16 %v290, %v289
      %v298 = vpack.c.b16 %v291, %v291
      %v322 = vunpack.c.l.b16 %v250
      %v323 = vunpack.c.l.b16 %v251
      %v324 = vunpack.c.l.b16 %v252
      %v325 = vunpack.c.l.b16 %v253
      %v326 = vunpack.c.l.b16 %v254
      %v327 = vunpack.c.l.b16 %v255
      %v328 = vunpack.c.l.b16 %v256
      %v329 = vunpack.c.l.b16 %v257
      %v330 = vunpack.c.l.b16 %v258
      %v331 = vunpack.c.l.b16 %v259
      %v332 = vunpack.c.l.b16 %v260
      %v333 = vunpack.c.l.b16 %v261
      %v334 = vunpack.c.l.b16 %v262
      %v335 = vunpack.c.l.b16 %v263
      %v336 = vunpack.c.l.b16 %v264
      %v337 = vunpack.c.l.b16 %v265
      %v338 = vpack.c.b16 %v323, %v322
      %v339 = vpack.c.b16 %v325, %v324
      %v340 = vpack.c.b16 %v327, %v326
      %v341 = vpack.c.b16 %v329, %v328
      %v342 = vpack.c.b16 %v331, %v330
      %v343 = vpack.c.b16 %v333, %v332
      %v344 = vpack.c.b16 %v335, %v334
      %v345 = vpack.c.b16 %v337, %v336
      %354 = vmatprep.subr.bf16.mxu0 0
      %355 = vmatpush1.bf16.msra.mxu0 %v338
      %356 = vmatprep.subr.bf16.mxu0 0
      %357 = vmatpush1.bf16.msra.mxu0 %v339
      %358 = vmatprep.subr.bf16.mxu0 0
      %359 = vmatpush1.bf16.msra.mxu0 %v340
      %360 = vmatprep.subr.bf16.mxu0 0
      %361 = vmatpush1.bf16.msra.mxu0 %v341
      %362 = vmatprep.subr.bf16.mxu0 0
      %363 = vmatpush1.bf16.msra.mxu0 %v342
      %364 = vmatprep.subr.bf16.mxu0 0
      %365 = vmatpush1.bf16.msra.mxu0 %v343
      %366 = vmatprep.subr.bf16.mxu0 0
      %367 = vmatpush1.bf16.msra.mxu0 %v344
      %368 = vmatprep.subr.bf16.mxu0 0
      %369 = vmatpush1.bf16.msra.mxu0 %v345
      %370 = vmatprep.subr.bf16.mxu0 0
      %371 = vmatpush1.bf16.msra.mxu0 0
      %372 = vmatprep.subr.bf16.mxu0 0
      %373 = vmatpush1.bf16.msra.mxu0 0
      %374 = vmatprep.subr.bf16.mxu0 0
      %375 = vmatpush1.bf16.msra.mxu0 0
      %376 = vmatprep.subr.bf16.mxu0 0
      %377 = vmatpush1.bf16.msra.mxu0 0
      %378 = vmatprep.subr.bf16.mxu0 0
      %379 = vmatpush1.bf16.msra.mxu0 0
      %380 = vmatprep.subr.bf16.mxu0 0
      %381 = vmatpush1.bf16.msra.mxu0 0
      %382 = vmatprep.subr.bf16.mxu0 0
      %383 = vmatpush1.bf16.msra.mxu0 0
      %384 = vmatprep.subr.bf16.mxu0 0
      %385 = vmatpush1.bf16.msra.mxu0 0
      %386 = vmatprep.mubr.bf16.mxu0 0
      %387 = vmatmul.mubr.bf16.gmra.mrb[0].mxu0 %v292
      %v388 = vpop.f32.mrb[0].mxu0
      %v389 = vadd.f32 0.0, %v388
      %v390 = vpop.f32.mrb[0].mxu0
      %v391 = vpop.f32.mrb[0].mxu0
      %v392 = vadd.f32 0.0, %v391
      %v393 = vpop.f32.mrb[0].mxu0
      %394 = vmatprep.mubr.bf16.mxu0 0
      %395 = vmatmul.mubr.bf16.gmra.mrb[0].mxu0 %v293
      %v396 = vpop.f32.mrb[0].mxu0
      %v397 = vadd.f32 0.0, %v396
      %v398 = vpop.f32.mrb[0].mxu0
      %v399 = vpop.f32.mrb[0].mxu0
      %v400 = vadd.f32 0.0, %v399
      %v401 = vpop.f32.mrb[0].mxu0
      %402 = vmatprep.mubr.bf16.mxu0 0
      %403 = vmatmul.mubr.bf16.gmra.mrb[0].mxu0 %v294
      %v404 = vpop.f32.mrb[0].mxu0
      %v405 = vadd.f32 0.0, %v404
      %v406 = vpop.f32.mrb[0].mxu0
      %v407 = vpop.f32.mrb[0].mxu0
      %v408 = vadd.f32 0.0, %v407
      %v409 = vpop.f32.mrb[0].mxu0
      %410 = vmatprep.mubr.bf16.mxu0 0
      %411 = vmatmul.mubr.bf16.gmra.mrb[0].mxu0 %v295
      %v412 = vpop.f32.mrb[0].mxu0
      %v413 = vadd.f32 0.0, %v412
      %v414 = vpop.f32.mrb[0].mxu0
      %v415 = vpop.f32.mrb[0].mxu0
      %v416 = vadd.f32 0.0, %v415
      %v417 = vpop.f32.mrb[0].mxu0
      %418 = vmatprep.mubr.bf16.mxu0 0
      %419 = vmatmul.mubr.bf16.gmra.mrb[0].mxu0 %v296
      %v420 = vpop.f32.mrb[0].mxu0
      %v421 = vadd.f32 0.0, %v420
      %v422 = vpop.f32.mrb[0].mxu0
      %v423 = vpop.f32.mrb[0].mxu0
      %v424 = vadd.f32 0.0, %v423
      %v425 = vpop.f32.mrb[0].mxu0
      %426 = vmatprep.mubr.bf16.mxu0 0
      %427 = vmatmul.mubr.bf16.gmra.mrb[0].mxu0 %v297
      %v428 = vpop.f32.mrb[0].mxu0
      %v429 = vadd.f32 0.0, %v428
      %v430 = vpop.f32.mrb[0].mxu0
      %v431 = vpop.f32.mrb[0].mxu0
      %v432 = vadd.f32 0.0, %v431
      %v433 = vpop.f32.mrb[0].mxu0
      %434 = vmatprep.mubr.bf16.mxu0 0
      %435 = vmatmul.mubr.bf16.gmra.mrb[0].mxu0 %v298
      %v436 = vpop.f32.mrb[0].mxu0
      %v437 = vadd.f32 0.0, %v436
      %v438 = vpop.f32.mrb[0].mxu0
      %v439 = vpop.f32.mrb[0].mxu0
      %v440 = vpop.f32.mrb[0].mxu0
      %441 = vdwg.mxu0
      %v442 = vmax.f32 %v389, 0.0
      %v443 = vmax.f32 %v392, 0.0
      %v444 = vmax.f32 %v397, 0.0
      %v445 = vmax.f32 %v400, 0.0
      %v446 = vmax.f32 %v405, 0.0
      %v447 = vmax.f32 %v408, 0.0
      %v448 = vmax.f32 %v413, 0.0
      %v449 = vmax.f32 %v416, 0.0
      %v450 = vmax.f32 %v421, 0.0
      %v451 = vmax.f32 %v424, 0.0
      %v452 = vmax.f32 %v429, 0.0
      %v453 = vmax.f32 %v432, 0.0
      %v454 = vmax.f32 %v437, 0.0
      %v455 = vpack.c.bf16 %v443, %v442
      %v456 = vpack.c.bf16 %v445, %v444
      %v457 = vpack.c.bf16 %v447, %v446
      %v458 = vpack.c.bf16 %v449, %v448
      %v459 = vpack.c.bf16 %v451, %v450
      %v460 = vpack.c.bf16 %v453, %v452
      %v461 = vpack.c.bf16 %v454, %v454
      %v469 = vunpack.c.l.b16 %v455
      %v470 = vunpack.c.h.b16 %v455
      %v471 = vunpack.c.l.b16 %v456
      %v472 = vunpack.c.h.b16 %v456
      %v473 = vunpack.c.l.b16 %v457
      %v474 = vunpack.c.h.b16 %v457
      %v475 = vunpack.c.l.b16 %v458
      %v476 = vunpack.c.h.b16 %v458
      %v477 = vunpack.c.l.b16 %v459
      %v478 = vunpack.c.h.b16 %v459
      %v479 = vunpack.c.l.b16 %v460
      %v480 = vunpack.c.h.b16 %v460
      %v481 = vunpack.c.l.b16 %v461
      %v482 = vpack.c.b16 %v469, %v469
      %v483 = vpack.c.b16 %v470, %v470
      %v484 = vpack.c.b16 %v471, %v471
      %v485 = vpack.c.b16 %v472, %v472
      %v486 = vpack.c.b16 %v473, %v473
      %v487 = vpack.c.b16 %v474, %v474
      %v488 = vpack.c.b16 %v475, %v475
      %v489 = vpack.c.b16 %v476, %v476
      %v490 = vpack.c.b16 %v477, %v477
      %v491 = vpack.c.b16 %v478, %v478
      %v492 = vpack.c.b16 %v479, %v479
      %v493 = vpack.c.b16 %v480, %v480
      %v494 = vpack.c.b16 %v481, %v481
      %vm508 = vcmask 125952
      %509 = vst.msk [vmem:[%s226] sm:$0xf] %vm508, %v482
      %510 = vst.msk [vmem:[%s226 + $0x4] sm:$0xf] %vm508, %v483
      %511 = vst.msk [vmem:[%s226 + $0x8] sm:$0xf] %vm508, %v484
      %512 = vst.msk [vmem:[%s226 + $0xc] sm:$0xf] %vm508, %v485
      %513 = vst.msk [vmem:[%s226 + $0x10] sm:$0xf] %vm508, %v486
      %514 = vst.msk [vmem:[%s226 + $0x14] sm:$0xf] %vm508, %v487
      %515 = vst.msk [vmem:[%s226 + $0x18] sm:$0xf] %vm508, %v488
      %516 = vst.msk [vmem:[%s226 + $0x1c] sm:$0xf] %vm508, %v489
      %517 = vst.msk [vmem:[%s226 + $0x20] sm:$0xf] %vm508, %v490
      %518 = vst.msk [vmem:[%s226 + $0x24] sm:$0xf] %vm508, %v491
      %519 = vst.msk [vmem:[%s226 + $0x28] sm:$0xf] %vm508, %v492
      %520 = vst.msk [vmem:[%s226 + $0x2c] sm:$0xf] %vm508, %v493
      %521 = vst.msk [vmem:[%s226 + $0x30] sm:$0xf] %vm508, %v494
      %vm522 = vcmask 130048
      %v523 = vsel %vm522, %v442, 0.0
      %v524 = vsel %vm522, %v443, 0.0
      %v525 = vadd.f32 %v523, %v524
      %v526 = vsel %vm522, %v444, 0.0
      %v527 = vadd.f32 %v525, %v526
      %v528 = vsel %vm522, %v445, 0.0
      %v529 = vadd.f32 %v527, %v528
      %v530 = vsel %vm522, %v446, 0.0
      %v531 = vadd.f32 %v529, %v530
      %v532 = vsel %vm522, %v447, 0.0
      %v533 = vadd.f32 %v531, %v532
      %v534 = vsel %vm522, %v448, 0.0
      %v535 = vadd.f32 %v533, %v534
      %v536 = vsel %vm522, %v449, 0.0
      %v537 = vadd.f32 %v535, %v536
      %v538 = vsel %vm522, %v450, 0.0
      %v539 = vadd.f32 %v537, %v538
      %v540 = vsel %vm522, %v451, 0.0
      %v541 = vadd.f32 %v539, %v540
      %v542 = vsel %vm522, %v452, 0.0
      %v543 = vadd.f32 %v541, %v542
      %v544 = vsel %vm522, %v453, 0.0
      %v545 = vadd.f32 %v543, %v544
      %v546 = vsel %vm522, %v454, 0.0
      %v547 = vadd.f32 %v545, %v546
      %v548 = vrot.slane %v547, 4
      %v549 = vadd.f32 %v547, %v548
      %v550 = vrot.slane %v549, 2
      %v551 = vadd.f32 %v549, %v550
      %v552 = vrot.slane %v551, 1
      %v553 = vadd.f32 %v551, %v552
      %v554 = vmul.f32 %v442, %v442
      %v555 = vmul.f32 %v443, %v443
      %v556 = vmul.f32 %v444, %v444
      %v557 = vmul.f32 %v445, %v445
      %v558 = vmul.f32 %v446, %v446
      %v559 = vmul.f32 %v447, %v447
      %v560 = vmul.f32 %v448, %v448
      %v561 = vmul.f32 %v449, %v449
      %v562 = vmul.f32 %v450, %v450
      %v563 = vmul.f32 %v451, %v451
      %v564 = vmul.f32 %v452, %v452
      %v565 = vmul.f32 %v453, %v453
      %v566 = vmul.f32 %v454, %v454
      %v567 = vsel %vm522, %v554, 0.0
      %v568 = vsel %vm522, %v555, 0.0
      %v569 = vadd.f32 %v567, %v568
      %v570 = vsel %vm522, %v556, 0.0
      %v571 = vadd.f32 %v569, %v570
      %v572 = vsel %vm522, %v557, 0.0
      %v573 = vadd.f32 %v571, %v572
      %v574 = vsel %vm522, %v558, 0.0
      %v575 = vadd.f32 %v573, %v574
      %v576 = vsel %vm522, %v559, 0.0
      %v577 = vadd.f32 %v575, %v576
      %v578 = vsel %vm522, %v560, 0.0
      %v579 = vadd.f32 %v577, %v578
      %v580 = vsel %vm522, %v561, 0.0
      %v581 = vadd.f32 %v579, %v580
      %v582 = vsel %vm522, %v562, 0.0
      %v583 = vadd.f32 %v581, %v582
      %v584 = vsel %vm522, %v563, 0.0
      %v585 = vadd.f32 %v583, %v584
      %v586 = vsel %vm522, %v564, 0.0
      %v587 = vadd.f32 %v585, %v586
      %v588 = vsel %vm522, %v565, 0.0
      %v589 = vadd.f32 %v587, %v588
      %v590 = vsel %vm522, %v566, 0.0
      %v591 = vadd.f32 %v589, %v590
      %v592 = vrot.slane %v591, 4
      %v593 = vadd.f32 %v591, %v592
      %v594 = vrot.slane %v593, 2
      %v595 = vadd.f32 %v593, %v594
      %v596 = vrot.slane %v595, 1
      %v597 = vadd.f32 %v595, %v596
      %v598 = vlaneseq
      %v599 = vshrl.u32 %v598, 7
      %vm600 = vcmp.eq.s32.totalorder %v599, 0
      %v601 = vsel %vm600, %v553, 0.0
      %vm602 = vcmp.eq.s32.totalorder %v599, 1
      %v603 = vsel %vm602, %v597, 0.0
      %v604 = vadd.f32 %v601, %v603
      %v605 = vld [vmem:[%s3] sm:$0xff]
      %v606 = vadd.f32 %v605, %v604
      %607 = vst.msk [vmem:[%s3] sm:$0xff] %vm522, %v606
      %s608 = smul.u32 13, %s20
      %p609 = scmp.lt.s32.totalorder %s19, 3
      %s610 = scalar_select %p609, %s19, 3
      %p611 = scmp.lt.s32.totalorder %s608, 12
      %s612 = scalar_select %p611, %s608, 12
      %s613 = smul.addr %s610, 13
      %s614 = sadd.s32 %s612, %s613
      %s615 = smul.addr %s614, 4
      %s616 = scalar_lea.vmem %s2, %s615
      // Predicated region
      $region33: #{_lambda_.11} parent=27 // pred_check
        %p617 = pneg %p101
      $region34: #{_lambda_.11} parent=27 // pred_check_branch
        %619 = sbr.rel (%p617) target = $region36
      $region35: #{_lambda_.11} parent=27 // pred_region
        %s620 = smul.u32 13, %s20
      $region36: #{_lambda_.11} parent=27 // pred_fallthru
        _
      // Predicated region
      $region37: #{_lambda_.11} parent=27 // pred_check
        %p621 = pneg %p122
      $region38: #{_lambda_.11} parent=27 // pred_check_branch
        %623 = sbr.rel (%p621) target = $region40
      $region39: #{_lambda_.11} parent=27 // pred_region
        _
      $region40: #{_lambda_.11} parent=27 // pred_fallthru
        _
      // Predicated region
      $region41: #{_lambda_.11} parent=27 // pred_check
        %p624 = pneg %p122
      $region42: #{_lambda_.11} parent=27 // pred_check_branch
        %626 = sbr.rel (%p624) target = $region44
      $region43: #{_lambda_.11} parent=27 // pred_region
        _
      $region44: #{_lambda_.11} parent=27 // pred_fallthru
        _
    $region28: #{_lambda_.11} parent=5 // pred_fallthru
      _
    %p627 = scmp.le.s32.totalorder 2, %s10
    // Predicated region
    $region45: #{_lambda_.11} parent=5 // pred_check
      %p628 = pneg %p627
    $region46: #{_lambda_.11} parent=5 // pred_check_branch
      %630 = sbr.rel (%p628) target = $region48
    $region47: #{_lambda_.11} parent=5 // pred_region
      %s631 = ssub.s32 %s10, 2
      // Predicated region
      $region49: #{_lambda_.11} parent=47 // pred_check
        %p632 = pneg %p107
      $region50: #{_lambda_.11} parent=47 // pred_check_branch
        %634 = sbr.rel (%p632) target = $region52
      $region51: #{_lambda_.11} parent=47 // pred_region
        %s635 = smul.u32 13, %s22
        %p636 = scmp.lt.s32.totalorder %s21, 3
        %s637 = scalar_select %p636, %s21, 3
        %p638 = scmp.lt.s32.totalorder %s635, 12
        %s639 = scalar_select %p638, %s635, 12
        %s640 = smul.addr %s637, 13
        %s641 = sadd.s32 %s639, %s640
        %s642 = smul.addr %s641, 4
        %s643 = scalar_lea.vmem %s2, %s642
      $region52: #{_lambda_.11} parent=47 // pred_fallthru
        _
    $region48: #{_lambda_.11} parent=5 // pred_fallthru
      _
  $region6: #{_lambda_.11} parent=0 // loop_footer
    %s14 = sadd.s32 1, %s10
  $region7: #{_lambda_.11} parent=0 // loop_footer_branch
    %9 = sbr.rel target = $region3
  $region8: #{_lambda_.11} parent=0 // loop_exit
    _

// kernel: _lambda_.10
$region0: #{_lambda_.10}
  #allocation0 [shape = 'u32[]', space=smem, size = 0x4, offset = 0x4, fixed_abs, tag = 'smem constant byte address 0x4 - core index']
  #allocation1 [shape = 'u32[144,128]{1,0:T(1,128)}', space=vmem, size = 0x12000, scoped, tag = 'internal scratch']
  %s0 = inlined_call_operand.vmem [shape: bf16[4,32,32], index: 0, kind: input, shape index: {}]
  %s1 = inlined_call_operand.vmem [shape: f32[8,32], index: 1, kind: input, shape index: {}]
  %s2 = inlined_call_operand.vmem [shape: bf16[4,32,32], index: 2, kind: output, shape index: {}]
  %s3 = sld [smem:[#allocation0]]
  $region41: #{_lambda_.10} parent=0
    _
  %s5 = ssub.s32 1, %s3
  %s6 = scalar_select 0, %s5, %s3
  loop: start=0, step=1, limit=6
  $region2: #{_lambda_.10} parent=0 // loop_pre_header
    _
  $region3: #{_lambda_.10} parent=0 // loop_header
    %s8 = sphi 0, %s12
    %p9 = scmp.ge.s32.totalorder %s8, 6
    %s15 = sphi 0, %s27
    %s16 = sphi 0, %s23
    %s17 = sphi 0, %s15
    %s18 = sphi 0, %s16
    %s19 = sphi 0, %s17
    %s20 = sphi 0, %s18
    %s32 = sphi 0, %s34
    %s35 = sphi 0, %s32
    %s36 = sphi 0, %s35
    %s52 = sphi 0, %s36
    %s56 = sphi 0, %s56
    %s58 = sphi 0, %s56
    %s59 = sphi 0, %s58
    %s73 = sphi 0, %s59
    %s81 = sphi 0, %s83
    %s84 = sphi 0, %s81
    %s85 = sphi 0, %s84
    %s101 = sphi 0, %s85
  $region4: #{_lambda_.10} parent=0 // loop_header_branch
    %11 = sbr.rel (%p9) target = $region8
  $region5: #{_lambda_.10} parent=0 // loop_body
    %s13 = ssub.s32 %s8, 1
    %s14 = ssub.s32 %s8, 2
    %s21 = sadd.s32 1, %s16
    %p22 = scmp.ge.s32.totalorder %s21, 1
    %s23 = scalar_select %p22, 0, %s21
    %s24 = sadd.s32 1, %s15
    %s25 = scalar_select %p22, %s24, %s15
    %p26 = scmp.ge.s32.totalorder %s25, 4
    %s27 = scalar_select %p26, 0, %s25
    %s28 = ssub.s32 %s15, %s27
    %s29 = ssub.s32 %s16, %s23
    %s30 = sor.u32 %s28, %s29
    %p31 = scmp.eq.s32.totalorder %s30, 0
    %s33 = sadd.s32 %s32, 1
    %s34 = scalar_select %p31, %s32, %s33
    %p37 = pneg %p31
    %p38 = scmp.eq.s32.totalorder %s8, 3
    %p39 = por %p37, %p38
    %p40 = scmp.ne.s32.totalorder %s32, %s35
    %p41 = scmp.eq.s32.totalorder %s8, 0
    %p42 = por %p40, %p41
    %p43 = scmp.ne.s32.totalorder %s32, %s35
    %p44 = scmp.eq.s32.totalorder %s13, 3
    %p45 = por %p43, %p44
    %p46 = scmp.ne.s32.totalorder %s35, %s36
    %p47 = scmp.eq.s32.totalorder %s13, 0
    %p48 = por %p46, %p47
    %p49 = scmp.ne.s32.totalorder %s35, %s36
    %p50 = scmp.eq.s32.totalorder %s14, 3
    %p51 = por %p49, %p50
    %p53 = scmp.ne.s32.totalorder %s36, %s52
    %p54 = scmp.eq.s32.totalorder %s14, 0
    %p55 = por %p53, %p54
    %s57 = sadd.s32 %s56, 1
    %p60 = scmp.eq.s32.totalorder %s8, 3
    %p61 = scmp.ne.s32.totalorder %s56, %s58
    %p62 = scmp.eq.s32.totalorder %s8, 0
    %p63 = por %p61, %p62
    %p64 = scmp.ne.s32.totalorder %s56, %s58
    %p65 = scmp.eq.s32.totalorder %s13, 3
    %p66 = por %p64, %p65
    %p67 = scmp.ne.s32.totalorder %s58, %s59
    %p68 = scmp.eq.s32.totalorder %s13, 0
    %p69 = por %p67, %p68
    %p70 = scmp.ne.s32.totalorder %s58, %s59
    %p71 = scmp.eq.s32.totalorder %s14, 3
    %p72 = por %p70, %p71
    %p74 = scmp.ne.s32.totalorder %s59, %s73
    %p75 = scmp.eq.s32.totalorder %s14, 0
    %p76 = por %p74, %p75
    %s77 = ssub.s32 %s15, %s27
    %s78 = ssub.s32 %s16, %s23
    %s79 = sor.u32 %s77, %s78
    %p80 = scmp.eq.s32.totalorder %s79, 0
    %s82 = sadd.s32 %s81, 1
    %s83 = scalar_select %p80, %s81, %s82
    %p86 = pneg %p80
    %p87 = scmp.eq.s32.totalorder %s8, 3
    %p88 = por %p86, %p87
    %p89 = scmp.ne.s32.totalorder %s81, %s84
    %p90 = scmp.eq.s32.totalorder %s8, 0
    %p91 = por %p89, %p90
    %p92 = scmp.ne.s32.totalorder %s81, %s84
    %p93 = scmp.eq.s32.totalorder %s13, 3
    %p94 = por %p92, %p93
    %p95 = scmp.ne.s32.totalorder %s84, %s85
    %p96 = scmp.eq.s32.totalorder %s13, 0
    %p97 = por %p95, %p96
    %p98 = scmp.ne.s32.totalorder %s84, %s85
    %p99 = scmp.eq.s32.totalorder %s14, 3
    %p100 = por %p98, %p99
    %p102 = scmp.ne.s32.totalorder %s85, %s101
    %p103 = scmp.eq.s32.totalorder %s14, 0
    %p104 = por %p102, %p103
    %p105 = scmp.le.s32.totalorder 1, %s8
    %p106 = scmp.lt.s32.totalorder %s8, 5
    %p107 = pnand %p105, %p106
    %p108 = pneg %p107
    // Predicated region
    $region9: #{_lambda_.10} parent=5 // pred_check
      _
    $region10: #{_lambda_.10} parent=5 // pred_check_branch
      %110 = sbr.rel (%p107) target = $region12
    $region11: #{_lambda_.10} parent=5 // pred_region
      %s111 = ssub.s32 %s8, 1
      // Predicated region
      $region13: #{_lambda_.10} parent=11 // pred_check
        %p112 = pneg %p69
      $region14: #{_lambda_.10} parent=11 // pred_check_branch
        %114 = sbr.rel (%p112) target = $region16
      $region15: #{_lambda_.10} parent=11 // pred_region
        _
      $region16: #{_lambda_.10} parent=11 // pred_fallthru
        _
    $region12: #{_lambda_.10} parent=5 // pred_fallthru
      _
    %p115 = scmp.lt.s32.totalorder %s8, 4
    // Predicated region
    $region17: #{_lambda_.10} parent=5 // pred_check
      %p116 = pneg %p115
    $region18: #{_lambda_.10} parent=5 // pred_check_branch
      %118 = sbr.rel (%p116) target = $region20
    $region19: #{_lambda_.10} parent=5 // pred_region
      // Predicated region
      $region21: #{_lambda_.10} parent=19 // pred_check
        %p119 = pneg %p42
      $region22: #{_lambda_.10} parent=19 // pred_check_branch
        %121 = sbr.rel (%p119) target = $region24
      $region23: #{_lambda_.10} parent=19 // pred_region
        %s122 = smul.u32 4, %s16
        %p123 = scmp.lt.s32.totalorder %s15, 3
        %s124 = scalar_select %p123, %s15, 3
        %p125 = scmp.lt.s32.totalorder %s122, 3
        %s126 = scalar_select %p125, %s122, 3
        %s127 = smul.addr %s124, 4
        %s128 = sadd.s32 %s126, %s127
        %s129 = smul.addr %s128, 4
        %s130 = scalar_lea.vmem %s0, %s129
        %s131 = smul.u32 4, %s16
      $region24: #{_lambda_.10} parent=19 // pred_fallthru
        _
    $region20: #{_lambda_.10} parent=5 // pred_fallthru
      _
    %p132 = scmp.le.s32.totalorder 1, %s8
    %p133 = scmp.lt.s32.totalorder %s8, 5
    %p134 = pnand %p132, %p133
    %p135 = pneg %p134
    // Predicated region
    $region25: #{_lambda_.10} parent=5 // pred_check
      _
    $region26: #{_lambda_.10} parent=5 // pred_check_branch
      %137 = sbr.rel (%p134) target = $region28
    $region27: #{_lambda_.10} parent=5 // pred_region
      %s138 = ssub.s32 %s8, 1
      %s139 = smul.u32 4, %s18
      %p140 = scmp.lt.s32.totalorder %s17, 3
      %s141 = scalar_select %p140, %s17, 3
      %p142 = scmp.lt.s32.totalorder %s139, 3
      %s143 = scalar_select %p142, %s139, 3
      %s144 = smul.addr %s141, 4
      %s145 = sadd.s32 %s143, %s144
      %s146 = smul.addr %s145, 4
      %s147 = scalar_lea.vmem %s0, %s146
      %p148 = pneg %p48
      %p149 = pneg %p45
      %p150 = pneg %p69
      %p151 = pneg %p66
      %p152 = pneg %p97
      %p153 = pneg %p94
      %s154 = smul.u32 4, %s18
      %p155 = scmp.lt.s32.totalorder %s17, 3
      %s156 = scalar_select %p155, %s17, 3
      %p157 = scmp.lt.s32.totalorder %s154, 3
      %s158 = scalar_select %p157, %s154, 3
      %s159 = smul.addr %s156, 4
      %s160 = sadd.s32 %s158, %s159
      %s161 = smul.addr %s160, 4
      %s162 = scalar_lea.vmem %s2, %s161
      %s163 = smul.u32 4, %s18
      %p164 = scmp.lt.s32.totalorder %s17, 3
      %s165 = scalar_select %p164, %s17, 3
      %p166 = scmp.lt.s32.totalorder %s163, 3
      %s167 = scalar_select %p166, %s163, 3
      %s168 = smul.addr %s165, 4
      %s169 = sadd.s32 %s167, %s168
      %s170 = smul.addr %s169, 4
      %s171 = scalar_lea.vmem %s0, %s170
      %s172 = smul.u32 4, %s18
      %s173 = smul.u32 4, %s18
      %p174 = scmp.lt.s32.totalorder %s17, 3
      %s175 = scalar_select %p174, %s17, 3
      %p176 = scmp.lt.s32.totalorder %s173, 3
      %s177 = scalar_select %p176, %s173, 3
      %s178 = smul.addr %s175, 4
      %s179 = sadd.s32 %s177, %s178
      %s180 = smul.addr %s179, 4
      %s181 = scalar_lea.vmem %s2, %s180
      %s182 = smul.u32 4, %s18
      %v183 = vld [vmem:[%s171] sm:$0xf]
      %v184 = vld [vmem:[%s171 + $0x4] sm:$0xf]
      %v185 = vld [vmem:[%s171 + $0x8] sm:$0xf]
      %v186 = vld [vmem:[%s171 + $0xc] sm:$0xf]
      %v187 = vunpack.c.l.bf16 %v183
      %v188 = vunpack.c.l.bf16 %v184
      %v189 = vunpack.c.l.bf16 %v185
      %v190 = vunpack.c.l.bf16 %v186
      %v191 = vld [vmem:[%s1] sm:$0x1]
      %v192 = vld [vmem:[%s1 + $0x1] sm:$0x1]
      %v193 = vlaneseq
      %v194 = vshrl.u32 %v193, 7
      %v195 = vsub.s32 0, %v194
      %v196 = vrot.slane %v191, %v195
      %v197 = vsub.f32 %v187, %v196
      %v198 = vsub.f32 %v188, %v196
      %v199 = vsub.f32 %v189, %v196
      %v200 = vsub.f32 %v190, %v196
      %v201 = vlaneseq
      %v202 = vshrl.u32 %v201, 7
      %v203 = vsub.s32 0, %v202
      %v204 = vrot.slane %v192, %v203
      %v205 = vmul.f32 %v197, %v204
      %v206 = vmul.f32 %v198, %v204
      %v207 = vmul.f32 %v199, %v204
      %v208 = vmul.f32 %v200, %v204
      %v209 = vpack.c.bf16 %v206, %v205
      %v210 = vpack.c.bf16 %v208, %v207
      %v213 = vunpack.c.l.b16 %v209
      %v214 = vunpack.c.h.b16 %v209
      %v215 = vunpack.c.l.b16 %v210
      %v216 = vunpack.c.h.b16 %v210
      %v217 = vpack.c.b16 %v213, %v213
      %v218 = vpack.c.b16 %v214, %v214
      %v219 = vpack.c.b16 %v215, %v215
      %v220 = vpack.c.b16 %v216, %v216
      %vm225 = vcmask 257024
      %226 = vst.msk [vmem:[%s181] sm:$0xf] %vm225, %v217
      %227 = vst.msk [vmem:[%s181 + $0x4] sm:$0xf] %vm225, %v218
      %228 = vst.msk [vmem:[%s181 + $0x8] sm:$0xf] %vm225, %v219
      %229 = vst.msk [vmem:[%s181 + $0xc] sm:$0xf] %vm225, %v220
      %s230 = smul.u32 4, %s18
      %p231 = scmp.lt.s32.totalorder %s17, 3
      %s232 = scalar_select %p231, %s17, 3
      %p233 = scmp.lt.s32.totalorder %s230, 3
      %s234 = scalar_select %p233, %s230, 3
      %s235 = smul.addr %s232, 4
      %s236 = sadd.s32 %s234, %s235
      %s237 = smul.addr %s236, 4
      %s238 = scalar_lea.vmem %s2, %s237
      // Predicated region
      $region29: #{_lambda_.10} parent=27 // pred_check
        %p239 = pneg %p94
      $region30: #{_lambda_.10} parent=27 // pred_check_branch
        %241 = sbr.rel (%p239) target = $region32
      $region31: #{_lambda_.10} parent=27 // pred_region
        %s242 = smul.u32 4, %s18
      $region32: #{_lambda_.10} parent=27 // pred_fallthru
        _
    $region28: #{_lambda_.10} parent=5 // pred_fallthru
      _
    %p243 = scmp.le.s32.totalorder 2, %s8
    // Predicated region
    $region33: #{_lambda_.10} parent=5 // pred_check
      %p244 = pneg %p243
    $region34: #{_lambda_.10} parent=5 // pred_check_branch
      %246 = sbr.rel (%p244) target = $region36
    $region35: #{_lambda_.10} parent=5 // pred_region
      %s247 = ssub.s32 %s8, 2
      // Predicated region
      $region37: #{_lambda_.10} parent=35 // pred_check
        %p248 = pneg %p100
      $region38: #{_lambda_.10} parent=35 // pred_check_branch
        %250 = sbr.rel (%p248) target = $region40
      $region39: #{_lambda_.10} parent=35 // pred_region
        %s251 = smul.u32 4, %s20
        %p252 = scmp.lt.s32.totalorder %s19, 3
        %s253 = scalar_select %p252, %s19, 3
        %p254 = scmp.lt.s32.totalorder %s251, 3
        %s255 = scalar_select %p254, %s251, 3
        %s256 = smul.addr %s253, 4
        %s257 = sadd.s32 %s255, %s256
        %s258 = smul.addr %s257, 4
        %s259 = scalar_lea.vmem %s2, %s258
      $region40: #{_lambda_.10} parent=35 // pred_fallthru
        _
    $region36: #{_lambda_.10} parent=5 // pred_fallthru
      _
  $region6: #{_lambda_.10} parent=0 // loop_footer
    %s12 = sadd.s32 1, %s8
  $region7: #{_lambda_.10} parent=0 // loop_footer_branch
    %7 = sbr.rel target = $region3
  $region8: #{_lambda_.10} parent=0 // loop_exit
    _

// kernel: _lambda_.12
$region0: #{_lambda_.12}
  #allocation0 [shape = 'u32[]', space=smem, size = 0x4, offset = 0x4, fixed_abs, tag = 'smem constant byte address 0x4 - core index']
  #allocation1 [shape = 'u32[144,128]{1,0:T(1,128)}', space=vmem, size = 0x12000, scoped, tag = 'internal scratch']
  %s0 = inlined_call_operand.vmem [shape: bf16[4,104,16], index: 0, kind: input, shape index: {}]
  %s1 = inlined_call_operand.vmem [shape: f32[8,16], index: 1, kind: input, shape index: {}]
  %s2 = inlined_call_operand.vmem [shape: bf16[4,104,16], index: 2, kind: output, shape index: {}]
  %s3 = sld [smem:[#allocation0]]
  $region41: #{_lambda_.12} parent=0
    _
  %s5 = ssub.s32 1, %s3
  %s6 = scalar_select 0, %s5, %s3
  loop: start=0, step=1, limit=6
  $region2: #{_lambda_.12} parent=0 // loop_pre_header
    _
  $region3: #{_lambda_.12} parent=0 // loop_header
    %s8 = sphi 0, %s12
    %p9 = scmp.ge.s32.totalorder %s8, 6
    %s15 = sphi 0, %s27
    %s16 = sphi 0, %s23
    %s17 = sphi 0, %s15
    %s18 = sphi 0, %s16
    %s19 = sphi 0, %s17
    %s20 = sphi 0, %s18
    %s32 = sphi 0, %s34
    %s35 = sphi 0, %s32
    %s36 = sphi 0, %s35
    %s52 = sphi 0, %s36
    %s56 = sphi 0, %s56
    %s58 = sphi 0, %s56
    %s59 = sphi 0, %s58
    %s73 = sphi 0, %s59
    %s81 = sphi 0, %s83
    %s84 = sphi 0, %s81
    %s85 = sphi 0, %s84
    %s101 = sphi 0, %s85
  $region4: #{_lambda_.12} parent=0 // loop_header_branch
    %11 = sbr.rel (%p9) target = $region8
  $region5: #{_lambda_.12} parent=0 // loop_body
    %s13 = ssub.s32 %s8, 1
    %s14 = ssub.s32 %s8, 2
    %s21 = sadd.s32 1, %s16
    %p22 = scmp.ge.s32.totalorder %s21, 1
    %s23 = scalar_select %p22, 0, %s21
    %s24 = sadd.s32 1, %s15
    %s25 = scalar_select %p22, %s24, %s15
    %p26 = scmp.ge.s32.totalorder %s25, 4
    %s27 = scalar_select %p26, 0, %s25
    %s28 = ssub.s32 %s15, %s27
    %s29 = ssub.s32 %s16, %s23
    %s30 = sor.u32 %s28, %s29
    %p31 = scmp.eq.s32.totalorder %s30, 0
    %s33 = sadd.s32 %s32, 1
    %s34 = scalar_select %p31, %s32, %s33
    %p37 = pneg %p31
    %p38 = scmp.eq.s32.totalorder %s8, 3
    %p39 = por %p37, %p38
    %p40 = scmp.ne.s32.totalorder %s32, %s35
    %p41 = scmp.eq.s32.totalorder %s8, 0
    %p42 = por %p40, %p41
    %p43 = scmp.ne.s32.totalorder %s32, %s35
    %p44 = scmp.eq.s32.totalorder %s13, 3
    %p45 = por %p43, %p44
    %p46 = scmp.ne.s32.totalorder %s35, %s36
    %p47 = scmp.eq.s32.totalorder %s13, 0
    %p48 = por %p46, %p47
    %p49 = scmp.ne.s32.totalorder %s35, %s36
    %p50 = scmp.eq.s32.totalorder %s14, 3
    %p51 = por %p49, %p50
    %p53 = scmp.ne.s32.totalorder %s36, %s52
    %p54 = scmp.eq.s32.totalorder %s14, 0
    %p55 = por %p53, %p54
    %s57 = sadd.s32 %s56, 1
    %p60 = scmp.eq.s32.totalorder %s8, 3
    %p61 = scmp.ne.s32.totalorder %s56, %s58
    %p62 = scmp.eq.s32.totalorder %s8, 0
    %p63 = por %p61, %p62
    %p64 = scmp.ne.s32.totalorder %s56, %s58
    %p65 = scmp.eq.s32.totalorder %s13, 3
    %p66 = por %p64, %p65
    %p67 = scmp.ne.s32.totalorder %s58, %s59
    %p68 = scmp.eq.s32.totalorder %s13, 0
    %p69 = por %p67, %p68
    %p70 = scmp.ne.s32.totalorder %s58, %s59
    %p71 = scmp.eq.s32.totalorder %s14, 3
    %p72 = por %p70, %p71
    %p74 = scmp.ne.s32.totalorder %s59, %s73
    %p75 = scmp.eq.s32.totalorder %s14, 0
    %p76 = por %p74, %p75
    %s77 = ssub.s32 %s15, %s27
    %s78 = ssub.s32 %s16, %s23
    %s79 = sor.u32 %s77, %s78
    %p80 = scmp.eq.s32.totalorder %s79, 0
    %s82 = sadd.s32 %s81, 1
    %s83 = scalar_select %p80, %s81, %s82
    %p86 = pneg %p80
    %p87 = scmp.eq.s32.totalorder %s8, 3
    %p88 = por %p86, %p87
    %p89 = scmp.ne.s32.totalorder %s81, %s84
    %p90 = scmp.eq.s32.totalorder %s8, 0
    %p91 = por %p89, %p90
    %p92 = scmp.ne.s32.totalorder %s81, %s84
    %p93 = scmp.eq.s32.totalorder %s13, 3
    %p94 = por %p92, %p93
    %p95 = scmp.ne.s32.totalorder %s84, %s85
    %p96 = scmp.eq.s32.totalorder %s13, 0
    %p97 = por %p95, %p96
    %p98 = scmp.ne.s32.totalorder %s84, %s85
    %p99 = scmp.eq.s32.totalorder %s14, 3
    %p100 = por %p98, %p99
    %p102 = scmp.ne.s32.totalorder %s85, %s101
    %p103 = scmp.eq.s32.totalorder %s14, 0
    %p104 = por %p102, %p103
    %p105 = scmp.le.s32.totalorder 1, %s8
    %p106 = scmp.lt.s32.totalorder %s8, 5
    %p107 = pnand %p105, %p106
    %p108 = pneg %p107
    // Predicated region
    $region9: #{_lambda_.12} parent=5 // pred_check
      _
    $region10: #{_lambda_.12} parent=5 // pred_check_branch
      %110 = sbr.rel (%p107) target = $region12
    $region11: #{_lambda_.12} parent=5 // pred_region
      %s111 = ssub.s32 %s8, 1
      // Predicated region
      $region13: #{_lambda_.12} parent=11 // pred_check
        %p112 = pneg %p69
      $region14: #{_lambda_.12} parent=11 // pred_check_branch
        %114 = sbr.rel (%p112) target = $region16
      $region15: #{_lambda_.12} parent=11 // pred_region
        _
      $region16: #{_lambda_.12} parent=11 // pred_fallthru
        _
    $region12: #{_lambda_.12} parent=5 // pred_fallthru
      _
    %p115 = scmp.lt.s32.totalorder %s8, 4
    // Predicated region
    $region17: #{_lambda_.12} parent=5 // pred_check
      %p116 = pneg %p115
    $region18: #{_lambda_.12} parent=5 // pred_check_branch
      %118 = sbr.rel (%p116) target = $region20
    $region19: #{_lambda_.12} parent=5 // pred_region
      // Predicated region
      $region21: #{_lambda_.12} parent=19 // pred_check
        %p119 = pneg %p42
      $region22: #{_lambda_.12} parent=19 // pred_check_branch
        %121 = sbr.rel (%p119) target = $region24
      $region23: #{_lambda_.12} parent=19 // pred_region
        %s122 = smul.u32 13, %s16
        %p123 = scmp.lt.s32.totalorder %s15, 3
        %s124 = scalar_select %p123, %s15, 3
        %p125 = scmp.lt.s32.totalorder %s122, 12
        %s126 = scalar_select %p125, %s122, 12
        %s127 = smul.addr %s124, 13
        %s128 = sadd.s32 %s126, %s127
        %s129 = smul.addr %s128, 4
        %s130 = scalar_lea.vmem %s0, %s129
        %s131 = smul.u32 13, %s16
      $region24: #{_lambda_.12} parent=19 // pred_fallthru
        _
    $region20: #{_lambda_.12} parent=5 // pred_fallthru
      _
    %p132 = scmp.le.s32.totalorder 1, %s8
    %p133 = scmp.lt.s32.totalorder %s8, 5
    %p134 = pnand %p132, %p133
    %p135 = pneg %p134
    // Predicated region
    $region25: #{_lambda_.12} parent=5 // pred_check
      _
    $region26: #{_lambda_.12} parent=5 // pred_check_branch
      %137 = sbr.rel (%p134) target = $region28
    $region27: #{_lambda_.12} parent=5 // pred_region
      %s138 = ssub.s32 %s8, 1
      %s139 = smul.u32 13, %s18
      %p140 = scmp.lt.s32.totalorder %s17, 3
      %s141 = scalar_select %p140, %s17, 3
      %p142 = scmp.lt.s32.totalorder %s139, 12
      %s143 = scalar_select %p142, %s139, 12
      %s144 = smul.addr %s141, 13
      %s145 = sadd.s32 %s143, %s144
      %s146 = smul.addr %s145, 4
      %s147 = scalar_lea.vmem %s0, %s146
      %p148 = pneg %p48
      %p149 = pneg %p45
      %p150 = pneg %p69
      %p151 = pneg %p66
      %p152 = pneg %p97
      %p153 = pneg %p94
      %s154 = smul.u32 13, %s18
      %p155 = scmp.lt.s32.totalorder %s17, 3
      %s156 = scalar_select %p155, %s17, 3
      %p157 = scmp.lt.s32.totalorder %s154, 12
      %s158 = scalar_select %p157, %s154, 12
      %s159 = smul.addr %s156, 13
      %s160 = sadd.s32 %s158, %s159
      %s161 = smul.addr %s160, 4
      %s162 = scalar_lea.vmem %s2, %s161
      %s163 = smul.u32 13, %s18
      %p164 = scmp.lt.s32.totalorder %s17, 3
      %s165 = scalar_select %p164, %s17, 3
      %p166 = scmp.lt.s32.totalorder %s163, 12
      %s167 = scalar_select %p166, %s163, 12
      %s168 = smul.addr %s165, 13
      %s169 = sadd.s32 %s167, %s168
      %s170 = smul.addr %s169, 4
      %s171 = scalar_lea.vmem %s0, %s170
      %s172 = smul.u32 13, %s18
      %s173 = smul.u32 13, %s18
      %p174 = scmp.lt.s32.totalorder %s17, 3
      %s175 = scalar_select %p174, %s17, 3
      %p176 = scmp.lt.s32.totalorder %s173, 12
      %s177 = scalar_select %p176, %s173, 12
      %s178 = smul.addr %s175, 13
      %s179 = sadd.s32 %s177, %s178
      %s180 = smul.addr %s179, 4
      %s181 = scalar_lea.vmem %s2, %s180
      %s182 = smul.u32 13, %s18
      %v183 = vld [vmem:[%s171] sm:$0xf]
      %v184 = vld [vmem:[%s171 + $0x4] sm:$0xf]
      %v185 = vld [vmem:[%s171 + $0x8] sm:$0xf]
      %v186 = vld [vmem:[%s171 + $0xc] sm:$0xf]
      %v187 = vld [vmem:[%s171 + $0x10] sm:$0xf]
      %v188 = vld [vmem:[%s171 + $0x14] sm:$0xf]
      %v189 = vld [vmem:[%s171 + $0x18] sm:$0xf]
      %v190 = vld [vmem:[%s171 + $0x1c] sm:$0xf]
      %v191 = vld [vmem:[%s171 + $0x20] sm:$0xf]
      %v192 = vld [vmem:[%s171 + $0x24] sm:$0xf]
      %v193 = vld [vmem:[%s171 + $0x28] sm:$0xf]
      %v194 = vld [vmem:[%s171 + $0x2c] sm:$0xf]
      %v195 = vld [vmem:[%s171 + $0x30] sm:$0xf]
      %v196 = vunpack.c.l.bf16 %v183
      %v197 = vunpack.c.l.bf16 %v184
      %v198 = vunpack.c.l.bf16 %v185
      %v199 = vunpack.c.l.bf16 %v186
      %v200 = vunpack.c.l.bf16 %v187
      %v201 = vunpack.c.l.bf16 %v188
      %v202 = vunpack.c.l.bf16 %v189
      %v203 = vunpack.c.l.bf16 %v190
      %v204 = vunpack.c.l.bf16 %v191
      %v205 = vunpack.c.l.bf16 %v192
      %v206 = vunpack.c.l.bf16 %v193
      %v207 = vunpack.c.l.bf16 %v194
      %v208 = vunpack.c.l.bf16 %v195
      %v209 = vld [vmem:[%s1] sm:$0x1]
      %v210 = vld [vmem:[%s1 + $0x1] sm:$0x1]
      %v211 = vlaneseq
      %v212 = vshrl.u32 %v211, 7
      %v213 = vsub.s32 0, %v212
      %v214 = vrot.slane %v209, %v213
      %v215 = vsub.f32 %v196, %v214
      %v216 = vsub.f32 %v197, %v214
      %v217 = vsub.f32 %v198, %v214
      %v218 = vsub.f32 %v199, %v214
      %v219 = vsub.f32 %v200, %v214
      %v220 = vsub.f32 %v201, %v214
      %v221 = vsub.f32 %v202, %v214
      %v222 = vsub.f32 %v203, %v214
      %v223 = vsub.f32 %v204, %v214
      %v224 = vsub.f32 %v205, %v214
      %v225 = vsub.f32 %v206, %v214
      %v226 = vsub.f32 %v207, %v214
      %v227 = vsub.f32 %v208, %v214
      %v228 = vlaneseq
      %v229 = vshrl.u32 %v228, 7
      %v230 = vsub.s32 0, %v229
      %v231 = vrot.slane %v210, %v230
      %v232 = vmul.f32 %v215, %v231
      %v233 = vmul.f32 %v216, %v231
      %v234 = vmul.f32 %v217, %v231
      %v235 = vmul.f32 %v218, %v231
      %v236 = vmul.f32 %v219, %v231
      %v237 = vmul.f32 %v220, %v231
      %v238 = vmul.f32 %v221, %v231
      %v239 = vmul.f32 %v222, %v231
      %v240 = vmul.f32 %v223, %v231
      %v241 = vmul.f32 %v224, %v231
      %v242 = vmul.f32 %v225, %v231
      %v243 = vmul.f32 %v226, %v231
      %v244 = vmul.f32 %v227, %v231
      %v245 = vpack.c.bf16 %v233, %v232
      %v246 = vpack.c.bf16 %v235, %v234
      %v247 = vpack.c.bf16 %v237, %v236
      %v248 = vpack.c.bf16 %v239, %v238
      %v249 = vpack.c.bf16 %v241, %v240
      %v250 = vpack.c.bf16 %v243, %v242
      %v251 = vpack.c.bf16 %v244, %v244
      %v259 = vunpack.c.l.b16 %v245
      %v260 = vunpack.c.h.b16 %v245
      %v261 = vunpack.c.l.b16 %v246
      %v262 = vunpack.c.h.b16 %v246
      %v263 = vunpack.c.l.b16 %v247
      %v264 = vunpack.c.h.b16 %v247
      %v265 = vunpack.c.l.b16 %v248
      %v266 = vunpack.c.h.b16 %v248
      %v267 = vunpack.c.l.b16 %v249
      %v268 = vunpack.c.h.b16 %v249
      %v269 = vunpack.c.l.b16 %v250
      %v270 = vunpack.c.h.b16 %v250
      %v271 = vunpack.c.l.b16 %v251
      %v272 = vpack.c.b16 %v259, %v259
      %v273 = vpack.c.b16 %v260, %v260
      %v274 = vpack.c.b16 %v261, %v261
      %v275 = vpack.c.b16 %v262, %v262
      %v276 = vpack.c.b16 %v263, %v263
      %v277 = vpack.c.b16 %v264, %v264
      %v278 = vpack.c.b16 %v265, %v265
      %v279 = vpack.c.b16 %v266, %v266
      %v280 = vpack.c.b16 %v267, %v267
      %v281 = vpack.c.b16 %v268, %v268
      %v282 = vpack.c.b16 %v269, %v269
      %v283 = vpack.c.b16 %v270, %v270
      %v284 = vpack.c.b16 %v271, %v271
      %vm298 = vcmask 125952
      %299 = vst.msk [vmem:[%s181] sm:$0xf] %vm298, %v272
      %300 = vst.msk [vmem:[%s181 + $0x4] sm:$0xf] %vm298, %v273
      %301 = vst.msk [vmem:[%s181 + $0x8] sm:$0xf] %vm298, %v274
      %302 = vst.msk [vmem:[%s181 + $0xc] sm:$0xf] %vm298, %v275
      %303 = vst.msk [vmem:[%s181 + $0x10] sm:$0xf] %vm298, %v276
      %304 = vst.msk [vmem:[%s181 + $0x14] sm:$0xf] %vm298, %v277
      %305 = vst.msk [vmem:[%s181 + $0x18] sm:$0xf] %vm298, %v278
      %306 = vst.msk [vmem:[%s181 + $0x1c] sm:$0xf] %vm298, %v279
      %307 = vst.msk [vmem:[%s181 + $0x20] sm:$0xf] %vm298, %v280
      %308 = vst.msk [vmem:[%s181 + $0x24] sm:$0xf] %vm298, %v281
      %309 = vst.msk [vmem:[%s181 + $0x28] sm:$0xf] %vm298, %v282
      %310 = vst.msk [vmem:[%s181 + $0x2c] sm:$0xf] %vm298, %v283
      %311 = vst.msk [vmem:[%s181 + $0x30] sm:$0xf] %vm298, %v284
      %s312 = smul.u32 13, %s18
      %p313 = scmp.lt.s32.totalorder %s17, 3
      %s314 = scalar_select %p313, %s17, 3
      %p315 = scmp.lt.s32.totalorder %s312, 12
      %s316 = scalar_select %p315, %s312, 12
      %s317 = smul.addr %s314, 13
      %s318 = sadd.s32 %s316, %s317
      %s319 = smul.addr %s318, 4
      %s320 = scalar_lea.vmem %s2, %s319
      // Predicated region
      $region29: #{_lambda_.12} parent=27 // pred_check
        %p321 = pneg %p94
      $region30: #{_lambda_.12} parent=27 // pred_check_branch
        %323 = sbr.rel (%p321) target = $region32
      $region31: #{_lambda_.12} parent=27 // pred_region
        %s324 = smul.u32 13, %s18
      $region32: #{_lambda_.12} parent=27 // pred_fallthru
        _
    $region28: #{_lambda_.12} parent=5 // pred_fallthru
      _
    %p325 = scmp.le.s32.totalorder 2, %s8
    // Predicated region
    $region33: #{_lambda_.12} parent=5 // pred_check
      %p326 = pneg %p325
    $region34: #{_lambda_.12} parent=5 // pred_check_branch
      %328 = sbr.rel (%p326) target = $region36
    $region35: #{_lambda_.12} parent=5 // pred_region
      %s329 = ssub.s32 %s8, 2
      // Predicated region
      $region37: #{_lambda_.12} parent=35 // pred_check
        %p330 = pneg %p100
      $region38: #{_lambda_.12} parent=35 // pred_check_branch
        %332 = sbr.rel (%p330) target = $region40
      $region39: #{_lambda_.12} parent=35 // pred_region
        %s333 = smul.u32 13, %s20
        %p334 = scmp.lt.s32.totalorder %s19, 3
        %s335 = scalar_select %p334, %s19, 3
        %p336 = scmp.lt.s32.totalorder %s333, 12
        %s337 = scalar_select %p336, %s333, 12
        %s338 = smul.addr %s335, 13
        %s339 = sadd.s32 %s337, %s338
        %s340 = smul.addr %s339, 4
        %s341 = scalar_lea.vmem %s2, %s340
      $region40: #{_lambda_.12} parent=35 // pred_fallthru
        _
    $region36: #{_lambda_.12} parent=5 // pred_fallthru
      _
  $region6: #{_lambda_.12} parent=0 // loop_footer
    %s12 = sadd.s32 1, %s8
  $region7: #{_lambda_.12} parent=0 // loop_footer_branch
    %7 = sbr.rel target = $region3
  $region8: #{_lambda_.12} parent=0 // loop_exit
    _

// kernel: _lambda_.13
$region0: #{_lambda_.13}
  #allocation0 [shape = 'u32[]', space=smem, size = 0x4, offset = 0x4, fixed_abs, tag = 'smem constant byte address 0x4 - core index']
  #allocation1 [shape = 'u32[144,128]{1,0:T(1,128)}', space=vmem, size = 0x12000, scoped, tag = 'internal scratch']
  %s0 = inlined_call_operand.vmem [shape: bf16[4,4,64], index: 0, kind: input, shape index: {}]
  %s1 = inlined_call_operand.vmem [shape: bf16[4,64,512], index: 1, kind: input, shape index: {}]
  %s2 = inlined_call_operand.vmem [shape: f32[4,1,512], index: 2, kind: input, shape index: {}]
  %s3 = inlined_call_operand.vmem [shape: f32[4,4,512], index: 3, kind: output, shape index: {0}]
  %s4 = inlined_call_operand.vmem [shape: f32[4,4,512], index: 4, kind: output, shape index: {1}]
  %5 = xla_tuple %s3, %s4
  %s6 = sld [smem:[#allocation0]]
  $region53: #{_lambda_.13} parent=0
    _
  %s8 = ssub.s32 1, %s6
  %s9 = scalar_select 0, %s8, %s6
  loop: start=0, step=1, limit=6
  $region2: #{_lambda_.13} parent=0 // loop_pre_header
    _
  $region3: #{_lambda_.13} parent=0 // loop_header
    %s11 = sphi 0, %s15
    %p12 = scmp.ge.s32.totalorder %s11, 6
    %s18 = sphi 0, %s30
    %s19 = sphi 0, %s26
    %s20 = sphi 0, %s18
    %s21 = sphi 0, %s19
    %s22 = sphi 0, %s20
    %s23 = sphi 0, %s21
    %s33 = sphi 0, %s35
    %s36 = sphi 0, %s33
    %s37 = sphi 0, %s36
    %s53 = sphi 0, %s37
    %s61 = sphi 0, %s63
    %s64 = sphi 0, %s61
    %s65 = sphi 0, %s64
    %s81 = sphi 0, %s65
    %s89 = sphi 0, %s91
    %s92 = sphi 0, %s89
    %s93 = sphi 0, %s92
    %s109 = sphi 0, %s93
    %s117 = sphi 0, %s119
    %s120 = sphi 0, %s117
    %s121 = sphi 0, %s120
    %s137 = sphi 0, %s121
    %s145 = sphi 0, %s147
    %s148 = sphi 0, %s145
    %s149 = sphi 0, %s148
    %s165 = sphi 0, %s149
  $region4: #{_lambda_.13} parent=0 // loop_header_branch
    %14 = sbr.rel (%p12) target = $region8
  $region5: #{_lambda_.13} parent=0 // loop_body
    %s16 = ssub.s32 %s11, 1
    %s17 = ssub.s32 %s11, 2
    %s24 = sadd.s32 1, %s19
    %p25 = scmp.ge.s32.totalorder %s24, 1
    %s26 = scalar_select %p25, 0, %s24
    %s27 = sadd.s32 1, %s18
    %s28 = scalar_select %p25, %s27, %s18
    %p29 = scmp.ge.s32.totalorder %s28, 4
    %s30 = scalar_select %p29, 0, %s28
    %s31 = ssub.s32 %s18, %s30
    %p32 = scmp.eq.s32.totalorder %s31, 0
    %s34 = sadd.s32 %s33, 1
    %s35 = scalar_select %p32, %s33, %s34
    %p38 = pneg %p32
    %p39 = scmp.eq.s32.totalorder %s11, 3
    %p40 = por %p38, %p39
    %p41 = scmp.ne.s32.totalorder %s33, %s36
    %p42 = scmp.eq.s32.totalorder %s11, 0
    %p43 = por %p41, %p42
    %p44 = scmp.ne.s32.totalorder %s33, %s36
    %p45 = scmp.eq.s32.totalorder %s16, 3
    %p46 = por %p44, %p45
    %p47 = scmp.ne.s32.totalorder %s36, %s37
    %p48 = scmp.eq.s32.totalorder %s16, 0
    %p49 = por %p47, %p48
    %p50 = scmp.ne.s32.totalorder %s36, %s37
    %p51 = scmp.eq.s32.totalorder %s17, 3
    %p52 = por %p50, %p51
    %p54 = scmp.ne.s32.totalorder %s37, %s53
    %p55 = scmp.eq.s32.totalorder %s17, 0
    %p56 = por %p54, %p55
    %s57 = ssub.s32 %s18, %s30
    %s58 = ssub.s32 %s19, %s26
    %s59 = sor.u32 %s57, %s58
    %p60 = scmp.eq.s32.totalorder %s59, 0
    %s62 = sadd.s32 %s61, 1
    %s63 = scalar_select %p60, %s61, %s62
    %p66 = pneg %p60
    %p67 = scmp.eq.s32.totalorder %s11, 3
    %p68 = por %p66, %p67
    %p69 = scmp.ne.s32.totalorder %s61, %s64
    %p70 = scmp.eq.s32.totalorder %s11, 0
    %p71 = por %p69, %p70
    %p72 = scmp.ne.s32.totalorder %s61, %s64
    %p73 = scmp.eq.s32.totalorder %s16, 3
    %p74 = por %p72, %p73
    %p75 = scmp.ne.s32.totalorder %s64, %s65
    %p76 = scmp.eq.s32.totalorder %s16, 0
    %p77 = por %p75, %p76
    %p78 = scmp.ne.s32.totalorder %s64, %s65
    %p79 = scmp.eq.s32.totalorder %s17, 3
    %p80 = por %p78, %p79
    %p82 = scmp.ne.s32.totalorder %s65, %s81
    %p83 = scmp.eq.s32.totalorder %s17, 0
    %p84 = por %p82, %p83
    %s85 = ssub.s32 %s18, %s30
    %s86 = ssub.s32 %s19, %s26
    %s87 = sor.u32 %s85, %s86
    %p88 = scmp.eq.s32.totalorder %s87, 0
    %s90 = sadd.s32 %s89, 1
    %s91 = scalar_select %p88, %s89, %s90
    %p94 = pneg %p88
    %p95 = scmp.eq.s32.totalorder %s11, 3
    %p96 = por %p94, %p95
    %p97 = scmp.ne.s32.totalorder %s89, %s92
    %p98 = scmp.eq.s32.totalorder %s11, 0
    %p99 = por %p97, %p98
    %p100 = scmp.ne.s32.totalorder %s89, %s92
    %p101 = scmp.eq.s32.totalorder %s16, 3
    %p102 = por %p100, %p101
    %p103 = scmp.ne.s32.totalorder %s92, %s93
    %p104 = scmp.eq.s32.totalorder %s16, 0
    %p105 = por %p103, %p104
    %p106 = scmp.ne.s32.totalorder %s92, %s93
    %p107 = scmp.eq.s32.totalorder %s17, 3
    %p108 = por %p106, %p107
    %p110 = scmp.ne.s32.totalorder %s93, %s109
    %p111 = scmp.eq.s32.totalorder %s17, 0
    %p112 = por %p110, %p111
    %s113 = ssub.s32 %s18, %s30
    %s114 = ssub.s32 %s19, %s26
    %s115 = sor.u32 %s113, %s114
    %p116 = scmp.eq.s32.totalorder %s115, 0
    %s118 = sadd.s32 %s117, 1
    %s119 = scalar_select %p116, %s117, %s118
    %p122 = pneg %p116
    %p123 = scmp.eq.s32.totalorder %s11, 3
    %p124 = por %p122, %p123
    %p125 = scmp.ne.s32.totalorder %s117, %s120
    %p126 = scmp.eq.s32.totalorder %s11, 0
    %p127 = por %p125, %p126
    %p128 = scmp.ne.s32.totalorder %s117, %s120
    %p129 = scmp.eq.s32.totalorder %s16, 3
    %p130 = por %p128, %p129
    %p131 = scmp.ne.s32.totalorder %s120, %s121
    %p132 = scmp.eq.s32.totalorder %s16, 0
    %p133 = por %p131, %p132
    %p134 = scmp.ne.s32.totalorder %s120, %s121
    %p135 = scmp.eq.s32.totalorder %s17, 3
    %p136 = por %p134, %p135
    %p138 = scmp.ne.s32.totalorder %s121, %s137
    %p139 = scmp.eq.s32.totalorder %s17, 0
    %p140 = por %p138, %p139
    %s141 = ssub.s32 %s18, %s30
    %s142 = ssub.s32 %s19, %s26
    %s143 = sor.u32 %s141, %s142
    %p144 = scmp.eq.s32.totalorder %s143, 0
    %s146 = sadd.s32 %s145, 1
    %s147 = scalar_select %p144, %s145, %s146
    %p150 = pneg %p144
    %p151 = scmp.eq.s32.totalorder %s11, 3
    %p152 = por %p150, %p151
    %p153 = scmp.ne.s32.totalorder %s145, %s148
    %p154 = scmp.eq.s32.totalorder %s11, 0
    %p155 = por %p153, %p154
    %p156 = scmp.ne.s32.totalorder %s145, %s148
    %p157 = scmp.eq.s32.totalorder %s16, 3
    %p158 = por %p156, %p157
    %p159 = scmp.ne.s32.totalorder %s148, %s149
    %p160 = scmp.eq.s32.totalorder %s16, 0
    %p161 = por %p159, %p160
    %p162 = scmp.ne.s32.totalorder %s148, %s149
    %p163 = scmp.eq.s32.totalorder %s17, 3
    %p164 = por %p162, %p163
    %p166 = scmp.ne.s32.totalorder %s149, %s165
    %p167 = scmp.eq.s32.totalorder %s17, 0
    %p168 = por %p166, %p167
    %p169 = scmp.le.s32.totalorder 1, %s11
    %p170 = scmp.lt.s32.totalorder %s11, 5
    %p171 = pnand %p169, %p170
    %p172 = pneg %p171
    // Predicated region
    $region9: #{_lambda_.13} parent=5 // pred_check
      _
    $region10: #{_lambda_.13} parent=5 // pred_check_branch
      %174 = sbr.rel (%p171) target = $region12
    $region11: #{_lambda_.13} parent=5 // pred_region
      %s175 = ssub.s32 %s11, 1
    $region12: #{_lambda_.13} parent=5 // pred_fallthru
      _
    %p176 = scmp.lt.s32.totalorder %s11, 4
    // Predicated region
    $region13: #{_lambda_.13} parent=5 // pred_check
      %p177 = pneg %p176
    $region14: #{_lambda_.13} parent=5 // pred_check_branch
      %179 = sbr.rel (%p177) target = $region16
    $region15: #{_lambda_.13} parent=5 // pred_region
      // Predicated region
      $region17: #{_lambda_.13} parent=15 // pred_check
        %p180 = pneg %p43
      $region18: #{_lambda_.13} parent=15 // pred_check_branch
        %182 = sbr.rel (%p180) target = $region20
      $region19: #{_lambda_.13} parent=15 // pred_region
        %p183 = scmp.lt.s32.totalorder %s18, 3
        %s184 = scalar_select %p183, %s18, 3
        %s185 = smul.addr %s184, 2
        %s186 = scalar_lea.vmem %s0, %s185
      $region20: #{_lambda_.13} parent=15 // pred_fallthru
        _
      // Predicated region
      $region21: #{_lambda_.13} parent=15 // pred_check
        %p187 = pneg %p71
      $region22: #{_lambda_.13} parent=15 // pred_check_branch
        %189 = sbr.rel (%p187) target = $region24
      $region23: #{_lambda_.13} parent=15 // pred_region
        %s190 = smul.u32 4, %s19
        %p191 = scmp.lt.s32.totalorder %s18, 3
        %s192 = scalar_select %p191, %s18, 3
        %p193 = scmp.lt.s32.totalorder %s190, 3
        %s194 = scalar_select %p193, %s190, 3
        %s195 = smul.addr %s192, 32
        %s196 = sadd.s32 %s194, %s195
        %s197 = smul.addr %s196, 4
        %s198 = scalar_lea.vmem %s1, %s197
        %s199 = smul.u32 4, %s19
      $region24: #{_lambda_.13} parent=15 // pred_fallthru
        _
      // Predicated region
      $region25: #{_lambda_.13} parent=15 // pred_check
        %p200 = pneg %p99
      $region26: #{_lambda_.13} parent=15 // pred_check_branch
        %202 = sbr.rel (%p200) target = $region28
      $region27: #{_lambda_.13} parent=15 // pred_region
        %s203 = smul.u32 4, %s19
        %p204 = scmp.lt.s32.totalorder %s18, 3
        %s205 = scalar_select %p204, %s18, 3
        %p206 = scmp.lt.s32.totalorder %s203, 3
        %s207 = scalar_select %p206, %s203, 3
        %s208 = smul.addr %s205, 4
        %s209 = sadd.s32 %s207, %s208
        %s210 = scalar_lea.vmem %s2, %s209
        %s211 = smul.u32 4, %s19
      $region28: #{_lambda_.13} parent=15 // pred_fallthru
        _
    $region16: #{_lambda_.13} parent=5 // pred_fallthru
      _
    %p212 = scmp.le.s32.totalorder 1, %s11
    %p213 = scmp.lt.s32.totalorder %s11, 5
    %p214 = pnand %p212, %p213
    %p215 = pneg %p214
    // Predicated region
    $region29: #{_lambda_.13} parent=5 // pred_check
      _
    $region30: #{_lambda_.13} parent=5 // pred_check_branch
      %217 = sbr.rel (%p214) target = $region32
    $region31: #{_lambda_.13} parent=5 // pred_region
      %s218 = ssub.s32 %s11, 1
      %p219 = scmp.lt.s32.totalorder %s20, 3
      %s220 = scalar_select %p219, %s20, 3
      %s221 = smul.addr %s220, 2
      %s222 = scalar_lea.vmem %s0, %s221
      %p223 = pneg %p49
      %p224 = pneg %p46
      %s225 = smul.u32 4, %s21
      %p226 = scmp.lt.s32.totalorder %s20, 3
      %s227 = scalar_select %p226, %s20, 3
      %p228 = scmp.lt.s32.totalorder %s225, 3
      %s229 = scalar_select %p228, %s225, 3
      %s230 = smul.addr %s227, 32
      %s231 = sadd.s32 %s229, %s230
      %s232 = smul.addr %s231, 4
      %s233 = scalar_lea.vmem %s1, %s232
      %p234 = pneg %p77
      %p235 = pneg %p74
      %s236 = smul.u32 4, %s21
      %p237 = scmp.lt.s32.totalorder %s20, 3
      %s238 = scalar_select %p237, %s20, 3
      %p239 = scmp.lt.s32.totalorder %s236, 3
      %s240 = scalar_select %p239, %s236, 3
      %s241 = smul.addr %s238, 4
      %s242 = sadd.s32 %s240, %s241
      %s243 = scalar_lea.vmem %s2, %s242
      %p244 = pneg %p105
      %p245 = pneg %p102
      %p246 = pneg %p133
      %p247 = pneg %p130
      %s248 = smul.u32 4, %s21
      %p249 = scmp.lt.s32.totalorder %s20, 3
      %s250 = scalar_select %p249, %s20, 3
      %p251 = scmp.lt.s32.totalorder %s248, 3
      %s252 = scalar_select %p251, %s248, 3
      %s253 = smul.addr %s250, 4
      %s254 = sadd.s32 %s252, %s253
      %s255 = smul.addr %s254, 4
      %s256 = scalar_lea.vmem %s3, %s255
      %p257 = pneg %p161
      %p258 = pneg %p158
      %s259 = smul.u32 4, %s21
      %p260 = scmp.lt.s32.totalorder %s20, 3
      %s261 = scalar_select %p260, %s20, 3
      %p262 = scmp.lt.s32.totalorder %s259, 3
      %s263 = scalar_select %p262, %s259, 3
      %s264 = smul.addr %s261, 4
      %s265 = sadd.s32 %s263, %s264
      %s266 = smul.addr %s265, 4
      %s267 = scalar_lea.vmem %s4, %s266
      %p268 = scmp.lt.s32.totalorder %s20, 3
      %s269 = scalar_select %p268, %s20, 3
      %s270 = smul.addr %s269, 2
      %s271 = scalar_lea.vmem %s0, %s270
      %s272 = smul.u32 4, %s21
      %p273 = scmp.lt.s32.totalorder %s20, 3
      %s274 = scalar_select %p273, %s20, 3
      %p275 = scmp.lt.s32.totalorder %s272, 3
      %s276 = scalar_select %p275, %s272, 3
      %s277 = smul.addr %s274, 32
      %s278 = sadd.s32 %s276, %s277
      %s279 = smul.addr %s278, 4
      %s280 = scalar_lea.vmem %s1, %s279
      %s281 = smul.u32 4, %s21
      %s282 = smul.u32 4, %s21
      %p283 = scmp.lt.s32.totalorder %s20, 3
      %s284 = scalar_select %p283, %s20, 3
      %p285 = scmp.lt.s32.totalorder %s282, 3
      %s286 = scalar_select %p285, %s282, 3
      %s287 = smul.addr %s284, 4
      %s288 = sadd.s32 %s286, %s287
      %s289 = scalar_lea.vmem %s2, %s288
      %s290 = smul.u32 4, %s21
      %s291 = smul.u32 4, %s21
      %p292 = scmp.lt.s32.totalorder %s20, 3
      %s293 = scalar_select %p292, %s20, 3
      %p294 = scmp.lt.s32.totalorder %s291, 3
      %s295 = scalar_select %p294, %s291, 3
      %s296 = smul.addr %s293, 4
      %s297 = sadd.s32 %s295, %s296
      %s298 = smul.addr %s297, 4
      %s299 = scalar_lea.vmem %s3, %s298
      %s300 = smul.u32 4, %s21
      %s301 = smul.u32 4, %s21
      %p302 = scmp.lt.s32.totalorder %s20, 3
      %s303 = scalar_select %p302, %s20, 3
      %p304 = scmp.lt.s32.totalorder %s301, 3
      %s305 = scalar_select %p304, %s301, 3
      %s306 = smul.addr %s303, 4
      %s307 = sadd.s32 %s305, %s306
      %s308 = smul.addr %s307, 4
      %s309 = scalar_lea.vmem %s4, %s308
      %s310 = smul.u32 4, %s21
      %v312 = vld [vmem:[%s271] sm:$0x3]
      %v313 = vld [vmem:[%s280] sm:$0xff]
      %v314 = vld [vmem:[%s280 + $0x8] sm:$0xff]
      %v315 = vld [vmem:[%s280 + $0x10] sm:$0xff]
      %v316 = vld [vmem:[%s280 + $0x18] sm:$0xff]
      %v317 = vld [vmem:[%s280 + $0x20] sm:$0xff]
      %v318 = vld [vmem:[%s280 + $0x28] sm:$0xff]
      %v319 = vld [vmem:[%s280 + $0x30] sm:$0xff]
      %v320 = vld [vmem:[%s280 + $0x38] sm:$0xff]
      %v321 = vld [vmem:[%s280 + $0x40] sm:$0xff]
      %v322 = vld [vmem:[%s280 + $0x48] sm:$0xff]
      %v323 = vld [vmem:[%s280 + $0x50] sm:$0xff]
      %v324 = vld [vmem:[%s280 + $0x58] sm:$0xff]
      %v325 = vld [vmem:[%s280 + $0x60] sm:$0xff]
      %v326 = vld [vmem:[%s280 + $0x68] sm:$0xff]
      %v327 = vld [vmem:[%s280 + $0x70] sm:$0xff]
      %v328 = vld [vmem:[%s280 + $0x78] sm:$0xff]
      %v345 = vunpack.c.l.b16 %v313
      %v346 = vunpack.c.h.b16 %v313
      %v347 = vunpack.c.l.b16 %v314
      %v348 = vunpack.c.h.b16 %v314
      %v349 = vunpack.c.l.b16 %v315
      %v350 = vunpack.c.h.b16 %v315
      %v351 = vunpack.c.l.b16 %v316
      %v352 = vunpack.c.h.b16 %v316
      %v353 = vunpack.c.l.b16 %v317
      %v354 = vunpack.c.h.b16 %v317
      %v355 = vunpack.c.l.b16 %v318
      %v356 = vunpack.c.h.b16 %v318
      %v357 = vunpack.c.l.b16 %v319
      %v358 = vunpack.c.h.b16 %v319
      %v359 = vunpack.c.l.b16 %v320
      %v360 = vunpack.c.h.b16 %v320
      %v361 = vunpack.c.l.b16 %v321
      %v362 = vunpack.c.h.b16 %v321
      %v363 = vunpack.c.l.b16 %v322
      %v364 = vunpack.c.h.b16 %v322
      %v365 = vunpack.c.l.b16 %v323
      %v366 = vunpack.c.h.b16 %v323
      %v367 = vunpack.c.l.b16 %v324
      %v368 = vunpack.c.h.b16 %v324
      %v369 = vunpack.c.l.b16 %v325
      %v370 = vunpack.c.h.b16 %v325
      %v371 = vunpack.c.l.b16 %v326
      %v372 = vunpack.c.h.b16 %v326
      %v373 = vunpack.c.l.b16 %v327
      %v374 = vunpack.c.h.b16 %v327
      %v375 = vunpack.c.l.b16 %v328
      %v376 = vunpack.c.h.b16 %v328
      %v377 = vpack.c.b16 %v349, %v345
      %v378 = vpack.c.b16 %v350, %v346
      %v379 = vpack.c.b16 %v351, %v347
      %v380 = vpack.c.b16 %v352, %v348
      %v381 = vpack.c.b16 %v357, %v353
      %v382 = vpack.c.b16 %v358, %v354
      %v383 = vpack.c.b16 %v359, %v355
      %v384 = vpack.c.b16 %v360, %v356
      %v385 = vpack.c.b16 %v365, %v361
      %v386 = vpack.c.b16 %v366, %v362
      %v387 = vpack.c.b16 %v367, %v363
      %v388 = vpack.c.b16 %v368, %v364
      %v389 = vpack.c.b16 %v373, %v369
      %v390 = vpack.c.b16 %v374, %v370
      %v391 = vpack.c.b16 %v375, %v371
      %v392 = vpack.c.b16 %v376, %v372
      %vm409 = vcmask 523264
      %v411 = vsel %vm409, %v312, 0
      %413 = vmatprep.subr.bf16.mxu0 %v378
      %414 = vmatpush1.bf16.msra.mxu0 %v377
      %415 = vmatprep.subr.bf16.mxu0 %v382
      %416 = vmatpush1.bf16.msra.mxu0 %v381
      %417 = vmatprep.subr.bf16.mxu0 %v386
      %418 = vmatpush1.bf16.msra.mxu0 %v385
      %419 = vmatprep.subr.bf16.mxu0 %v390
      %420 = vmatpush1.bf16.msra.mxu0 %v389
      %421 = vmatprep.subr.bf16.mxu0 0
      %422 = vmatpush1.bf16.msra.mxu0 0
      %423 = vmatprep.subr.bf16.mxu0 0
      %424 = vmatpush1.bf16.msra.mxu0 0
      %425 = vmatprep.subr.bf16.mxu0 0
      %426 = vmatpush1.bf16.msra.mxu0 0
      %427 = vmatprep.subr.bf16.mxu0 0
      %428 = vmatpush1.bf16.msra.mxu0 0
      %429 = vmatprep.subr.bf16.mxu0 0
      %430 = vmatpush1.bf16.msra.mxu0 0
      %431 = vmatprep.subr.bf16.mxu0 0
      %432 = vmatpush1.bf16.msra.mxu0 0
      %433 = vmatprep.subr.bf16.mxu0 0
      %434 = vmatpush1.bf16.msra.mxu0 0
      %435 = vmatprep.subr.bf16.mxu0 0
      %436 = vmatpush1.bf16.msra.mxu0 0
      %437 = vmatprep.subr.bf16.mxu0 0
      %438 = vmatpush1.bf16.msra.mxu0 0
      %439 = vmatprep.subr.bf16.mxu0 0
      %440 = vmatpush1.bf16.msra.mxu0 0
      %441 = vmatprep.subr.bf16.mxu0 0
      %442 = vmatpush1.bf16.msra.mxu0 0
      %443 = vmatprep.subr.bf16.mxu0 0
      %444 = vmatpush1.bf16.msra.mxu0 0
      %445 = vmatprep.mubr.bf16.mxu0 0
      %446 = vmatmul.mubr.bf16.gmra.mrb[0].mxu0 %v411
      %v447 = vpop.f32.mrb[0].mxu0
      %v448 = vadd.f32 0.0, %v447
      %v449 = vpop.f32.mrb[0].mxu0
      %v450 = vadd.f32 0.0, %v449
      %v451 = vpop.f32.mrb[0].mxu0
      %v452 = vpop.f32.mrb[0].mxu0
      %453 = vdwg.mxu0
      %454 = vmatprep.subr.bf16.mxu0 %v380
      %455 = vmatpush1.bf16.msra.mxu0 %v379
      %456 = vmatprep.subr.bf16.mxu0 %v384
      %457 = vmatpush1.bf16.msra.mxu0 %v383
      %458 = vmatprep.subr.bf16.mxu0 %v388
      %459 = vmatpush1.bf16.msra.mxu0 %v387
      %460 = vmatprep.subr.bf16.mxu0 %v392
      %461 = vmatpush1.bf16.msra.mxu0 %v391
      %462 = vmatprep.subr.bf16.mxu0 0
      %463 = vmatpush1.bf16.msra.mxu0 0
      %464 = vmatprep.subr.bf16.mxu0 0
      %465 = vmatpush1.bf16.msra.mxu0 0
      %466 = vmatprep.subr.bf16.mxu0 0
      %467 = vmatpush1.bf16.msra.mxu0 0
      %468 = vmatprep.subr.bf16.mxu0 0
      %469 = vmatpush1.bf16.msra.mxu0 0
      %470 = vmatprep.subr.bf16.mxu0 0
      %471 = vmatpush1.bf16.msra.mxu0 0
      %472 = vmatprep.subr.bf16.mxu0 0
      %473 = vmatpush1.bf16.msra.mxu0 0
      %474 = vmatprep.subr.bf16.mxu0 0
      %475 = vmatpush1.bf16.msra.mxu0 0
      %476 = vmatprep.subr.bf16.mxu0 0
      %477 = vmatpush1.bf16.msra.mxu0 0
      %478 = vmatprep.subr.bf16.mxu0 0
      %479 = vmatpush1.bf16.msra.mxu0 0
      %480 = vmatprep.subr.bf16.mxu0 0
      %481 = vmatpush1.bf16.msra.mxu0 0
      %482 = vmatprep.subr.bf16.mxu0 0
      %483 = vmatpush1.bf16.msra.mxu0 0
      %484 = vmatprep.subr.bf16.mxu0 0
      %485 = vmatpush1.bf16.msra.mxu0 0
      %486 = vmatprep.mubr.bf16.mxu0 0
      %487 = vmatmul.mubr.bf16.gmra.mrb[0].mxu0 %v411
      %v488 = vpop.f32.mrb[0].mxu0
      %v489 = vadd.f32 0.0, %v488
      %v490 = vpop.f32.mrb[0].mxu0
      %v491 = vadd.f32 0.0, %v490
      %v492 = vpop.f32.mrb[0].mxu0
      %v493 = vpop.f32.mrb[0].mxu0
      %494 = vdwg.mxu0
      %vm495 = vcmask 1043456
      %v496 = vsel %vm495, %v448, -inf
      %v497 = vrot.slane %v496, 4
      %v498 = vmax.f32 %v496, %v497
      %v499 = vrot.slane %v498, 2
      %v500 = vmax.f32 %v498, %v499
      %v501 = vrot.slane %v500, 1
      %v502 = vmax.f32 %v500, %v501
      %v503 = vsel %vm495, %v450, -inf
      %v504 = vrot.slane %v503, 4
      %v505 = vmax.f32 %v503, %v504
      %v506 = vrot.slane %v505, 2
      %v507 = vmax.f32 %v505, %v506
      %v508 = vrot.slane %v507, 1
      %v509 = vmax.f32 %v507, %v508
      %v510 = vsel %vm495, %v489, -inf
      %v511 = vrot.slane %v510, 4
      %v512 = vmax.f32 %v510, %v511
      %v513 = vrot.slane %v512, 2
      %v514 = vmax.f32 %v512, %v513
      %v515 = vrot.slane %v514, 1
      %v516 = vmax.f32 %v514, %v515
      %v517 = vsel %vm495, %v491, -inf
      %v518 = vrot.slane %v517, 4
      %v519 = vmax.f32 %v517, %v518
      %v520 = vrot.slane %v519, 2
      %v521 = vmax.f32 %v519, %v520
      %v522 = vrot.slane %v521, 1
      %v523 = vmax.f32 %v521, %v522
      %v524 = vsub.f32 %v448, %v502
      %v525 = vsub.f32 %v450, %v509
      %v526 = vsub.f32 %v489, %v516
      %v527 = vsub.f32 %v491, %v523
      %v528 = vmul.f32 %v524, 1.442695
      %v529 = vpow.pop %v528
      %v530 = vmul.f32 %v525, 1.442695
      %v531 = vpow.pop %v530
      %v532 = vmul.f32 %v526, 1.442695
      %v533 = vpow.pop %v532
      %v534 = vmul.f32 %v527, 1.442695
      %v535 = vpow.pop %v534
      %v536 = vsel %vm495, %v529, 0.0
      %v537 = vrot.slane %v536, 4
      %v538 = vadd.f32 %v536, %v537
      %v539 = vrot.slane %v538, 2
      %v540 = vadd.f32 %v538, %v539
      %v541 = vrot.slane %v540, 1
      %v542 = vadd.f32 %v540, %v541
      %v543 = vsel %vm495, %v531, 0.0
      %v544 = vrot.slane %v543, 4
      %v545 = vadd.f32 %v543, %v544
      %v546 = vrot.slane %v545, 2
      %v547 = vadd.f32 %v545, %v546
      %v548 = vrot.slane %v547, 1
      %v549 = vadd.f32 %v547, %v548
      %v550 = vsel %vm495, %v533, 0.0
      %v551 = vrot.slane %v550, 4
      %v552 = vadd.f32 %v550, %v551
      %v553 = vrot.slane %v552, 2
      %v554 = vadd.f32 %v552, %v553
      %v555 = vrot.slane %v554, 1
      %v556 = vadd.f32 %v554, %v555
      %v557 = vsel %vm495, %v535, 0.0
      %v558 = vrot.slane %v557, 4
      %v559 = vadd.f32 %v557, %v558
      %v560 = vrot.slane %v559, 2
      %v561 = vadd.f32 %v559, %v560
      %v562 = vrot.slane %v561, 1
      %v563 = vadd.f32 %v561, %v562
      %v564 = vrcp.pop %v542
      %v565 = vmul.f32 %v529, %v564
      %v566 = vrcp.pop %v549
      %v567 = vmul.f32 %v531, %v566
      %v568 = vrcp.pop %v556
      %v569 = vmul.f32 %v533, %v568
      %v570 = vrcp.pop %v563
      %v571 = vmul.f32 %v535, %v570
      %v576 = vcombine.low %v565, %v567
      %v577 = vcombine.low %v569, %v571
      %580 = vst [vmem:[%s299] sm:$0xff] %v576
      %581 = vst [vmem:[%s299 + $0x8] sm:$0xff] %v577
      %v582 = vld [vmem:[%s289] sm:$0xf]
      %v583 = vadd.f32 %v565, 0.0
      %v584 = vadd.f32 %v567, 0.0
      %v585 = vadd.f32 %v569, 0.0
      %v586 = vadd.f32 %v571, 0.0
      %v591 = vcombine.low %v583, %v584
      %v592 = vcombine.low %v585, %v586
      %v594 = vunpack.c.l.s4 1966171168
      %v595 = vunpack.c.0.s8 %v594
      %v596 = vlaneseq
      %v597 = vshrl.u32 %v596, 7
      %v598 = vsub.s32 %v595, %v597
      %v599 = vrot.slane %v591, %v598
      %v601 = vunpack.c.l.s4 1966171168
      %v602 = vunpack.c.0.s8 %v601
      %v603 = vlaneseq
      %v604 = vshrl.u32 %v603, 7
      %v605 = vsub.s32 %v602, %v604
      %v606 = vrot.slane %v592, %v605
      %v607 = vcombine.low %v599, %v606
      %v609 = vunpack.c.l.s4 1966171168
      %v610 = vunpack.c.0.s8 %v609
      %v611 = vlaneseq
      %v612 = vshrl.u32 %v611, 7
      %v613 = vsub.s32 %v610, %v612
      %v614 = vrot.slane %v607, %v613
      %vm616 = vcmp.ge.f32.partialorder %v582, %v614
      %v617 = vsel %vm616, 1, 0
      %v618 = vcvt.s32.f32 %v617
      %v619 = vadd.f32 %v618, 0.0
      %v620 = vrot.slane %v565, 1
      %v621 = vrot.slane %v567, 1
      %v622 = vrot.slane %v569, 1
      %v623 = vrot.slane %v571, 1
      %v628 = vadd.f32 %v583, %v620
      %v629 = vadd.f32 %v584, %v621
      %v630 = vadd.f32 %v585, %v622
      %v631 = vadd.f32 %v586, %v623
      %v636 = vcombine.low %v628, %v629
      %v637 = vcombine.low %v630, %v631
      %v639 = vunpack.c.l.s4 1966171168
      %v640 = vunpack.c.0.s8 %v639
      %v641 = vlaneseq
      %v642 = vshrl.u32 %v641, 7
      %v643 = vsub.s32 %v640, %v642
      %v644 = vrot.slane %v636, %v643
      %v646 = vunpack.c.l.s4 1966171168
      %v647 = vunpack.c.0.s8 %v646
      %v648 = vlaneseq
      %v649 = vshrl.u32 %v648, 7
      %v650 = vsub.s32 %v647, %v649
      %v651 = vrot.slane %v637, %v650
      %v652 = vcombine.low %v644, %v651
      %v654 = vunpack.c.l.s4 1966171168
      %v655 = vunpack.c.0.s8 %v654
      %v656 = vlaneseq
      %v657 = vshrl.u32 %v656, 7
      %v658 = vsub.s32 %v655, %v657
      %v659 = vrot.slane %v652, %v658
      %vm661 = vcmp.ge.f32.partialorder %v582, %v659
      %v662 = vsel %vm661, 1, 0
      %v663 = vcvt.s32.f32 %v662
      %v664 = vadd.f32 %v619, %v663
      %v665 = vrot.slane %v565, 2
      %v666 = vrot.slane %v567, 2
      %v667 = vrot.slane %v569, 2
      %v668 = vrot.slane %v571, 2
      %v673 = vadd.f32 %v628, %v665
      %v674 = vadd.f32 %v629, %v666
      %v675 = vadd.f32 %v630, %v667
      %v676 = vadd.f32 %v631, %v668
      %v681 = vcombine.low %v673, %v674
      %v682 = vcombine.low %v675, %v676
      %v684 = vunpack.c.l.s4 1966171168
      %v685 = vunpack.c.0.s8 %v684
      %v686 = vlaneseq
      %v687 = vshrl.u32 %v686, 7
      %v688 = vsub.s32 %v685, %v687
      %v689 = vrot.slane %v681, %v688
      %v691 = vunpack.c.l.s4 1966171168
      %v692 = vunpack.c.0.s8 %v691
      %v693 = vlaneseq
      %v694 = vshrl.u32 %v693, 7
      %v695 = vsub.s32 %v692, %v694
      %v696 = vrot.slane %v682, %v695
      %v697 = vcombine.low %v689, %v696
      %v699 = vunpack.c.l.s4 1966171168
      %v700 = vunpack.c.0.s8 %v699
      %v701 = vlaneseq
      %v702 = vshrl.u32 %v701, 7
      %v703 = vsub.s32 %v700, %v702
      %v704 = vrot.slane %v697, %v703
      %vm706 = vcmp.ge.f32.partialorder %v582, %v704
      %v707 = vsel %vm706, 1, 0
      %v708 = vcvt.s32.f32 %v707
      %v709 = vadd.f32 %v664, %v708
      %v710 = vrot.slane %v565, 3
      %v711 = vrot.slane %v567, 3
      %v712 = vrot.slane %v569, 3
      %v713 = vrot.slane %v571, 3
      %v718 = vadd.f32 %v673, %v710
      %v719 = vadd.f32 %v674, %v711
      %v720 = vadd.f32 %v675, %v712
      %v721 = vadd.f32 %v676, %v713
      %v726 = vcombine.low %v718, %v719
      %v727 = vcombine.low %v720, %v721
      %v729 = vunpack.c.l.s4 1966171168
      %v730 = vunpack.c.0.s8 %v729
      %v731 = vlaneseq
      %v732 = vshrl.u32 %v731, 7
      %v733 = vsub.s32 %v730, %v732
      %v734 = vrot.slane %v726, %v733
      %v736 = vunpack.c.l.s4 1966171168
      %v737 = vunpack.c.0.s8 %v736
      %v738 = vlaneseq
      %v739 = vshrl.u32 %v738, 7
      %v740 = vsub.s32 %v737, %v739
      %v741 = vrot.slane %v727, %v740
      %v742 = vcombine.low %v734, %v741
      %v744 = vunpack.c.l.s4 1966171168
      %v745 = vunpack.c.0.s8 %v744
      %v746 = vlaneseq
      %v747 = vshrl.u32 %v746, 7
      %v748 = vsub.s32 %v745, %v747
      %v749 = vrot.slane %v742, %v748
      %vm751 = vcmp.ge.f32.partialorder %v582, %v749
      %v752 = vsel %vm751, 1, 0
      %v753 = vcvt.s32.f32 %v752
      %v754 = vadd.f32 %v709, %v753
      %v755 = vmin.f32 %v754, 3.0
      %v757 = vlaneseq
      %v758 = vshrl.u32 %v757, 7
      %v759 = vsub.s32 0, %v758
      %v760 = vrot.slane %v755, %v759
      %v761 = vlaneseq
      %v762 = vshrl.u32 %v761, 7
      %v763 = vsub.s32 1, %v762
      %v764 = vrot.slane %v755, %v763
      %v765 = vlaneseq
      %v766 = vshrl.u32 %v765, 7
      %v767 = vsub.s32 2, %v766
      %v768 = vrot.slane %v755, %v767
      %v769 = vlaneseq
      %v770 = vshrl.u32 %v769, 7
      %v771 = vsub.s32 3, %v770
      %v772 = vrot.slane %v755, %v771
      %v773 = vcombine.low %v760, %v764
      %v774 = vcombine.low %v768, %v772
      %777 = vst [vmem:[%s309] sm:$0xff] %v773
      %778 = vst [vmem:[%s309 + $0x8] sm:$0xff] %v774
      %s779 = smul.u32 4, %s21
      %p780 = scmp.lt.s32.totalorder %s20, 3
      %s781 = scalar_select %p780, %s20, 3
      %p782 = scmp.lt.s32.totalorder %s779, 3
      %s783 = scalar_select %p782, %s779, 3
      %s784 = smul.addr %s781, 4
      %s785 = sadd.s32 %s783, %s784
      %s786 = smul.addr %s785, 4
      %s787 = scalar_lea.vmem %s3, %s786
      %s788 = smul.u32 4, %s21
      %p789 = scmp.lt.s32.totalorder %s20, 3
      %s790 = scalar_select %p789, %s20, 3
      %p791 = scmp.lt.s32.totalorder %s788, 3
      %s792 = scalar_select %p791, %s788, 3
      %s793 = smul.addr %s790, 4
      %s794 = sadd.s32 %s792, %s793
      %s795 = smul.addr %s794, 4
      %s796 = scalar_lea.vmem %s4, %s795
      // Predicated region
      $region33: #{_lambda_.13} parent=31 // pred_check
        %p797 = pneg %p130
      $region34: #{_lambda_.13} parent=31 // pred_check_branch
        %799 = sbr.rel (%p797) target = $region36
      $region35: #{_lambda_.13} parent=31 // pred_region
        %s800 = smul.u32 4, %s21
      $region36: #{_lambda_.13} parent=31 // pred_fallthru
        _
      // Predicated region
      $region37: #{_lambda_.13} parent=31 // pred_check
        %p801 = pneg %p158
      $region38: #{_lambda_.13} parent=31 // pred_check_branch
        %803 = sbr.rel (%p801) target = $region40
      $region39: #{_lambda_.13} parent=31 // pred_region
        %s804 = smul.u32 4, %s21
      $region40: #{_lambda_.13} parent=31 // pred_fallthru
        _
    $region32: #{_lambda_.13} parent=5 // pred_fallthru
      _
    %p805 = scmp.le.s32.totalorder 2, %s11
    // Predicated region
    $region41: #{_lambda_.13} parent=5 // pred_check
      %p806 = pneg %p805
    $region42: #{_lambda_.13} parent=5 // pred_check_branch
      %808 = sbr.rel (%p806) target = $region44
    $region43: #{_lambda_.13} parent=5 // pred_region
      %s809 = ssub.s32 %s11, 2
      // Predicated region
      $region45: #{_lambda_.13} parent=43 // pred_check
        %p810 = pneg %p136
      $region46: #{_lambda_.13} parent=43 // pred_check_branch
        %812 = sbr.rel (%p810) target = $region48
      $region47: #{_lambda_.13} parent=43 // pred_region
        %s813 = smul.u32 4, %s23
        %p814 = scmp.lt.s32.totalorder %s22, 3
        %s815 = scalar_select %p814, %s22, 3
        %p816 = scmp.lt.s32.totalorder %s813, 3
        %s817 = scalar_select %p816, %s813, 3
        %s818 = smul.addr %s815, 4
        %s819 = sadd.s32 %s817, %s818
        %s820 = smul.addr %s819, 4
        %s821 = scalar_lea.vmem %s3, %s820
      $region48: #{_lambda_.13} parent=43 // pred_fallthru
        _
      // Predicated region
      $region49: #{_lambda_.13} parent=43 // pred_check
        %p822 = pneg %p164
      $region50: #{_lambda_.13} parent=43 // pred_check_branch
        %824 = sbr.rel (%p822) target = $region52
      $region51: #{_lambda_.13} parent=43 // pred_region
        %s825 = smul.u32 4, %s23
        %p826 = scmp.lt.s32.totalorder %s22, 3
        %s827 = scalar_select %p826, %s22, 3
        %p828 = scmp.lt.s32.totalorder %s825, 3
        %s829 = scalar_select %p828, %s825, 3
        %s830 = smul.addr %s827, 4
        %s831 = sadd.s32 %s829, %s830
        %s832 = smul.addr %s831, 4
        %s833 = scalar_lea.vmem %s4, %s832
      $region52: #{_lambda_.13} parent=43 // pred_fallthru
        _
    $region44: #{_lambda_.13} parent=5 // pred_fallthru
      _
  $region6: #{_lambda_.13} parent=0 // loop_footer
    %s15 = sadd.s32 1, %s11
  $region7: #{_lambda_.13} parent=0 // loop_footer_branch
    %10 = sbr.rel target = $region3
  $region8: #{_lambda_.13} parent=0 // loop_exit
    _

</llo_original>
